<compile_context>
chip_gen: v6e
topology: v6e:2x2x1
jax: 0.10.0
libtpu: 0.0.40
codegen_flags: <defaults>
</compile_context>

<pallas_src>
import functools

import jax
import jax.numpy as jnp
from jax.experimental import pallas as pl
from jax.experimental.pallas import tpu as pltpu


def _round_up(n, m):
    return ((n + m - 1) // m) * m


# ---------------------------------------------------------------------------
# Kernel
# ---------------------------------------------------------------------------
def _disc_kernel(x_ref, z_ref,
                 w1x_ref, w1z_ref, b1_ref,
                 w2_ref, b2_ref,
                 w3_ref, b3_ref,
                 w4_ref, b4_ref,
                 o_ref, *, vpu_head: bool):
    f32 = jnp.float32
    bf16 = jnp.bfloat16

    # Layer 1: concat(x, z) @ W1 + b1  (concat folded into two matmuls).
    # x-branch is a bf16 MXU matmul; z-branch has K == z_dim (tiny) and is
    # kept f32 (negligible cost, avoids odd packed-K layouts).
    h = (jnp.dot(x_ref[...].astype(bf16), w1x_ref[...],
                 preferred_element_type=f32)
         + jnp.dot(z_ref[...], w1z_ref[...], preferred_element_type=f32)
         + b1_ref[...])
    h = jnp.maximum(h, 0.0)

    # Layer 2
    h = jnp.dot(h.astype(bf16), w2_ref[...],
                preferred_element_type=f32) + b2_ref[...]
    h = jnp.maximum(h, 0.0)

    # Layer 3
    h = jnp.dot(h.astype(bf16), w3_ref[...],
                preferred_element_type=f32) + b3_ref[...]
    h = jnp.maximum(h, 0.0)

    # Layer 4 (no activation)
    if vpu_head:
        # out_dim == 1: row reduction on VPU/XLU instead of an N=1 MXU matmul.
        o_ref[...] = (jnp.sum(h * w4_ref[...], axis=-1, keepdims=True)
                      + b4_ref[...])
    else:
        o_ref[...] = (jnp.dot(h.astype(bf16), w4_ref[...],
                              preferred_element_type=f32) + b4_ref[...])


# ---------------------------------------------------------------------------
# Param preparation (done ONCE, or whenever the weights are updated)
# ---------------------------------------------------------------------------
def prepare_params(raw_params, *, x_dim):
    """Split W1, zero-pad hidden dims to lane-friendly sizes, cast weights to
    bf16 (biases stay f32).  Raw weights are (in_features, out_features)."""
    w1, b1, w2, b2, w3, b3, w4, b4 = raw_params
    h1, h2, h3 = w1.shape[1], w2.shape[1], w3.shape[1]
    out_dim = w4.shape[1]
    h1p, h2p, h3p = _round_up(h1, 128), _round_up(h2, 128), _round_up(h3, 128)

    def pad2(a, rows, cols):
        return jnp.pad(a, ((0, rows - a.shape[0]), (0, cols - a.shape[1])))

    f32, bf16 = jnp.float32, jnp.bfloat16
    w1x = pad2(w1[:x_dim, :], x_dim, h1p).astype(bf16)
    w1z = pad2(w1[x_dim:, :], w1.shape[0] - x_dim, h1p).astype(f32)  # tiny, f32
    b1p = pad2(b1, 1, h1p).astype(f32)
    w2p = pad2(w2, h1p, h2p).astype(bf16)
    b2p = pad2(b2, 1, h2p).astype(f32)
    w3p = pad2(w3, h2p, h3p).astype(bf16)
    b3p = pad2(b3, 1, h3p).astype(f32)
    if out_dim == 1:
        # VPU head layout: w4 as an f32 row (1, h3p).
        w4p = pad2(w4.T, 1, h3p).astype(f32)
    else:
        w4p = pad2(w4, h3p, out_dim).astype(bf16)
    b4p = b4.astype(f32)
    return (w1x, w1z, b1p, w2p, b2p, w3p, b3p, w4p, b4p)


# ---------------------------------------------------------------------------
# Forward
# ---------------------------------------------------------------------------
@functools.partial(jax.jit, static_argnames=("x_dim",))
def discriminator_forward(x, z, params, *, x_dim):
    """Pallas forward. `params` must come from `prepare_params`."""
    w1x, w1z, b1, w2, b2, w3, b3, w4, b4 = params
    x = x.reshape(-1, x_dim)                    # mirrors x.view(-1, x_dim)
    B = x.shape[0]
    z_dim = z.shape[1]
    out_dim = b4.shape[1]
    vpu_head = (w4.shape[0] == 1)

    tile_b = min(256, _round_up(B, 8))
    grid = (pl.cdiv(B, tile_b),)

    def const_spec(a):                          # VMEM-resident, DMA'd once
        return pl.BlockSpec(a.shape, lambda i: (0, 0))

    kernel = functools.partial(_disc_kernel, vpu_head=vpu_head)

    out = pl.pallas_call(
        kernel,
        out_shape=jax.ShapeDtypeStruct((B, out_dim), jnp.float32),
        grid=grid,
        in_specs=[
            pl.BlockSpec((tile_b, x_dim), lambda i: (i, 0)),
            pl.BlockSpec((tile_b, z_dim), lambda i: (i, 0)),
            const_spec(w1x), const_spec(w1z), const_spec(b1),
            const_spec(w2), const_spec(b2),
            const_spec(w3), const_spec(b3),
            const_spec(w4), const_spec(b4),
        ],
        out_specs=pl.BlockSpec((tile_b, out_dim), lambda i: (i, 0)),
        compiler_params=pltpu.CompilerParams(
            dimension_semantics=("parallel",),
            vmem_limit_bytes=32 << 20,
        ),
    )(x, z, w1x, w1z, b1, w2, b2, w3, b3, w4, b4)
    # torch .squeeze(): drop all size-1 dims (out_dim == 1 -> (B,))
    return jnp.squeeze(out)


# ---------------------------------------------------------------------------
# Init + reference
# ---------------------------------------------------------------------------
def init_params(key, z_dim=2, x_dim=784, out_dim=1):
    """nn.Linear-style init; weights stored as (in_features, out_features)."""
    dims = [x_dim + z_dim, 1000, 400, 100, out_dim]
    params = []
    for i in range(4):
        fan_in, fan_out = dims[i], dims[i + 1]
        key, kw, kb = jax.random.split(key, 3)
        bound = 1.0 / (fan_in ** 0.5)
        w = jax.random.uniform(kw, (fan_in, fan_out), jnp.float32, -bound, bound)
        b = jax.random.uniform(kb, (1, fan_out), jnp.float32, -bound, bound)
        params += [w, b]
    return tuple(params)


def reference_forward(x, z, prepared, x_dim):
    """Pure-JAX reference with the SAME prepared (bf16/padded) weights and the
    same f32-accumulation numerics as the kernel."""
    w1x, w1z, b1, w2, b2, w3, b3, w4, b4 = prepared
    f32, bf16 = jnp.float32, jnp.bfloat16
    x = x.reshape(-1, x_dim)

    def mm(a, w):
        return jnp.dot(a.astype(bf16), w, preferred_element_type=f32)

    h = (mm(x, w1x)
         + jnp.dot(z, w1z, preferred_element_type=f32,
                   precision=jax.lax.Precision.HIGHEST)
         + b1)
    h = jnp.maximum(h, 0.0)
    h = jnp.maximum(mm(h, w2) + b2, 0.0)
    h = jnp.maximum(mm(h, w3) + b3, 0.0)
    if w4.shape[0] == 1:
        o = jnp.sum(h * w4, axis=-1, keepdims=True) + b4
    else:
        o = mm(h, w4) + b4
    return jnp.squeeze(o)


if __name__ == "__main__":
    z_dim, x_dim, out_dim = 2, 784, 1
    B = 8

    key = jax.random.PRNGKey(0)
    kx, kz, kp = jax.random.split(key, 3)
    # x arrives as images (B, 1, 28, 28) and is flattened by the forward pass.
    x = jax.random.normal(kx, (B, 1, 28, 28), jnp.float32)
    z = jax.random.normal(kz, (B, z_dim), jnp.float32)
    raw_params = init_params(kp, z_dim=z_dim, x_dim=x_dim, out_dim=out_dim)
    params = prepare_params(raw_params, x_dim=x_dim)
    params = jax.tree_util.tree_map(jax.block_until_ready, params)

    out = discriminator_forward(x, z, params, x_dim=x_dim)
    out = jax.block_until_ready(out)

    ref = reference_forward(x, z, params, x_dim)
    assert out.shape == (B,), out.shape
    assert jnp.allclose(out, ref, atol=5e-4, rtol=5e-3), (out, ref)

    print("KERNEL_OK")
</pallas_src>

<mosaic_0001>
module attributes {stable_mosaic.version = 11 : i64} {
  func.func @_disc_kernel(%arg0: i32, %arg1: memref<8x784xf32, #tpu.memory_space<vmem>>, %arg2: memref<8x2xf32, #tpu.memory_space<vmem>>, %arg3: memref<784x1024xbf16, #tpu.memory_space<vmem>>, %arg4: memref<2x1024xf32, #tpu.memory_space<vmem>>, %arg5: memref<1x1024xf32, #tpu.memory_space<vmem>>, %arg6: memref<1024x512xbf16, #tpu.memory_space<vmem>>, %arg7: memref<1x512xf32, #tpu.memory_space<vmem>>, %arg8: memref<512x128xbf16, #tpu.memory_space<vmem>>, %arg9: memref<1x128xf32, #tpu.memory_space<vmem>>, %arg10: memref<1x128xf32, #tpu.memory_space<vmem>>, %arg11: memref<1x1xf32, #tpu.memory_space<vmem>>, %arg12: memref<8x1xf32, #tpu.memory_space<vmem>>) attributes {dimension_semantics = [#tpu.dimension_semantics<parallel>], iteration_bounds = array<i64: 1>, scalar_prefetch = 0 : i64, scratch_operands = 0 : i64, tpu.core_type = #tpu.core_type<tc>, window_params = [{transform_indices = @transform_0, window_bounds = array<i64: 8, 784>}, {transform_indices = @transform_1, window_bounds = array<i64: 8, 2>}, {pipeline_mode = #tpu.pipeline_mode<synchronous>, transform_indices = @transform_2, window_bounds = array<i64: 784, 1024>}, {pipeline_mode = #tpu.pipeline_mode<synchronous>, transform_indices = @transform_3, window_bounds = array<i64: 2, 1024>}, {pipeline_mode = #tpu.pipeline_mode<synchronous>, transform_indices = @transform_4, window_bounds = array<i64: 1, 1024>}, {pipeline_mode = #tpu.pipeline_mode<synchronous>, transform_indices = @transform_5, window_bounds = array<i64: 1024, 512>}, {pipeline_mode = #tpu.pipeline_mode<synchronous>, transform_indices = @transform_6, window_bounds = array<i64: 1, 512>}, {pipeline_mode = #tpu.pipeline_mode<synchronous>, transform_indices = @transform_7, window_bounds = array<i64: 512, 128>}, {pipeline_mode = #tpu.pipeline_mode<synchronous>, transform_indices = @transform_8, window_bounds = array<i64: 1, 128>}, {pipeline_mode = #tpu.pipeline_mode<synchronous>, transform_indices = @transform_9, window_bounds = array<i64: 1, 128>}, {pipeline_mode = #tpu.pipeline_mode<synchronous>, transform_indices = @transform_10, window_bounds = array<i64: 1, 1>}, {transform_indices = @transform_11, window_bounds = array<i64: 8, 1>}]} {
    %c0 = arith.constant 0 : index
    %c0_0 = arith.constant 0 : index
    %0 = vector.load %arg1[%c0, %c0_0] : memref<8x784xf32, #tpu.memory_space<vmem>>, vector<8x784xf32>
    %1 = arith.truncf %0 : vector<8x784xf32> to vector<8x784xbf16>
    %c0_1 = arith.constant 0 : index
    %c0_2 = arith.constant 0 : index
    %2 = vector.load %arg3[%c0_1, %c0_2] : memref<784x1024xbf16, #tpu.memory_space<vmem>>, vector<784x1024xbf16>
    %cst = arith.constant dense<0.000000e+00> : vector<8x1024xf32>
    %3 = tpu.matmul %1, %2, %cst {dimension_numbers = #tpu.dot_dimension_numbers<[1], [0], [0], [1], [0, 0, 1, 1], [], []>} : vector<8x784xbf16>, vector<784x1024xbf16>, vector<8x1024xf32> -> vector<8x1024xf32>
    %c0_3 = arith.constant 0 : index
    %c0_4 = arith.constant 0 : index
    %4 = vector.load %arg2[%c0_3, %c0_4] : memref<8x2xf32, #tpu.memory_space<vmem>>, vector<8x2xf32>
    %c0_5 = arith.constant 0 : index
    %c0_6 = arith.constant 0 : index
    %5 = vector.load %arg4[%c0_5, %c0_6] : memref<2x1024xf32, #tpu.memory_space<vmem>>, vector<2x1024xf32>
    %cst_7 = arith.constant dense<0.000000e+00> : vector<8x1024xf32>
    %6 = tpu.matmul %4, %5, %cst_7 {dimension_numbers = #tpu.dot_dimension_numbers<[1], [0], [0], [1], [0, 0, 1, 1], [], []>} : vector<8x2xf32>, vector<2x1024xf32>, vector<8x1024xf32> -> vector<8x1024xf32>
    %7 = arith.addf %3, %6 : vector<8x1024xf32>
    %c0_8 = arith.constant 0 : index
    %c0_9 = arith.constant 0 : index
    %8 = vector.load %arg5[%c0_8, %c0_9] : memref<1x1024xf32, #tpu.memory_space<vmem>>, vector<1x1024xf32>
    %9 = vector.broadcast %8 : vector<1x1024xf32> to vector<8x1024xf32>
    %10 = arith.addf %7, %9 : vector<8x1024xf32>
    %cst_10 = arith.constant 0.000000e+00 : f32
    %11 = vector.broadcast %cst_10 : f32 to vector<8x1024xf32>
    %12 = arith.maximumf %10, %11 : vector<8x1024xf32>
    %13 = arith.truncf %12 : vector<8x1024xf32> to vector<8x1024xbf16>
    %c0_11 = arith.constant 0 : index
    %c0_12 = arith.constant 0 : index
    %14 = vector.load %arg6[%c0_11, %c0_12] : memref<1024x512xbf16, #tpu.memory_space<vmem>>, vector<1024x512xbf16>
    %cst_13 = arith.constant dense<0.000000e+00> : vector<8x512xf32>
    %15 = tpu.matmul %13, %14, %cst_13 {dimension_numbers = #tpu.dot_dimension_numbers<[1], [0], [0], [1], [0, 0, 1, 1], [], []>} : vector<8x1024xbf16>, vector<1024x512xbf16>, vector<8x512xf32> -> vector<8x512xf32>
    %c0_14 = arith.constant 0 : index
    %c0_15 = arith.constant 0 : index
    %16 = vector.load %arg7[%c0_14, %c0_15] : memref<1x512xf32, #tpu.memory_space<vmem>>, vector<1x512xf32>
    %17 = vector.broadcast %16 : vector<1x512xf32> to vector<8x512xf32>
    %18 = arith.addf %15, %17 : vector<8x512xf32>
    %cst_16 = arith.constant 0.000000e+00 : f32
    %19 = vector.broadcast %cst_16 : f32 to vector<8x512xf32>
    %20 = arith.maximumf %18, %19 : vector<8x512xf32>
    %21 = arith.truncf %20 : vector<8x512xf32> to vector<8x512xbf16>
    %c0_17 = arith.constant 0 : index
    %c0_18 = arith.constant 0 : index
    %22 = vector.load %arg8[%c0_17, %c0_18] : memref<512x128xbf16, #tpu.memory_space<vmem>>, vector<512x128xbf16>
    %cst_19 = arith.constant dense<0.000000e+00> : vector<8x128xf32>
    %23 = tpu.matmul %21, %22, %cst_19 {dimension_numbers = #tpu.dot_dimension_numbers<[1], [0], [0], [1], [0, 0, 1, 1], [], []>} : vector<8x512xbf16>, vector<512x128xbf16>, vector<8x128xf32> -> vector<8x128xf32>
    %c0_20 = arith.constant 0 : index
    %c0_21 = arith.constant 0 : index
    %24 = vector.load %arg9[%c0_20, %c0_21] : memref<1x128xf32, #tpu.memory_space<vmem>>, vector<1x128xf32>
    %25 = vector.broadcast %24 : vector<1x128xf32> to vector<8x128xf32>
    %26 = arith.addf %23, %25 : vector<8x128xf32>
    %cst_22 = arith.constant 0.000000e+00 : f32
    %27 = vector.broadcast %cst_22 : f32 to vector<8x128xf32>
    %28 = arith.maximumf %26, %27 : vector<8x128xf32>
    %c0_23 = arith.constant 0 : index
    %c0_24 = arith.constant 0 : index
    %29 = vector.load %arg10[%c0_23, %c0_24] : memref<1x128xf32, #tpu.memory_space<vmem>>, vector<1x128xf32>
    %30 = vector.broadcast %29 : vector<1x128xf32> to vector<8x128xf32>
    %31 = arith.mulf %28, %30 : vector<8x128xf32>
    %cst_25 = arith.constant dense<0.000000e+00> : vector<8xf32>
    %32 = vector.multi_reduction <add>, %31, %cst_25 [1] : vector<8x128xf32> to vector<8xf32>
    %33 = vector.shape_cast %32 : vector<8xf32> to vector<8x1xf32>
    %c0_26 = arith.constant 0 : index
    %c0_27 = arith.constant 0 : index
    %34 = vector.load %arg11[%c0_26, %c0_27] : memref<1x1xf32, #tpu.memory_space<vmem>>, vector<1x1xf32>
    %35 = vector.broadcast %34 : vector<1x1xf32> to vector<8x1xf32>
    %36 = arith.addf %33, %35 : vector<8x1xf32>
    %c0_28 = arith.constant 0 : index
    %c0_29 = arith.constant 0 : index
    %37 = vector.load %arg12[%c0_28, %c0_29] : memref<8x1xf32, #tpu.memory_space<vmem>>, vector<8x1xf32>
    tpu.vector_store %arg12[%c0_28, %c0_29], %36 {strides = array<i32>} : memref<8x1xf32, #tpu.memory_space<vmem>>, vector<8x1xf32>,
    return
  }
  func.func @transform_0(%arg0: i32) -> (i32, i32) {
    %c0_i32 = arith.constant 0 : i32
    %c0_i32_0 = arith.constant 0 : i32
    return %arg0, %c0_i32 : i32, i32
  }
  func.func @transform_1(%arg0: i32) -> (i32, i32) {
    %c0_i32 = arith.constant 0 : i32
    %c0_i32_0 = arith.constant 0 : i32
    return %arg0, %c0_i32 : i32, i32
  }
  func.func @transform_2(%arg0: i32) -> (i32, i32) {
    %c0_i32 = arith.constant 0 : i32
    %c0_i32_0 = arith.constant 0 : i32
    %c0_i32_1 = arith.constant 0 : i32
    return %c0_i32, %c0_i32_0 : i32, i32
  }
  func.func @transform_3(%arg0: i32) -> (i32, i32) {
    %c0_i32 = arith.constant 0 : i32
    %c0_i32_0 = arith.constant 0 : i32
    %c0_i32_1 = arith.constant 0 : i32
    return %c0_i32, %c0_i32_0 : i32, i32
  }
  func.func @transform_4(%arg0: i32) -> (i32, i32) {
    %c0_i32 = arith.constant 0 : i32
    %c0_i32_0 = arith.constant 0 : i32
    %c0_i32_1 = arith.constant 0 : i32
    return %c0_i32, %c0_i32_0 : i32, i32
  }
  func.func @transform_5(%arg0: i32) -> (i32, i32) {
    %c0_i32 = arith.constant 0 : i32
    %c0_i32_0 = arith.constant 0 : i32
    %c0_i32_1 = arith.constant 0 : i32
    return %c0_i32, %c0_i32_0 : i32, i32
  }
  func.func @transform_6(%arg0: i32) -> (i32, i32) {
    %c0_i32 = arith.constant 0 : i32
    %c0_i32_0 = arith.constant 0 : i32
    %c0_i32_1 = arith.constant 0 : i32
    return %c0_i32, %c0_i32_0 : i32, i32
  }
  func.func @transform_7(%arg0: i32) -> (i32, i32) {
    %c0_i32 = arith.constant 0 : i32
    %c0_i32_0 = arith.constant 0 : i32
    %c0_i32_1 = arith.constant 0 : i32
    return %c0_i32, %c0_i32_0 : i32, i32
  }
  func.func @transform_8(%arg0: i32) -> (i32, i32) {
    %c0_i32 = arith.constant 0 : i32
    %c0_i32_0 = arith.constant 0 : i32
    %c0_i32_1 = arith.constant 0 : i32
    return %c0_i32, %c0_i32_0 : i32, i32
  }
  func.func @transform_9(%arg0: i32) -> (i32, i32) {
    %c0_i32 = arith.constant 0 : i32
    %c0_i32_0 = arith.constant 0 : i32
    %c0_i32_1 = arith.constant 0 : i32
    return %c0_i32, %c0_i32_0 : i32, i32
  }
  func.func @transform_10(%arg0: i32) -> (i32, i32) {
    %c0_i32 = arith.constant 0 : i32
    %c0_i32_0 = arith.constant 0 : i32
    %c0_i32_1 = arith.constant 0 : i32
    return %c0_i32, %c0_i32_0 : i32, i32
  }
  func.func @transform_11(%arg0: i32) -> (i32, i32) {
    %c0_i32 = arith.constant 0 : i32
    %c0_i32_0 = arith.constant 0 : i32
    return %arg0, %c0_i32 : i32, i32
  }
}

</mosaic_0001>

<llo_original>
// kernel: discriminator_forward.1
$region0: #{discriminator_forward.1}
  #allocation0 [shape = 'u32[]', space=smem, size = 0x4, offset = 0x4, fixed_abs, tag = 'smem constant byte address 0x4 - core index']
  #allocation1 [shape = 'u32[144,128]{1,0:T(1,128)}', space=vmem, size = 0x12000, scoped, tag = 'internal scratch']
  #allocation2 [shape = 'f32[1,1]{1,0:T(1,128)S(1)}', space=vmem, size = 0x200, scoped, tag = 'scoped memory for discriminator_forward.1']
  %s0 = inlined_call_operand.vmem [shape: f32[8,784], index: 0, kind: input, shape index: {}]
  %s1 = inlined_call_operand.vmem [shape: f32[8,2], index: 1, kind: input, shape index: {}]
  %s2 = inlined_call_operand.hbm [shape: bf16[784,1024], index: 2, kind: input, shape index: {}]
  %s3 = inlined_call_operand.hbm [shape: f32[2,1024], index: 3, kind: input, shape index: {}]
  %s4 = inlined_call_operand.hbm [shape: f32[1,1024], index: 4, kind: input, shape index: {}]
  %s5 = inlined_call_operand.hbm [shape: bf16[1024,512], index: 5, kind: input, shape index: {}]
  %s6 = inlined_call_operand.hbm [shape: f32[1,512], index: 6, kind: input, shape index: {}]
  %s7 = inlined_call_operand.hbm [shape: bf16[512,128], index: 7, kind: input, shape index: {}]
  %s8 = inlined_call_operand.hbm [shape: f32[1,128], index: 8, kind: input, shape index: {}]
  %s9 = inlined_call_operand.hbm [shape: f32[1,128], index: 9, kind: input, shape index: {}]
  %s10 = inlined_call_operand.<no memory space> [shape: f32[1,1], index: 10, kind: input, shape index: {}]
  %s11 = inlined_call_operand.vmem [shape: f32[8,1], index: 11, kind: output, shape index: {}]
  %s12 = sld [smem:[#allocation0]]
  $region86: #{discriminator_forward.1} parent=0
    _
  %s14 = ssub.s32 1, %s12
  %s15 = scalar_select 0, %s14, %s12
  %v16 = vstv %s10
  %17 = vst [vmem:[#allocation2] sm:$0x1] %v16
  $region1: #{discriminator_forward.1} parent=0
    #allocation3 [shape = 'u8[1605632]{0}', space=vmem, size = 0x188000, scoped, tag = 'input window, operand 2, single buffered']
    #allocation4 [shape = 's32[1]{0}', space=sflag, size = 0x4, scoped, tag = 'scoped memory for discriminator_forward.1']
    #allocation5 [shape = 'u8[8192]{0}', space=vmem, size = 0x2000, scoped, tag = 'input window, operand 3, single buffered']
    #allocation6 [shape = 's32[1]{0}', space=sflag, size = 0x4, scoped, tag = 'scoped memory for discriminator_forward.1']
    #allocation7 [shape = 'u8[4096]{0}', space=vmem, size = 0x1000, scoped, tag = 'input window, operand 4, single buffered']
    #allocation8 [shape = 'u8[1048576]{0}', space=vmem, size = 0x100000, scoped, tag = 'input window, operand 5, single buffered']
    #allocation9 [shape = 's32[1]{0}', space=sflag, size = 0x4, scoped, tag = 'scoped memory for discriminator_forward.1']
    #allocation10 [shape = 'u8[2048]{0}', space=vmem, size = 0x800, scoped, tag = 'input window, operand 6, single buffered']
    #allocation11 [shape = 'u8[131072]{0}', space=vmem, size = 0x20000, scoped, tag = 'input window, operand 7, single buffered']
    #allocation12 [shape = 's32[1]{0}', space=sflag, size = 0x4, scoped, tag = 'scoped memory for discriminator_forward.1']
    #allocation13 [shape = 'u8[512]{0}', space=vmem, size = 0x400, scoped, tag = 'input window, operand 8, single buffered']
    #allocation14 [shape = 'u8[512]{0}', space=vmem, size = 0x400, scoped, tag = 'input window, operand 9, single buffered']
    #allocation15 [shape = 's32[1]{0}', space=sflag, size = 0x4, scoped, tag = 'scoped memory for discriminator_forward.1']
    %18 = vsyncpa [#allocation4], 0
    %19 = vsyncpa [#allocation6], 0
    %20 = vsyncpa [#allocation9], 0
    %21 = vsyncpa [#allocation12], 0
    %22 = vsyncpa [#allocation15], 0
    // Predicated region
    $region2: #{discriminator_forward.1} parent=1 // pred_check
      _
    $region3: #{discriminator_forward.1} parent=1 // pred_check_branch
      %24 = sbr.rel (0) target = $region5
    $region4: #{discriminator_forward.1} parent=1 // pred_region
      _
    $region5: #{discriminator_forward.1} parent=1 // pred_fallthru
      _
    // Predicated region
    $region6: #{discriminator_forward.1} parent=1 // pred_check
      _
    $region7: #{discriminator_forward.1} parent=1 // pred_check_branch
      %26 = sbr.rel (0) target = $region9
    $region8: #{discriminator_forward.1} parent=1 // pred_region
      _
    $region9: #{discriminator_forward.1} parent=1 // pred_fallthru
      _
    // Predicated region
    $region10: #{discriminator_forward.1} parent=1 // pred_check
      _
    $region11: #{discriminator_forward.1} parent=1 // pred_check_branch
      %28 = sbr.rel (0) target = $region13
    $region12: #{discriminator_forward.1} parent=1 // pred_region
      %s30 = ssub.s32 50176, 50176
      %31 = vsyncadd [#allocation4], %s30
      %s32 = sshll.u32 [#allocation3], 4
      %s33 = int_to_ptr.vmem [resolvable:$true] %s32
      %38 = dma.hbm_to_vmem [thread:$0]  %s2, 50176, %s33, [#allocation4], 512, 512, 32
    $region13: #{discriminator_forward.1} parent=1 // pred_fallthru
      _
    // Predicated region
    $region14: #{discriminator_forward.1} parent=1 // pred_check
      _
    $region15: #{discriminator_forward.1} parent=1 // pred_check_branch
      %40 = sbr.rel (0) target = $region17
    $region16: #{discriminator_forward.1} parent=1 // pred_region
      %s42 = ssub.s32 256, 256
      %43 = vsyncadd [#allocation6], %s42
      %s45 = sshll.u32 [#allocation5], 4
      %s46 = int_to_ptr.vmem [resolvable:$true] %s45
      %48 = dma.hbm_to_vmem [thread:$0]  %s3, 256, %s46, [#allocation6]
    $region17: #{discriminator_forward.1} parent=1 // pred_fallthru
      _
    // Predicated region
    $region18: #{discriminator_forward.1} parent=1 // pred_check
      _
    $region19: #{discriminator_forward.1} parent=1 // pred_check_branch
      %50 = sbr.rel (0) target = $region21
    $region20: #{discriminator_forward.1} parent=1 // pred_region
      %s52 = ssub.s32 128, 128
      %53 = vsyncadd [#allocation6], %s52
      %s55 = sshll.u32 [#allocation7], 4
      %s56 = int_to_ptr.vmem [resolvable:$true] %s55
      %58 = dma.hbm_to_vmem [thread:$0]  %s4, 128, %s56, [#allocation6]
    $region21: #{discriminator_forward.1} parent=1 // pred_fallthru
      _
    // Predicated region
    $region22: #{discriminator_forward.1} parent=1 // pred_check
      _
    $region23: #{discriminator_forward.1} parent=1 // pred_check_branch
      %60 = sbr.rel (0) target = $region25
    $region24: #{discriminator_forward.1} parent=1 // pred_region
      %s62 = ssub.s32 32768, 32768
      %63 = vsyncadd [#allocation9], %s62
      %s64 = sshll.u32 [#allocation8], 4
      %s65 = int_to_ptr.vmem [resolvable:$true] %s64
      %70 = dma.hbm_to_vmem [thread:$0]  %s5, 32768, %s65, [#allocation9], 256, 256, 16
    $region25: #{discriminator_forward.1} parent=1 // pred_fallthru
      _
    // Predicated region
    $region26: #{discriminator_forward.1} parent=1 // pred_check
      _
    $region27: #{discriminator_forward.1} parent=1 // pred_check_branch
      %72 = sbr.rel (0) target = $region29
    $region28: #{discriminator_forward.1} parent=1 // pred_region
      %s74 = ssub.s32 64, 64
      %75 = vsyncadd [#allocation9], %s74
      %s77 = sshll.u32 [#allocation10], 4
      %s78 = int_to_ptr.vmem [resolvable:$true] %s77
      %80 = dma.hbm_to_vmem [thread:$0]  %s6, 64, %s78, [#allocation9]
    $region29: #{discriminator_forward.1} parent=1 // pred_fallthru
      _
    // Predicated region
    $region30: #{discriminator_forward.1} parent=1 // pred_check
      _
    $region31: #{discriminator_forward.1} parent=1 // pred_check_branch
      %82 = sbr.rel (0) target = $region33
    $region32: #{discriminator_forward.1} parent=1 // pred_region
      %s84 = ssub.s32 4096, 4096
      %85 = vsyncadd [#allocation12], %s84
      %s86 = sshll.u32 [#allocation11], 4
      %s87 = int_to_ptr.vmem [resolvable:$true] %s86
      %92 = dma.hbm_to_vmem [thread:$0]  %s7, 4096, %s87, [#allocation12], 64, 64, 4
    $region33: #{discriminator_forward.1} parent=1 // pred_fallthru
      _
    // Predicated region
    $region34: #{discriminator_forward.1} parent=1 // pred_check
      _
    $region35: #{discriminator_forward.1} parent=1 // pred_check_branch
      %94 = sbr.rel (0) target = $region37
    $region36: #{discriminator_forward.1} parent=1 // pred_region
      %s96 = ssub.s32 16, 16
      %97 = vsyncadd [#allocation12], %s96
      %s99 = sshll.u32 [#allocation13], 4
      %s100 = int_to_ptr.vmem [resolvable:$true] %s99
      %102 = dma.hbm_to_vmem [thread:$0]  %s8, 16, %s100, [#allocation12]
    $region37: #{discriminator_forward.1} parent=1 // pred_fallthru
      _
    // Predicated region
    $region38: #{discriminator_forward.1} parent=1 // pred_check
      _
    $region39: #{discriminator_forward.1} parent=1 // pred_check_branch
      %104 = sbr.rel (0) target = $region41
    $region40: #{discriminator_forward.1} parent=1 // pred_region
      %s106 = ssub.s32 16, 16
      %107 = vsyncadd [#allocation15], %s106
      %s109 = sshll.u32 [#allocation14], 4
      %s110 = int_to_ptr.vmem [resolvable:$true] %s109
      %112 = dma.hbm_to_vmem [thread:$0]  %s9, 16, %s110, [#allocation15]
    $region41: #{discriminator_forward.1} parent=1 // pred_fallthru
      _
    // Predicated region
    $region42: #{discriminator_forward.1} parent=1 // pred_check
      _
    $region43: #{discriminator_forward.1} parent=1 // pred_check_branch
      %114 = sbr.rel (0) target = $region45
    $region44: #{discriminator_forward.1} parent=1 // pred_region
      _
    $region45: #{discriminator_forward.1} parent=1 // pred_fallthru
      _
    // Predicated region
    $region46: #{discriminator_forward.1} parent=1 // pred_check
      _
    $region47: #{discriminator_forward.1} parent=1 // pred_check_branch
      %116 = sbr.rel (0) target = $region49
    $region48: #{discriminator_forward.1} parent=1 // pred_region
      %117 = dma.done [#allocation4], 50176
    $region49: #{discriminator_forward.1} parent=1 // pred_fallthru
      _
    // Predicated region
    $region50: #{discriminator_forward.1} parent=1 // pred_check
      _
    $region51: #{discriminator_forward.1} parent=1 // pred_check_branch
      %119 = sbr.rel (0) target = $region53
    $region52: #{discriminator_forward.1} parent=1 // pred_region
      %120 = dma.done [#allocation6], 256
    $region53: #{discriminator_forward.1} parent=1 // pred_fallthru
      _
    // Predicated region
    $region54: #{discriminator_forward.1} parent=1 // pred_check
      _
    $region55: #{discriminator_forward.1} parent=1 // pred_check_branch
      %122 = sbr.rel (0) target = $region57
    $region56: #{discriminator_forward.1} parent=1 // pred_region
      %123 = dma.done [#allocation6], 128
    $region57: #{discriminator_forward.1} parent=1 // pred_fallthru
      _
    // Predicated region
    $region58: #{discriminator_forward.1} parent=1 // pred_check
      _
    $region59: #{discriminator_forward.1} parent=1 // pred_check_branch
      %125 = sbr.rel (0) target = $region61
    $region60: #{discriminator_forward.1} parent=1 // pred_region
      %126 = dma.done [#allocation9], 32768
    $region61: #{discriminator_forward.1} parent=1 // pred_fallthru
      _
    // Predicated region
    $region62: #{discriminator_forward.1} parent=1 // pred_check
      _
    $region63: #{discriminator_forward.1} parent=1 // pred_check_branch
      %128 = sbr.rel (0) target = $region65
    $region64: #{discriminator_forward.1} parent=1 // pred_region
      %129 = dma.done [#allocation9], 64
    $region65: #{discriminator_forward.1} parent=1 // pred_fallthru
      _
    // Predicated region
    $region66: #{discriminator_forward.1} parent=1 // pred_check
      _
    $region67: #{discriminator_forward.1} parent=1 // pred_check_branch
      %131 = sbr.rel (0) target = $region69
    $region68: #{discriminator_forward.1} parent=1 // pred_region
      %132 = dma.done [#allocation12], 4096
    $region69: #{discriminator_forward.1} parent=1 // pred_fallthru
      _
    // Predicated region
    $region70: #{discriminator_forward.1} parent=1 // pred_check
      _
    $region71: #{discriminator_forward.1} parent=1 // pred_check_branch
      %134 = sbr.rel (0) target = $region73
    $region72: #{discriminator_forward.1} parent=1 // pred_region
      %135 = dma.done [#allocation12], 16
    $region73: #{discriminator_forward.1} parent=1 // pred_fallthru
      _
    // Predicated region
    $region74: #{discriminator_forward.1} parent=1 // pred_check
      _
    $region75: #{discriminator_forward.1} parent=1 // pred_check_branch
      %137 = sbr.rel (0) target = $region77
    $region76: #{discriminator_forward.1} parent=1 // pred_region
      %138 = dma.done [#allocation15], 16
    $region77: #{discriminator_forward.1} parent=1 // pred_fallthru
      _
    %v140 = vld [vmem:[%s0] sm:$0xff]
    %v141 = vld [vmem:[%s0 + $0x8] sm:$0xff]
    %v142 = vld [vmem:[%s0 + $0x10] sm:$0xff]
    %v143 = vld [vmem:[%s0 + $0x18] sm:$0xff]
    %v144 = vld [vmem:[%s0 + $0x20] sm:$0xff]
    %v145 = vld [vmem:[%s0 + $0x28] sm:$0xff]
    %v146 = vld [vmem:[%s0 + $0x30] sm:$0xff]
    %v147 = vpack.c.bf16 %v140, %v140
    %v148 = vpack.c.bf16 %v141, %v141
    %v149 = vpack.c.bf16 %v142, %v142
    %v150 = vpack.c.bf16 %v143, %v143
    %v151 = vpack.c.bf16 %v144, %v144
    %v152 = vpack.c.bf16 %v145, %v145
    %v153 = vpack.c.bf16 %v146, %v146
    %v154 = vld [vmem:[#allocation3] sm:$0xff]
    %v155 = vld [vmem:[#allocation3 + $0x8] sm:$0xff]
    %v156 = vld [vmem:[#allocation3 + $0x10] sm:$0xff]
    %v157 = vld [vmem:[#allocation3 + $0x18] sm:$0xff]
    %v158 = vld [vmem:[#allocation3 + $0x20] sm:$0xff]
    %v159 = vld [vmem:[#allocation3 + $0x28] sm:$0xff]
    %v160 = vld [vmem:[#allocation3 + $0x30] sm:$0xff]
    %v161 = vld [vmem:[#allocation3 + $0x38] sm:$0xff]
    %v162 = vld [vmem:[#allocation3 + $0x40] sm:$0xff]
    %v163 = vld [vmem:[#allocation3 + $0x48] sm:$0xff]
    %v164 = vld [vmem:[#allocation3 + $0x50] sm:$0xff]
    %v165 = vld [vmem:[#allocation3 + $0x58] sm:$0xff]
    %v166 = vld [vmem:[#allocation3 + $0x60] sm:$0xff]
    %v167 = vld [vmem:[#allocation3 + $0x68] sm:$0xff]
    %v168 = vld [vmem:[#allocation3 + $0x70] sm:$0xff]
    %v169 = vld [vmem:[#allocation3 + $0x78] sm:$0xff]
    %v170 = vld [vmem:[#allocation3 + $0x80] sm:$0xff]
    %v171 = vld [vmem:[#allocation3 + $0x88] sm:$0xff]
    %v172 = vld [vmem:[#allocation3 + $0x90] sm:$0xff]
    %v173 = vld [vmem:[#allocation3 + $0x98] sm:$0xff]
    %v174 = vld [vmem:[#allocation3 + $0xa0] sm:$0xff]
    %v175 = vld [vmem:[#allocation3 + $0xa8] sm:$0xff]
    %v176 = vld [vmem:[#allocation3 + $0xb0] sm:$0xff]
    %v177 = vld [vmem:[#allocation3 + $0xb8] sm:$0xff]
    %v178 = vld [vmem:[#allocation3 + $0xc0] sm:$0xff]
    %v179 = vld [vmem:[#allocation3 + $0xc8] sm:$0xff]
    %v180 = vld [vmem:[#allocation3 + $0xd0] sm:$0xff]
    %v181 = vld [vmem:[#allocation3 + $0xd8] sm:$0xff]
    %v182 = vld [vmem:[#allocation3 + $0xe0] sm:$0xff]
    %v183 = vld [vmem:[#allocation3 + $0xe8] sm:$0xff]
    %v184 = vld [vmem:[#allocation3 + $0xf0] sm:$0xff]
    %v185 = vld [vmem:[#allocation3 + $0xf8] sm:$0xff]
    %v186 = vld [vmem:[#allocation3 + $0x100] sm:$0xff]
    %v187 = vld [vmem:[#allocation3 + $0x108] sm:$0xff]
    %v188 = vld [vmem:[#allocation3 + $0x110] sm:$0xff]
    %v189 = vld [vmem:[#allocation3 + $0x118] sm:$0xff]
    %v190 = vld [vmem:[#allocation3 + $0x120] sm:$0xff]
    %v191 = vld [vmem:[#allocation3 + $0x128] sm:$0xff]
    %v192 = vld [vmem:[#allocation3 + $0x130] sm:$0xff]
    %v193 = vld [vmem:[#allocation3 + $0x138] sm:$0xff]
    %v194 = vld [vmem:[#allocation3 + $0x140] sm:$0xff]
    %v195 = vld [vmem:[#allocation3 + $0x148] sm:$0xff]
    %v196 = vld [vmem:[#allocation3 + $0x150] sm:$0xff]
    %v197 = vld [vmem:[#allocation3 + $0x158] sm:$0xff]
    %v198 = vld [vmem:[#allocation3 + $0x160] sm:$0xff]
    %v199 = vld [vmem:[#allocation3 + $0x168] sm:$0xff]
    %v200 = vld [vmem:[#allocation3 + $0x170] sm:$0xff]
    %v201 = vld [vmem:[#allocation3 + $0x178] sm:$0xff]
    %v202 = vld [vmem:[#allocation3 + $0x180] sm:$0xff]
    %v203 = vld [vmem:[#allocation3 + $0x188] sm:$0xff]
    %v204 = vld [vmem:[#allocation3 + $0x190] sm:$0xff]
    %v205 = vld [vmem:[#allocation3 + $0x198] sm:$0xff]
    %v206 = vld [vmem:[#allocation3 + $0x1a0] sm:$0xff]
    %v207 = vld [vmem:[#allocation3 + $0x1a8] sm:$0xff]
    %v208 = vld [vmem:[#allocation3 + $0x1b0] sm:$0xff]
    %v209 = vld [vmem:[#allocation3 + $0x1b8] sm:$0xff]
    %v210 = vld [vmem:[#allocation3 + $0x1c0] sm:$0xff]
    %v211 = vld [vmem:[#allocation3 + $0x1c8] sm:$0xff]
    %v212 = vld [vmem:[#allocation3 + $0x1d0] sm:$0xff]
    %v213 = vld [vmem:[#allocation3 + $0x1d8] sm:$0xff]
    %v214 = vld [vmem:[#allocation3 + $0x1e0] sm:$0xff]
    %v215 = vld [vmem:[#allocation3 + $0x1e8] sm:$0xff]
    %v216 = vld [vmem:[#allocation3 + $0x1f0] sm:$0xff]
    %v217 = vld [vmem:[#allocation3 + $0x1f8] sm:$0xff]
    %v218 = vld [vmem:[#allocation3 + $0x200] sm:$0xff]
    %v219 = vld [vmem:[#allocation3 + $0x208] sm:$0xff]
    %v220 = vld [vmem:[#allocation3 + $0x210] sm:$0xff]
    %v221 = vld [vmem:[#allocation3 + $0x218] sm:$0xff]
    %v222 = vld [vmem:[#allocation3 + $0x220] sm:$0xff]
    %v223 = vld [vmem:[#allocation3 + $0x228] sm:$0xff]
    %v224 = vld [vmem:[#allocation3 + $0x230] sm:$0xff]
    %v225 = vld [vmem:[#allocation3 + $0x238] sm:$0xff]
    %v226 = vld [vmem:[#allocation3 + $0x240] sm:$0xff]
    %v227 = vld [vmem:[#allocation3 + $0x248] sm:$0xff]
    %v228 = vld [vmem:[#allocation3 + $0x250] sm:$0xff]
    %v229 = vld [vmem:[#allocation3 + $0x258] sm:$0xff]
    %v230 = vld [vmem:[#allocation3 + $0x260] sm:$0xff]
    %v231 = vld [vmem:[#allocation3 + $0x268] sm:$0xff]
    %v232 = vld [vmem:[#allocation3 + $0x270] sm:$0xff]
    %v233 = vld [vmem:[#allocation3 + $0x278] sm:$0xff]
    %v234 = vld [vmem:[#allocation3 + $0x280] sm:$0xff]
    %v235 = vld [vmem:[#allocation3 + $0x288] sm:$0xff]
    %v236 = vld [vmem:[#allocation3 + $0x290] sm:$0xff]
    %v237 = vld [vmem:[#allocation3 + $0x298] sm:$0xff]
    %v238 = vld [vmem:[#allocation3 + $0x2a0] sm:$0xff]
    %v239 = vld [vmem:[#allocation3 + $0x2a8] sm:$0xff]
    %v240 = vld [vmem:[#allocation3 + $0x2b0] sm:$0xff]
    %v241 = vld [vmem:[#allocation3 + $0x2b8] sm:$0xff]
    %v242 = vld [vmem:[#allocation3 + $0x2c0] sm:$0xff]
    %v243 = vld [vmem:[#allocation3 + $0x2c8] sm:$0xff]
    %v244 = vld [vmem:[#allocation3 + $0x2d0] sm:$0xff]
    %v245 = vld [vmem:[#allocation3 + $0x2d8] sm:$0xff]
    %v246 = vld [vmem:[#allocation3 + $0x2e0] sm:$0xff]
    %v247 = vld [vmem:[#allocation3 + $0x2e8] sm:$0xff]
    %v248 = vld [vmem:[#allocation3 + $0x2f0] sm:$0xff]
    %v249 = vld [vmem:[#allocation3 + $0x2f8] sm:$0xff]
    %v250 = vld [vmem:[#allocation3 + $0x300] sm:$0xff]
    %v251 = vld [vmem:[#allocation3 + $0x308] sm:$0xff]
    %v252 = vld [vmem:[#allocation3 + $0x310] sm:$0xff]
    %v253 = vld [vmem:[#allocation3 + $0x318] sm:$0xff]
    %v254 = vld [vmem:[#allocation3 + $0x320] sm:$0xff]
    %v255 = vld [vmem:[#allocation3 + $0x328] sm:$0xff]
    %v256 = vld [vmem:[#allocation3 + $0x330] sm:$0xff]
    %v257 = vld [vmem:[#allocation3 + $0x338] sm:$0xff]
    %v258 = vld [vmem:[#allocation3 + $0x340] sm:$0xff]
    %v259 = vld [vmem:[#allocation3 + $0x348] sm:$0xff]
    %v260 = vld [vmem:[#allocation3 + $0x350] sm:$0xff]
    %v261 = vld [vmem:[#allocation3 + $0x358] sm:$0xff]
    %v262 = vld [vmem:[#allocation3 + $0x360] sm:$0xff]
    %v263 = vld [vmem:[#allocation3 + $0x368] sm:$0xff]
    %v264 = vld [vmem:[#allocation3 + $0x370] sm:$0xff]
    %v265 = vld [vmem:[#allocation3 + $0x378] sm:$0xff]
    %v266 = vld [vmem:[#allocation3 + $0x380] sm:$0xff]
    %v267 = vld [vmem:[#allocation3 + $0x388] sm:$0xff]
    %v268 = vld [vmem:[#allocation3 + $0x390] sm:$0xff]
    %v269 = vld [vmem:[#allocation3 + $0x398] sm:$0xff]
    %v270 = vld [vmem:[#allocation3 + $0x3a0] sm:$0xff]
    %v271 = vld [vmem:[#allocation3 + $0x3a8] sm:$0xff]
    %v272 = vld [vmem:[#allocation3 + $0x3b0] sm:$0xff]
    %v273 = vld [vmem:[#allocation3 + $0x3b8] sm:$0xff]
    %v274 = vld [vmem:[#allocation3 + $0x3c0] sm:$0xff]
    %v275 = vld [vmem:[#allocation3 + $0x3c8] sm:$0xff]
    %v276 = vld [vmem:[#allocation3 + $0x3d0] sm:$0xff]
    %v277 = vld [vmem:[#allocation3 + $0x3d8] sm:$0xff]
    %v278 = vld [vmem:[#allocation3 + $0x3e0] sm:$0xff]
    %v279 = vld [vmem:[#allocation3 + $0x3e8] sm:$0xff]
    %v280 = vld [vmem:[#allocation3 + $0x3f0] sm:$0xff]
    %v281 = vld [vmem:[#allocation3 + $0x3f8] sm:$0xff]
    %v282 = vld [vmem:[#allocation3 + $0x400] sm:$0xff]
    %v283 = vld [vmem:[#allocation3 + $0x408] sm:$0xff]
    %v284 = vld [vmem:[#allocation3 + $0x410] sm:$0xff]
    %v285 = vld [vmem:[#allocation3 + $0x418] sm:$0xff]
    %v286 = vld [vmem:[#allocation3 + $0x420] sm:$0xff]
    %v287 = vld [vmem:[#allocation3 + $0x428] sm:$0xff]
    %v288 = vld [vmem:[#allocation3 + $0x430] sm:$0xff]
    %v289 = vld [vmem:[#allocation3 + $0x438] sm:$0xff]
    %v290 = vld [vmem:[#allocation3 + $0x440] sm:$0xff]
    %v291 = vld [vmem:[#allocation3 + $0x448] sm:$0xff]
    %v292 = vld [vmem:[#allocation3 + $0x450] sm:$0xff]
    %v293 = vld [vmem:[#allocation3 + $0x458] sm:$0xff]
    %v294 = vld [vmem:[#allocation3 + $0x460] sm:$0xff]
    %v295 = vld [vmem:[#allocation3 + $0x468] sm:$0xff]
    %v296 = vld [vmem:[#allocation3 + $0x470] sm:$0xff]
    %v297 = vld [vmem:[#allocation3 + $0x478] sm:$0xff]
    %v298 = vld [vmem:[#allocation3 + $0x480] sm:$0xff]
    %v299 = vld [vmem:[#allocation3 + $0x488] sm:$0xff]
    %v300 = vld [vmem:[#allocation3 + $0x490] sm:$0xff]
    %v301 = vld [vmem:[#allocation3 + $0x498] sm:$0xff]
    %v302 = vld [vmem:[#allocation3 + $0x4a0] sm:$0xff]
    %v303 = vld [vmem:[#allocation3 + $0x4a8] sm:$0xff]
    %v304 = vld [vmem:[#allocation3 + $0x4b0] sm:$0xff]
    %v305 = vld [vmem:[#allocation3 + $0x4b8] sm:$0xff]
    %v306 = vld [vmem:[#allocation3 + $0x4c0] sm:$0xff]
    %v307 = vld [vmem:[#allocation3 + $0x4c8] sm:$0xff]
    %v308 = vld [vmem:[#allocation3 + $0x4d0] sm:$0xff]
    %v309 = vld [vmem:[#allocation3 + $0x4d8] sm:$0xff]
    %v310 = vld [vmem:[#allocation3 + $0x4e0] sm:$0xff]
    %v311 = vld [vmem:[#allocation3 + $0x4e8] sm:$0xff]
    %v312 = vld [vmem:[#allocation3 + $0x4f0] sm:$0xff]
    %v313 = vld [vmem:[#allocation3 + $0x4f8] sm:$0xff]
    %v314 = vld [vmem:[#allocation3 + $0x500] sm:$0xff]
    %v315 = vld [vmem:[#allocation3 + $0x508] sm:$0xff]
    %v316 = vld [vmem:[#allocation3 + $0x510] sm:$0xff]
    %v317 = vld [vmem:[#allocation3 + $0x518] sm:$0xff]
    %v318 = vld [vmem:[#allocation3 + $0x520] sm:$0xff]
    %v319 = vld [vmem:[#allocation3 + $0x528] sm:$0xff]
    %v320 = vld [vmem:[#allocation3 + $0x530] sm:$0xff]
    %v321 = vld [vmem:[#allocation3 + $0x538] sm:$0xff]
    %v322 = vld [vmem:[#allocation3 + $0x540] sm:$0xff]
    %v323 = vld [vmem:[#allocation3 + $0x548] sm:$0xff]
    %v324 = vld [vmem:[#allocation3 + $0x550] sm:$0xff]
    %v325 = vld [vmem:[#allocation3 + $0x558] sm:$0xff]
    %v326 = vld [vmem:[#allocation3 + $0x560] sm:$0xff]
    %v327 = vld [vmem:[#allocation3 + $0x568] sm:$0xff]
    %v328 = vld [vmem:[#allocation3 + $0x570] sm:$0xff]
    %v329 = vld [vmem:[#allocation3 + $0x578] sm:$0xff]
    %v330 = vld [vmem:[#allocation3 + $0x580] sm:$0xff]
    %v331 = vld [vmem:[#allocation3 + $0x588] sm:$0xff]
    %v332 = vld [vmem:[#allocation3 + $0x590] sm:$0xff]
    %v333 = vld [vmem:[#allocation3 + $0x598] sm:$0xff]
    %v334 = vld [vmem:[#allocation3 + $0x5a0] sm:$0xff]
    %v335 = vld [vmem:[#allocation3 + $0x5a8] sm:$0xff]
    %v336 = vld [vmem:[#allocation3 + $0x5b0] sm:$0xff]
    %v337 = vld [vmem:[#allocation3 + $0x5b8] sm:$0xff]
    %v338 = vld [vmem:[#allocation3 + $0x5c0] sm:$0xff]
    %v339 = vld [vmem:[#allocation3 + $0x5c8] sm:$0xff]
    %v340 = vld [vmem:[#allocation3 + $0x5d0] sm:$0xff]
    %v341 = vld [vmem:[#allocation3 + $0x5d8] sm:$0xff]
    %v342 = vld [vmem:[#allocation3 + $0x5e0] sm:$0xff]
    %v343 = vld [vmem:[#allocation3 + $0x5e8] sm:$0xff]
    %v344 = vld [vmem:[#allocation3 + $0x5f0] sm:$0xff]
    %v345 = vld [vmem:[#allocation3 + $0x5f8] sm:$0xff]
    %v346 = vld [vmem:[#allocation3 + $0x600] sm:$0xff]
    %v347 = vld [vmem:[#allocation3 + $0x608] sm:$0xff]
    %v348 = vld [vmem:[#allocation3 + $0x610] sm:$0xff]
    %v349 = vld [vmem:[#allocation3 + $0x618] sm:$0xff]
    %v350 = vld [vmem:[#allocation3 + $0x620] sm:$0xff]
    %v351 = vld [vmem:[#allocation3 + $0x628] sm:$0xff]
    %v352 = vld [vmem:[#allocation3 + $0x630] sm:$0xff]
    %v353 = vld [vmem:[#allocation3 + $0x638] sm:$0xff]
    %v354 = vld [vmem:[#allocation3 + $0x640] sm:$0xff]
    %v355 = vld [vmem:[#allocation3 + $0x648] sm:$0xff]
    %v356 = vld [vmem:[#allocation3 + $0x650] sm:$0xff]
    %v357 = vld [vmem:[#allocation3 + $0x658] sm:$0xff]
    %v358 = vld [vmem:[#allocation3 + $0x660] sm:$0xff]
    %v359 = vld [vmem:[#allocation3 + $0x668] sm:$0xff]
    %v360 = vld [vmem:[#allocation3 + $0x670] sm:$0xff]
    %v361 = vld [vmem:[#allocation3 + $0x678] sm:$0xff]
    %v362 = vld [vmem:[#allocation3 + $0x680] sm:$0xff]
    %v363 = vld [vmem:[#allocation3 + $0x688] sm:$0xff]
    %v364 = vld [vmem:[#allocation3 + $0x690] sm:$0xff]
    %v365 = vld [vmem:[#allocation3 + $0x698] sm:$0xff]
    %v366 = vld [vmem:[#allocation3 + $0x6a0] sm:$0xff]
    %v367 = vld [vmem:[#allocation3 + $0x6a8] sm:$0xff]
    %v368 = vld [vmem:[#allocation3 + $0x6b0] sm:$0xff]
    %v369 = vld [vmem:[#allocation3 + $0x6b8] sm:$0xff]
    %v370 = vld [vmem:[#allocation3 + $0x6c0] sm:$0xff]
    %v371 = vld [vmem:[#allocation3 + $0x6c8] sm:$0xff]
    %v372 = vld [vmem:[#allocation3 + $0x6d0] sm:$0xff]
    %v373 = vld [vmem:[#allocation3 + $0x6d8] sm:$0xff]
    %v374 = vld [vmem:[#allocation3 + $0x6e0] sm:$0xff]
    %v375 = vld [vmem:[#allocation3 + $0x6e8] sm:$0xff]
    %v376 = vld [vmem:[#allocation3 + $0x6f0] sm:$0xff]
    %v377 = vld [vmem:[#allocation3 + $0x6f8] sm:$0xff]
    %v378 = vld [vmem:[#allocation3 + $0x700] sm:$0xff]
    %v379 = vld [vmem:[#allocation3 + $0x708] sm:$0xff]
    %v380 = vld [vmem:[#allocation3 + $0x710] sm:$0xff]
    %v381 = vld [vmem:[#allocation3 + $0x718] sm:$0xff]
    %v382 = vld [vmem:[#allocation3 + $0x720] sm:$0xff]
    %v383 = vld [vmem:[#allocation3 + $0x728] sm:$0xff]
    %v384 = vld [vmem:[#allocation3 + $0x730] sm:$0xff]
    %v385 = vld [vmem:[#allocation3 + $0x738] sm:$0xff]
    %v386 = vld [vmem:[#allocation3 + $0x740] sm:$0xff]
    %v387 = vld [vmem:[#allocation3 + $0x748] sm:$0xff]
    %v388 = vld [vmem:[#allocation3 + $0x750] sm:$0xff]
    %v389 = vld [vmem:[#allocation3 + $0x758] sm:$0xff]
    %v390 = vld [vmem:[#allocation3 + $0x760] sm:$0xff]
    %v391 = vld [vmem:[#allocation3 + $0x768] sm:$0xff]
    %v392 = vld [vmem:[#allocation3 + $0x770] sm:$0xff]
    %v393 = vld [vmem:[#allocation3 + $0x778] sm:$0xff]
    %v394 = vld [vmem:[#allocation3 + $0x780] sm:$0xff]
    %v395 = vld [vmem:[#allocation3 + $0x788] sm:$0xff]
    %v396 = vld [vmem:[#allocation3 + $0x790] sm:$0xff]
    %v397 = vld [vmem:[#allocation3 + $0x798] sm:$0xff]
    %v398 = vld [vmem:[#allocation3 + $0x7a0] sm:$0xff]
    %v399 = vld [vmem:[#allocation3 + $0x7a8] sm:$0xff]
    %v400 = vld [vmem:[#allocation3 + $0x7b0] sm:$0xff]
    %v401 = vld [vmem:[#allocation3 + $0x7b8] sm:$0xff]
    %v402 = vld [vmem:[#allocation3 + $0x7c0] sm:$0xff]
    %v403 = vld [vmem:[#allocation3 + $0x7c8] sm:$0xff]
    %v404 = vld [vmem:[#allocation3 + $0x7d0] sm:$0xff]
    %v405 = vld [vmem:[#allocation3 + $0x7d8] sm:$0xff]
    %v406 = vld [vmem:[#allocation3 + $0x7e0] sm:$0xff]
    %v407 = vld [vmem:[#allocation3 + $0x7e8] sm:$0xff]
    %v408 = vld [vmem:[#allocation3 + $0x7f0] sm:$0xff]
    %v409 = vld [vmem:[#allocation3 + $0x7f8] sm:$0xff]
    %v410 = vld [vmem:[#allocation3 + $0x800] sm:$0xff]
    %v411 = vld [vmem:[#allocation3 + $0x808] sm:$0xff]
    %v412 = vld [vmem:[#allocation3 + $0x810] sm:$0xff]
    %v413 = vld [vmem:[#allocation3 + $0x818] sm:$0xff]
    %v414 = vld [vmem:[#allocation3 + $0x820] sm:$0xff]
    %v415 = vld [vmem:[#allocation3 + $0x828] sm:$0xff]
    %v416 = vld [vmem:[#allocation3 + $0x830] sm:$0xff]
    %v417 = vld [vmem:[#allocation3 + $0x838] sm:$0xff]
    %v418 = vld [vmem:[#allocation3 + $0x840] sm:$0xff]
    %v419 = vld [vmem:[#allocation3 + $0x848] sm:$0xff]
    %v420 = vld [vmem:[#allocation3 + $0x850] sm:$0xff]
    %v421 = vld [vmem:[#allocation3 + $0x858] sm:$0xff]
    %v422 = vld [vmem:[#allocation3 + $0x860] sm:$0xff]
    %v423 = vld [vmem:[#allocation3 + $0x868] sm:$0xff]
    %v424 = vld [vmem:[#allocation3 + $0x870] sm:$0xff]
    %v425 = vld [vmem:[#allocation3 + $0x878] sm:$0xff]
    %v426 = vld [vmem:[#allocation3 + $0x880] sm:$0xff]
    %v427 = vld [vmem:[#allocation3 + $0x888] sm:$0xff]
    %v428 = vld [vmem:[#allocation3 + $0x890] sm:$0xff]
    %v429 = vld [vmem:[#allocation3 + $0x898] sm:$0xff]
    %v430 = vld [vmem:[#allocation3 + $0x8a0] sm:$0xff]
    %v431 = vld [vmem:[#allocation3 + $0x8a8] sm:$0xff]
    %v432 = vld [vmem:[#allocation3 + $0x8b0] sm:$0xff]
    %v433 = vld [vmem:[#allocation3 + $0x8b8] sm:$0xff]
    %v434 = vld [vmem:[#allocation3 + $0x8c0] sm:$0xff]
    %v435 = vld [vmem:[#allocation3 + $0x8c8] sm:$0xff]
    %v436 = vld [vmem:[#allocation3 + $0x8d0] sm:$0xff]
    %v437 = vld [vmem:[#allocation3 + $0x8d8] sm:$0xff]
    %v438 = vld [vmem:[#allocation3 + $0x8e0] sm:$0xff]
    %v439 = vld [vmem:[#allocation3 + $0x8e8] sm:$0xff]
    %v440 = vld [vmem:[#allocation3 + $0x8f0] sm:$0xff]
    %v441 = vld [vmem:[#allocation3 + $0x8f8] sm:$0xff]
    %v442 = vld [vmem:[#allocation3 + $0x900] sm:$0xff]
    %v443 = vld [vmem:[#allocation3 + $0x908] sm:$0xff]
    %v444 = vld [vmem:[#allocation3 + $0x910] sm:$0xff]
    %v445 = vld [vmem:[#allocation3 + $0x918] sm:$0xff]
    %v446 = vld [vmem:[#allocation3 + $0x920] sm:$0xff]
    %v447 = vld [vmem:[#allocation3 + $0x928] sm:$0xff]
    %v448 = vld [vmem:[#allocation3 + $0x930] sm:$0xff]
    %v449 = vld [vmem:[#allocation3 + $0x938] sm:$0xff]
    %v450 = vld [vmem:[#allocation3 + $0x940] sm:$0xff]
    %v451 = vld [vmem:[#allocation3 + $0x948] sm:$0xff]
    %v452 = vld [vmem:[#allocation3 + $0x950] sm:$0xff]
    %v453 = vld [vmem:[#allocation3 + $0x958] sm:$0xff]
    %v454 = vld [vmem:[#allocation3 + $0x960] sm:$0xff]
    %v455 = vld [vmem:[#allocation3 + $0x968] sm:$0xff]
    %v456 = vld [vmem:[#allocation3 + $0x970] sm:$0xff]
    %v457 = vld [vmem:[#allocation3 + $0x978] sm:$0xff]
    %v458 = vld [vmem:[#allocation3 + $0x980] sm:$0xff]
    %v459 = vld [vmem:[#allocation3 + $0x988] sm:$0xff]
    %v460 = vld [vmem:[#allocation3 + $0x990] sm:$0xff]
    %v461 = vld [vmem:[#allocation3 + $0x998] sm:$0xff]
    %v462 = vld [vmem:[#allocation3 + $0x9a0] sm:$0xff]
    %v463 = vld [vmem:[#allocation3 + $0x9a8] sm:$0xff]
    %v464 = vld [vmem:[#allocation3 + $0x9b0] sm:$0xff]
    %v465 = vld [vmem:[#allocation3 + $0x9b8] sm:$0xff]
    %v466 = vld [vmem:[#allocation3 + $0x9c0] sm:$0xff]
    %v467 = vld [vmem:[#allocation3 + $0x9c8] sm:$0xff]
    %v468 = vld [vmem:[#allocation3 + $0x9d0] sm:$0xff]
    %v469 = vld [vmem:[#allocation3 + $0x9d8] sm:$0xff]
    %v470 = vld [vmem:[#allocation3 + $0x9e0] sm:$0xff]
    %v471 = vld [vmem:[#allocation3 + $0x9e8] sm:$0xff]
    %v472 = vld [vmem:[#allocation3 + $0x9f0] sm:$0xff]
    %v473 = vld [vmem:[#allocation3 + $0x9f8] sm:$0xff]
    %v474 = vld [vmem:[#allocation3 + $0xa00] sm:$0xff]
    %v475 = vld [vmem:[#allocation3 + $0xa08] sm:$0xff]
    %v476 = vld [vmem:[#allocation3 + $0xa10] sm:$0xff]
    %v477 = vld [vmem:[#allocation3 + $0xa18] sm:$0xff]
    %v478 = vld [vmem:[#allocation3 + $0xa20] sm:$0xff]
    %v479 = vld [vmem:[#allocation3 + $0xa28] sm:$0xff]
    %v480 = vld [vmem:[#allocation3 + $0xa30] sm:$0xff]
    %v481 = vld [vmem:[#allocation3 + $0xa38] sm:$0xff]
    %v482 = vld [vmem:[#allocation3 + $0xa40] sm:$0xff]
    %v483 = vld [vmem:[#allocation3 + $0xa48] sm:$0xff]
    %v484 = vld [vmem:[#allocation3 + $0xa50] sm:$0xff]
    %v485 = vld [vmem:[#allocation3 + $0xa58] sm:$0xff]
    %v486 = vld [vmem:[#allocation3 + $0xa60] sm:$0xff]
    %v487 = vld [vmem:[#allocation3 + $0xa68] sm:$0xff]
    %v488 = vld [vmem:[#allocation3 + $0xa70] sm:$0xff]
    %v489 = vld [vmem:[#allocation3 + $0xa78] sm:$0xff]
    %v490 = vld [vmem:[#allocation3 + $0xa80] sm:$0xff]
    %v491 = vld [vmem:[#allocation3 + $0xa88] sm:$0xff]
    %v492 = vld [vmem:[#allocation3 + $0xa90] sm:$0xff]
    %v493 = vld [vmem:[#allocation3 + $0xa98] sm:$0xff]
    %v494 = vld [vmem:[#allocation3 + $0xaa0] sm:$0xff]
    %v495 = vld [vmem:[#allocation3 + $0xaa8] sm:$0xff]
    %v496 = vld [vmem:[#allocation3 + $0xab0] sm:$0xff]
    %v497 = vld [vmem:[#allocation3 + $0xab8] sm:$0xff]
    %v498 = vld [vmem:[#allocation3 + $0xac0] sm:$0xff]
    %v499 = vld [vmem:[#allocation3 + $0xac8] sm:$0xff]
    %v500 = vld [vmem:[#allocation3 + $0xad0] sm:$0xff]
    %v501 = vld [vmem:[#allocation3 + $0xad8] sm:$0xff]
    %v502 = vld [vmem:[#allocation3 + $0xae0] sm:$0xff]
    %v503 = vld [vmem:[#allocation3 + $0xae8] sm:$0xff]
    %v504 = vld [vmem:[#allocation3 + $0xaf0] sm:$0xff]
    %v505 = vld [vmem:[#allocation3 + $0xaf8] sm:$0xff]
    %v506 = vld [vmem:[#allocation3 + $0xb00] sm:$0xff]
    %v507 = vld [vmem:[#allocation3 + $0xb08] sm:$0xff]
    %v508 = vld [vmem:[#allocation3 + $0xb10] sm:$0xff]
    %v509 = vld [vmem:[#allocation3 + $0xb18] sm:$0xff]
    %v510 = vld [vmem:[#allocation3 + $0xb20] sm:$0xff]
    %v511 = vld [vmem:[#allocation3 + $0xb28] sm:$0xff]
    %v512 = vld [vmem:[#allocation3 + $0xb30] sm:$0xff]
    %v513 = vld [vmem:[#allocation3 + $0xb38] sm:$0xff]
    %v514 = vld [vmem:[#allocation3 + $0xb40] sm:$0xff]
    %v515 = vld [vmem:[#allocation3 + $0xb48] sm:$0xff]
    %v516 = vld [vmem:[#allocation3 + $0xb50] sm:$0xff]
    %v517 = vld [vmem:[#allocation3 + $0xb58] sm:$0xff]
    %v518 = vld [vmem:[#allocation3 + $0xb60] sm:$0xff]
    %v519 = vld [vmem:[#allocation3 + $0xb68] sm:$0xff]
    %v520 = vld [vmem:[#allocation3 + $0xb70] sm:$0xff]
    %v521 = vld [vmem:[#allocation3 + $0xb78] sm:$0xff]
    %v522 = vld [vmem:[#allocation3 + $0xb80] sm:$0xff]
    %v523 = vld [vmem:[#allocation3 + $0xb88] sm:$0xff]
    %v524 = vld [vmem:[#allocation3 + $0xb90] sm:$0xff]
    %v525 = vld [vmem:[#allocation3 + $0xb98] sm:$0xff]
    %v526 = vld [vmem:[#allocation3 + $0xba0] sm:$0xff]
    %v527 = vld [vmem:[#allocation3 + $0xba8] sm:$0xff]
    %v528 = vld [vmem:[#allocation3 + $0xbb0] sm:$0xff]
    %v529 = vld [vmem:[#allocation3 + $0xbb8] sm:$0xff]
    %v530 = vld [vmem:[#allocation3 + $0xbc0] sm:$0xff]
    %v531 = vld [vmem:[#allocation3 + $0xbc8] sm:$0xff]
    %v532 = vld [vmem:[#allocation3 + $0xbd0] sm:$0xff]
    %v533 = vld [vmem:[#allocation3 + $0xbd8] sm:$0xff]
    %v534 = vld [vmem:[#allocation3 + $0xbe0] sm:$0xff]
    %v535 = vld [vmem:[#allocation3 + $0xbe8] sm:$0xff]
    %v536 = vld [vmem:[#allocation3 + $0xbf0] sm:$0xff]
    %v537 = vld [vmem:[#allocation3 + $0xbf8] sm:$0xff]
    %v538 = vld [vmem:[#allocation3 + $0xc00] sm:$0xff]
    %v539 = vld [vmem:[#allocation3 + $0xc08] sm:$0xff]
    %v540 = vld [vmem:[#allocation3 + $0xc10] sm:$0xff]
    %v541 = vld [vmem:[#allocation3 + $0xc18] sm:$0xff]
    %v542 = vld [vmem:[#allocation3 + $0xc20] sm:$0xff]
    %v543 = vld [vmem:[#allocation3 + $0xc28] sm:$0xff]
    %v544 = vld [vmem:[#allocation3 + $0xc30] sm:$0xff]
    %v545 = vld [vmem:[#allocation3 + $0xc38] sm:$0xff]
    %v546 = vld [vmem:[%s1] sm:$0xff]
    %v547 = vld [vmem:[#allocation5] sm:$0xff]
    %v548 = vld [vmem:[#allocation5 + $0x8] sm:$0xff]
    %v551 = vcombine.high %v547, %v547
    %v553 = vunpack.c.l.s4 1983009808
    %v554 = vunpack.c.0.s8 %v553
    %v555 = vlaneseq
    %v556 = vshrl.u32 %v555, 7
    %v557 = vsub.s32 %v554, %v556
    %v558 = vrot.slane %v547, %v557
    %v560 = vunpack.c.l.s4 1983009808
    %v561 = vunpack.c.0.s8 %v560
    %v562 = vlaneseq
    %v563 = vshrl.u32 %v562, 7
    %v564 = vsub.s32 %v561, %v563
    %v565 = vrot.slane %v551, %v564
    %v566 = vcombine.high %v558, %v558
    %v567 = vcombine.high %v565, %v565
    %v568 = vcombine.high %v548, %v548
    %v570 = vunpack.c.l.s4 1983009808
    %v571 = vunpack.c.0.s8 %v570
    %v572 = vlaneseq
    %v573 = vshrl.u32 %v572, 7
    %v574 = vsub.s32 %v571, %v573
    %v575 = vrot.slane %v548, %v574
    %v577 = vunpack.c.l.s4 1983009808
    %v578 = vunpack.c.0.s8 %v577
    %v579 = vlaneseq
    %v580 = vshrl.u32 %v579, 7
    %v581 = vsub.s32 %v578, %v580
    %v582 = vrot.slane %v568, %v581
    %v583 = vcombine.high %v575, %v575
    %v584 = vcombine.high %v582, %v582
    %vm585 = vcmask 15360
    %v587 = vsel %vm585, %v546, 0
    %vm589 = vcmask 1041408
    %v590 = vsel %vm589, %v558, 0
    %v592 = vsel %vm589, %v566, 0
    %v594 = vsel %vm589, %v565, 0
    %v596 = vsel %vm589, %v567, 0
    %v598 = vsel %vm589, %v575, 0
    %v600 = vsel %vm589, %v583, 0
    %v602 = vsel %vm589, %v582, 0
    %v604 = vsel %vm589, %v584, 0
    %606 = vmatprep.subr.mxu0 0.0
    %607 = vmatpush1.msra.mxu0 0.0
    %608 = vmatprep.subr.mxu0 0.0
    %609 = vmatpush1.msra.mxu0 0.0
    %610 = vmatprep.subr.mxu0 0.0
    %611 = vmatpush1.msra.mxu0 0.0
    %612 = vmatprep.subr.mxu0 0.0
    %613 = vmatpush1.msra.mxu0 0.0
    %614 = vmatprep.subr.mxu0 0.0
    %615 = vmatpush1.msra.mxu0 0.0
    %616 = vmatprep.subr.mxu0 0.0
    %617 = vmatpush1.msra.mxu0 0.0
    %618 = vmatprep.subr.mxu0 0.0
    %619 = vmatpush1.msra.mxu0 0.0
    %620 = vmatprep.subr.mxu0 0.0
    %621 = vmatpush1.msra.mxu0 0.0
    %622 = vmatprep.subr.mxu0 0.0
    %623 = vmatpush1.msra.mxu0 0.0
    %624 = vmatprep.subr.mxu0 0.0
    %625 = vmatpush1.msra.mxu0 0.0
    %626 = vmatprep.subr.mxu0 0.0
    %627 = vmatpush1.msra.mxu0 0.0
    %628 = vmatprep.subr.mxu0 0.0
    %629 = vmatpush1.msra.mxu0 0.0
    %630 = vmatprep.subr.mxu0 0.0
    %631 = vmatpush1.msra.mxu0 0.0
    %632 = vmatprep.subr.mxu0 0.0
    %633 = vmatpush1.msra.mxu0 0.0
    %634 = vmatprep.subr.mxu0 0.0
    %635 = vmatpush1.msra.mxu0 0.0
    %636 = vmatprep.subr.mxu0 %v592
    %637 = vmatpush1.msra.mxu0 %v590
    %638 = vmatprep.subr.mxu0 0.0
    %639 = vmatpush2.msra.mxu0 0.0
    %640 = vmatprep.subr.mxu0 0.0
    %641 = vmatpush2.msra.mxu0 0.0
    %642 = vmatprep.subr.mxu0 0.0
    %643 = vmatpush2.msra.mxu0 0.0
    %644 = vmatprep.subr.mxu0 0.0
    %645 = vmatpush2.msra.mxu0 0.0
    %646 = vmatprep.subr.mxu0 0.0
    %647 = vmatpush2.msra.mxu0 0.0
    %648 = vmatprep.subr.mxu0 0.0
    %649 = vmatpush2.msra.mxu0 0.0
    %650 = vmatprep.subr.mxu0 0.0
    %651 = vmatpush2.msra.mxu0 0.0
    %652 = vmatprep.subr.mxu0 0.0
    %653 = vmatpush2.msra.mxu0 0.0
    %654 = vmatprep.subr.mxu0 0.0
    %655 = vmatpush2.msra.mxu0 0.0
    %656 = vmatprep.subr.mxu0 0.0
    %657 = vmatpush2.msra.mxu0 0.0
    %658 = vmatprep.subr.mxu0 0.0
    %659 = vmatpush2.msra.mxu0 0.0
    %660 = vmatprep.subr.mxu0 0.0
    %661 = vmatpush2.msra.mxu0 0.0
    %662 = vmatprep.subr.mxu0 0.0
    %663 = vmatpush2.msra.mxu0 0.0
    %664 = vmatprep.subr.mxu0 0.0
    %665 = vmatpush2.msra.mxu0 0.0
    %666 = vmatprep.subr.mxu0 0.0
    %667 = vmatpush2.msra.mxu0 0.0
    %668 = vmatprep.subr.mxu0 0.0
    %669 = vmatpush2.msra.mxu0 0.0
    %670 = vmatprep.mubr.f32.mxu0 0.0
    %671 = vmatmul.mubr.f32.gmra.mxu0 %v587
    %v672 = vpop.f32.mrf.mxu0
    %v673 = vadd.f32 0.0, %v672
    %v674 = vpop.f32.mrf.mxu0
    %v675 = vadd.f32 0.0, %v674
    %676 = vdwg.mxu0
    %677 = vmatprep.subr.mxu0 0.0
    %678 = vmatpush1.msra.mxu0 0.0
    %679 = vmatprep.subr.mxu0 0.0
    %680 = vmatpush1.msra.mxu0 0.0
    %681 = vmatprep.subr.mxu0 0.0
    %682 = vmatpush1.msra.mxu0 0.0
    %683 = vmatprep.subr.mxu0 0.0
    %684 = vmatpush1.msra.mxu0 0.0
    %685 = vmatprep.subr.mxu0 0.0
    %686 = vmatpush1.msra.mxu0 0.0
    %687 = vmatprep.subr.mxu0 0.0
    %688 = vmatpush1.msra.mxu0 0.0
    %689 = vmatprep.subr.mxu0 0.0
    %690 = vmatpush1.msra.mxu0 0.0
    %691 = vmatprep.subr.mxu0 0.0
    %692 = vmatpush1.msra.mxu0 0.0
    %693 = vmatprep.subr.mxu0 0.0
    %694 = vmatpush1.msra.mxu0 0.0
    %695 = vmatprep.subr.mxu0 0.0
    %696 = vmatpush1.msra.mxu0 0.0
    %697 = vmatprep.subr.mxu0 0.0
    %698 = vmatpush1.msra.mxu0 0.0
    %699 = vmatprep.subr.mxu0 0.0
    %700 = vmatpush1.msra.mxu0 0.0
    %701 = vmatprep.subr.mxu0 0.0
    %702 = vmatpush1.msra.mxu0 0.0
    %703 = vmatprep.subr.mxu0 0.0
    %704 = vmatpush1.msra.mxu0 0.0
    %705 = vmatprep.subr.mxu0 0.0
    %706 = vmatpush1.msra.mxu0 0.0
    %707 = vmatprep.subr.mxu0 %v596
    %708 = vmatpush1.msra.mxu0 %v594
    %709 = vmatprep.subr.mxu0 0.0
    %710 = vmatpush2.msra.mxu0 0.0
    %711 = vmatprep.subr.mxu0 0.0
    %712 = vmatpush2.msra.mxu0 0.0
    %713 = vmatprep.subr.mxu0 0.0
    %714 = vmatpush2.msra.mxu0 0.0
    %715 = vmatprep.subr.mxu0 0.0
    %716 = vmatpush2.msra.mxu0 0.0
    %717 = vmatprep.subr.mxu0 0.0
    %718 = vmatpush2.msra.mxu0 0.0
    %719 = vmatprep.subr.mxu0 0.0
    %720 = vmatpush2.msra.mxu0 0.0
    %721 = vmatprep.subr.mxu0 0.0
    %722 = vmatpush2.msra.mxu0 0.0
    %723 = vmatprep.subr.mxu0 0.0
    %724 = vmatpush2.msra.mxu0 0.0
    %725 = vmatprep.subr.mxu0 0.0
    %726 = vmatpush2.msra.mxu0 0.0
    %727 = vmatprep.subr.mxu0 0.0
    %728 = vmatpush2.msra.mxu0 0.0
    %729 = vmatprep.subr.mxu0 0.0
    %730 = vmatpush2.msra.mxu0 0.0
    %731 = vmatprep.subr.mxu0 0.0
    %732 = vmatpush2.msra.mxu0 0.0
    %733 = vmatprep.subr.mxu0 0.0
    %734 = vmatpush2.msra.mxu0 0.0
    %735 = vmatprep.subr.mxu0 0.0
    %736 = vmatpush2.msra.mxu0 0.0
    %737 = vmatprep.subr.mxu0 0.0
    %738 = vmatpush2.msra.mxu0 0.0
    %739 = vmatprep.subr.mxu0 0.0
    %740 = vmatpush2.msra.mxu0 0.0
    %741 = vmatprep.mubr.f32.mxu0 0.0
    %742 = vmatmul.mubr.f32.gmra.mxu0 %v587
    %v743 = vpop.f32.mrf.mxu0
    %v744 = vadd.f32 0.0, %v743
    %v745 = vpop.f32.mrf.mxu0
    %v746 = vadd.f32 0.0, %v745
    %747 = vdwg.mxu0
    %748 = vmatprep.subr.mxu0 0.0
    %749 = vmatpush1.msra.mxu0 0.0
    %750 = vmatprep.subr.mxu0 0.0
    %751 = vmatpush1.msra.mxu0 0.0
    %752 = vmatprep.subr.mxu0 0.0
    %753 = vmatpush1.msra.mxu0 0.0
    %754 = vmatprep.subr.mxu0 0.0
    %755 = vmatpush1.msra.mxu0 0.0
    %756 = vmatprep.subr.mxu0 0.0
    %757 = vmatpush1.msra.mxu0 0.0
    %758 = vmatprep.subr.mxu0 0.0
    %759 = vmatpush1.msra.mxu0 0.0
    %760 = vmatprep.subr.mxu0 0.0
    %761 = vmatpush1.msra.mxu0 0.0
    %762 = vmatprep.subr.mxu0 0.0
    %763 = vmatpush1.msra.mxu0 0.0
    %764 = vmatprep.subr.mxu0 0.0
    %765 = vmatpush1.msra.mxu0 0.0
    %766 = vmatprep.subr.mxu0 0.0
    %767 = vmatpush1.msra.mxu0 0.0
    %768 = vmatprep.subr.mxu0 0.0
    %769 = vmatpush1.msra.mxu0 0.0
    %770 = vmatprep.subr.mxu0 0.0
    %771 = vmatpush1.msra.mxu0 0.0
    %772 = vmatprep.subr.mxu0 0.0
    %773 = vmatpush1.msra.mxu0 0.0
    %774 = vmatprep.subr.mxu0 0.0
    %775 = vmatpush1.msra.mxu0 0.0
    %776 = vmatprep.subr.mxu0 0.0
    %777 = vmatpush1.msra.mxu0 0.0
    %778 = vmatprep.subr.mxu0 %v600
    %779 = vmatpush1.msra.mxu0 %v598
    %780 = vmatprep.subr.mxu0 0.0
    %781 = vmatpush2.msra.mxu0 0.0
    %782 = vmatprep.subr.mxu0 0.0
    %783 = vmatpush2.msra.mxu0 0.0
    %784 = vmatprep.subr.mxu0 0.0
    %785 = vmatpush2.msra.mxu0 0.0
    %786 = vmatprep.subr.mxu0 0.0
    %787 = vmatpush2.msra.mxu0 0.0
    %788 = vmatprep.subr.mxu0 0.0
    %789 = vmatpush2.msra.mxu0 0.0
    %790 = vmatprep.subr.mxu0 0.0
    %791 = vmatpush2.msra.mxu0 0.0
    %792 = vmatprep.subr.mxu0 0.0
    %793 = vmatpush2.msra.mxu0 0.0
    %794 = vmatprep.subr.mxu0 0.0
    %795 = vmatpush2.msra.mxu0 0.0
    %796 = vmatprep.subr.mxu0 0.0
    %797 = vmatpush2.msra.mxu0 0.0
    %798 = vmatprep.subr.mxu0 0.0
    %799 = vmatpush2.msra.mxu0 0.0
    %800 = vmatprep.subr.mxu0 0.0
    %801 = vmatpush2.msra.mxu0 0.0
    %802 = vmatprep.subr.mxu0 0.0
    %803 = vmatpush2.msra.mxu0 0.0
    %804 = vmatprep.subr.mxu0 0.0
    %805 = vmatpush2.msra.mxu0 0.0
    %806 = vmatprep.subr.mxu0 0.0
    %807 = vmatpush2.msra.mxu0 0.0
    %808 = vmatprep.subr.mxu0 0.0
    %809 = vmatpush2.msra.mxu0 0.0
    %810 = vmatprep.subr.mxu0 0.0
    %811 = vmatpush2.msra.mxu0 0.0
    %812 = vmatprep.mubr.f32.mxu0 0.0
    %813 = vmatmul.mubr.f32.gmra.mxu0 %v587
    %v814 = vpop.f32.mrf.mxu0
    %v815 = vadd.f32 0.0, %v814
    %v816 = vpop.f32.mrf.mxu0
    %v817 = vadd.f32 0.0, %v816
    %818 = vdwg.mxu0
    %819 = vmatprep.subr.mxu0 0.0
    %820 = vmatpush1.msra.mxu0 0.0
    %821 = vmatprep.subr.mxu0 0.0
    %822 = vmatpush1.msra.mxu0 0.0
    %823 = vmatprep.subr.mxu0 0.0
    %824 = vmatpush1.msra.mxu0 0.0
    %825 = vmatprep.subr.mxu0 0.0
    %826 = vmatpush1.msra.mxu0 0.0
    %827 = vmatprep.subr.mxu0 0.0
    %828 = vmatpush1.msra.mxu0 0.0
    %829 = vmatprep.subr.mxu0 0.0
    %830 = vmatpush1.msra.mxu0 0.0
    %831 = vmatprep.subr.mxu0 0.0
    %832 = vmatpush1.msra.mxu0 0.0
    %833 = vmatprep.subr.mxu0 0.0
    %834 = vmatpush1.msra.mxu0 0.0
    %835 = vmatprep.subr.mxu0 0.0
    %836 = vmatpush1.msra.mxu0 0.0
    %837 = vmatprep.subr.mxu0 0.0
    %838 = vmatpush1.msra.mxu0 0.0
    %839 = vmatprep.subr.mxu0 0.0
    %840 = vmatpush1.msra.mxu0 0.0
    %841 = vmatprep.subr.mxu0 0.0
    %842 = vmatpush1.msra.mxu0 0.0
    %843 = vmatprep.subr.mxu0 0.0
    %844 = vmatpush1.msra.mxu0 0.0
    %845 = vmatprep.subr.mxu0 0.0
    %846 = vmatpush1.msra.mxu0 0.0
    %847 = vmatprep.subr.mxu0 0.0
    %848 = vmatpush1.msra.mxu0 0.0
    %849 = vmatprep.subr.mxu0 %v604
    %850 = vmatpush1.msra.mxu0 %v602
    %851 = vmatprep.subr.mxu0 0.0
    %852 = vmatpush2.msra.mxu0 0.0
    %853 = vmatprep.subr.mxu0 0.0
    %854 = vmatpush2.msra.mxu0 0.0
    %855 = vmatprep.subr.mxu0 0.0
    %856 = vmatpush2.msra.mxu0 0.0
    %857 = vmatprep.subr.mxu0 0.0
    %858 = vmatpush2.msra.mxu0 0.0
    %859 = vmatprep.subr.mxu0 0.0
    %860 = vmatpush2.msra.mxu0 0.0
    %861 = vmatprep.subr.mxu0 0.0
    %862 = vmatpush2.msra.mxu0 0.0
    %863 = vmatprep.subr.mxu0 0.0
    %864 = vmatpush2.msra.mxu0 0.0
    %865 = vmatprep.subr.mxu0 0.0
    %866 = vmatpush2.msra.mxu0 0.0
    %867 = vmatprep.subr.mxu0 0.0
    %868 = vmatpush2.msra.mxu0 0.0
    %869 = vmatprep.subr.mxu0 0.0
    %870 = vmatpush2.msra.mxu0 0.0
    %871 = vmatprep.subr.mxu0 0.0
    %872 = vmatpush2.msra.mxu0 0.0
    %873 = vmatprep.subr.mxu0 0.0
    %874 = vmatpush2.msra.mxu0 0.0
    %875 = vmatprep.subr.mxu0 0.0
    %876 = vmatpush2.msra.mxu0 0.0
    %877 = vmatprep.subr.mxu0 0.0
    %878 = vmatpush2.msra.mxu0 0.0
    %879 = vmatprep.subr.mxu0 0.0
    %880 = vmatpush2.msra.mxu0 0.0
    %881 = vmatprep.subr.mxu0 0.0
    %882 = vmatpush2.msra.mxu0 0.0
    %883 = vmatprep.mubr.f32.mxu0 0.0
    %884 = vmatmul.mubr.f32.gmra.mxu0 %v587
    %v885 = vpop.f32.mrf.mxu0
    %v886 = vadd.f32 0.0, %v885
    %v887 = vpop.f32.mrf.mxu0
    %v888 = vadd.f32 0.0, %v887
    %889 = vdwg.mxu0
    %v1282 = vunpack.c.l.b16 %v154
    %v1283 = vunpack.c.h.b16 %v154
    %v1284 = vunpack.c.l.b16 %v155
    %v1285 = vunpack.c.h.b16 %v155
    %v1286 = vunpack.c.l.b16 %v156
    %v1287 = vunpack.c.h.b16 %v156
    %v1288 = vunpack.c.l.b16 %v157
    %v1289 = vunpack.c.h.b16 %v157
    %v1290 = vunpack.c.l.b16 %v158
    %v1291 = vunpack.c.h.b16 %v158
    %v1292 = vunpack.c.l.b16 %v159
    %v1293 = vunpack.c.h.b16 %v159
    %v1294 = vunpack.c.l.b16 %v160
    %v1295 = vunpack.c.h.b16 %v160
    %v1296 = vunpack.c.l.b16 %v161
    %v1297 = vunpack.c.h.b16 %v161
    %v1298 = vunpack.c.l.b16 %v162
    %v1299 = vunpack.c.h.b16 %v162
    %v1300 = vunpack.c.l.b16 %v163
    %v1301 = vunpack.c.h.b16 %v163
    %v1302 = vunpack.c.l.b16 %v164
    %v1303 = vunpack.c.h.b16 %v164
    %v1304 = vunpack.c.l.b16 %v165
    %v1305 = vunpack.c.h.b16 %v165
    %v1306 = vunpack.c.l.b16 %v166
    %v1307 = vunpack.c.h.b16 %v166
    %v1308 = vunpack.c.l.b16 %v167
    %v1309 = vunpack.c.h.b16 %v167
    %v1310 = vunpack.c.l.b16 %v168
    %v1311 = vunpack.c.h.b16 %v168
    %v1312 = vunpack.c.l.b16 %v169
    %v1313 = vunpack.c.h.b16 %v169
    %v1314 = vunpack.c.l.b16 %v170
    %v1315 = vunpack.c.h.b16 %v170
    %v1316 = vunpack.c.l.b16 %v171
    %v1317 = vunpack.c.h.b16 %v171
    %v1318 = vunpack.c.l.b16 %v172
    %v1319 = vunpack.c.h.b16 %v172
    %v1320 = vunpack.c.l.b16 %v173
    %v1321 = vunpack.c.h.b16 %v173
    %v1322 = vunpack.c.l.b16 %v174
    %v1323 = vunpack.c.h.b16 %v174
    %v1324 = vunpack.c.l.b16 %v175
    %v1325 = vunpack.c.h.b16 %v175
    %v1326 = vunpack.c.l.b16 %v176
    %v1327 = vunpack.c.h.b16 %v176
    %v1328 = vunpack.c.l.b16 %v177
    %v1329 = vunpack.c.h.b16 %v177
    %v1330 = vunpack.c.l.b16 %v178
    %v1331 = vunpack.c.h.b16 %v178
    %v1332 = vunpack.c.l.b16 %v179
    %v1333 = vunpack.c.h.b16 %v179
    %v1334 = vunpack.c.l.b16 %v180
    %v1335 = vunpack.c.h.b16 %v180
    %v1336 = vunpack.c.l.b16 %v181
    %v1337 = vunpack.c.h.b16 %v181
    %v1338 = vunpack.c.l.b16 %v182
    %v1339 = vunpack.c.h.b16 %v182
    %v1340 = vunpack.c.l.b16 %v183
    %v1341 = vunpack.c.h.b16 %v183
    %v1342 = vunpack.c.l.b16 %v184
    %v1343 = vunpack.c.h.b16 %v184
    %v1344 = vunpack.c.l.b16 %v185
    %v1345 = vunpack.c.h.b16 %v185
    %v1346 = vunpack.c.l.b16 %v186
    %v1347 = vunpack.c.h.b16 %v186
    %v1348 = vunpack.c.l.b16 %v187
    %v1349 = vunpack.c.h.b16 %v187
    %v1350 = vunpack.c.l.b16 %v188
    %v1351 = vunpack.c.h.b16 %v188
    %v1352 = vunpack.c.l.b16 %v189
    %v1353 = vunpack.c.h.b16 %v189
    %v1354 = vunpack.c.l.b16 %v190
    %v1355 = vunpack.c.h.b16 %v190
    %v1356 = vunpack.c.l.b16 %v191
    %v1357 = vunpack.c.h.b16 %v191
    %v1358 = vunpack.c.l.b16 %v192
    %v1359 = vunpack.c.h.b16 %v192
    %v1360 = vunpack.c.l.b16 %v193
    %v1361 = vunpack.c.h.b16 %v193
    %v1362 = vunpack.c.l.b16 %v194
    %v1363 = vunpack.c.h.b16 %v194
    %v1364 = vunpack.c.l.b16 %v195
    %v1365 = vunpack.c.h.b16 %v195
    %v1366 = vunpack.c.l.b16 %v196
    %v1367 = vunpack.c.h.b16 %v196
    %v1368 = vunpack.c.l.b16 %v197
    %v1369 = vunpack.c.h.b16 %v197
    %v1370 = vunpack.c.l.b16 %v198
    %v1371 = vunpack.c.h.b16 %v198
    %v1372 = vunpack.c.l.b16 %v199
    %v1373 = vunpack.c.h.b16 %v199
    %v1374 = vunpack.c.l.b16 %v200
    %v1375 = vunpack.c.h.b16 %v200
    %v1376 = vunpack.c.l.b16 %v201
    %v1377 = vunpack.c.h.b16 %v201
    %v1378 = vunpack.c.l.b16 %v202
    %v1379 = vunpack.c.h.b16 %v202
    %v1380 = vunpack.c.l.b16 %v203
    %v1381 = vunpack.c.h.b16 %v203
    %v1382 = vunpack.c.l.b16 %v204
    %v1383 = vunpack.c.h.b16 %v204
    %v1384 = vunpack.c.l.b16 %v205
    %v1385 = vunpack.c.h.b16 %v205
    %v1386 = vunpack.c.l.b16 %v206
    %v1387 = vunpack.c.h.b16 %v206
    %v1388 = vunpack.c.l.b16 %v207
    %v1389 = vunpack.c.h.b16 %v207
    %v1390 = vunpack.c.l.b16 %v208
    %v1391 = vunpack.c.h.b16 %v208
    %v1392 = vunpack.c.l.b16 %v209
    %v1393 = vunpack.c.h.b16 %v209
    %v1394 = vunpack.c.l.b16 %v210
    %v1395 = vunpack.c.h.b16 %v210
    %v1396 = vunpack.c.l.b16 %v211
    %v1397 = vunpack.c.h.b16 %v211
    %v1398 = vunpack.c.l.b16 %v212
    %v1399 = vunpack.c.h.b16 %v212
    %v1400 = vunpack.c.l.b16 %v213
    %v1401 = vunpack.c.h.b16 %v213
    %v1402 = vunpack.c.l.b16 %v214
    %v1403 = vunpack.c.h.b16 %v214
    %v1404 = vunpack.c.l.b16 %v215
    %v1405 = vunpack.c.h.b16 %v215
    %v1406 = vunpack.c.l.b16 %v216
    %v1407 = vunpack.c.h.b16 %v216
    %v1408 = vunpack.c.l.b16 %v217
    %v1409 = vunpack.c.h.b16 %v217
    %v1410 = vunpack.c.l.b16 %v218
    %v1411 = vunpack.c.h.b16 %v218
    %v1412 = vunpack.c.l.b16 %v219
    %v1413 = vunpack.c.h.b16 %v219
    %v1414 = vunpack.c.l.b16 %v220
    %v1415 = vunpack.c.h.b16 %v220
    %v1416 = vunpack.c.l.b16 %v221
    %v1417 = vunpack.c.h.b16 %v221
    %v1418 = vunpack.c.l.b16 %v222
    %v1419 = vunpack.c.h.b16 %v222
    %v1420 = vunpack.c.l.b16 %v223
    %v1421 = vunpack.c.h.b16 %v223
    %v1422 = vunpack.c.l.b16 %v224
    %v1423 = vunpack.c.h.b16 %v224
    %v1424 = vunpack.c.l.b16 %v225
    %v1425 = vunpack.c.h.b16 %v225
    %v1426 = vunpack.c.l.b16 %v226
    %v1427 = vunpack.c.h.b16 %v226
    %v1428 = vunpack.c.l.b16 %v227
    %v1429 = vunpack.c.h.b16 %v227
    %v1430 = vunpack.c.l.b16 %v228
    %v1431 = vunpack.c.h.b16 %v228
    %v1432 = vunpack.c.l.b16 %v229
    %v1433 = vunpack.c.h.b16 %v229
    %v1434 = vunpack.c.l.b16 %v230
    %v1435 = vunpack.c.h.b16 %v230
    %v1436 = vunpack.c.l.b16 %v231
    %v1437 = vunpack.c.h.b16 %v231
    %v1438 = vunpack.c.l.b16 %v232
    %v1439 = vunpack.c.h.b16 %v232
    %v1440 = vunpack.c.l.b16 %v233
    %v1441 = vunpack.c.h.b16 %v233
    %v1442 = vunpack.c.l.b16 %v234
    %v1443 = vunpack.c.h.b16 %v234
    %v1444 = vunpack.c.l.b16 %v235
    %v1445 = vunpack.c.h.b16 %v235
    %v1446 = vunpack.c.l.b16 %v236
    %v1447 = vunpack.c.h.b16 %v236
    %v1448 = vunpack.c.l.b16 %v237
    %v1449 = vunpack.c.h.b16 %v237
    %v1450 = vunpack.c.l.b16 %v238
    %v1451 = vunpack.c.h.b16 %v238
    %v1452 = vunpack.c.l.b16 %v239
    %v1453 = vunpack.c.h.b16 %v239
    %v1454 = vunpack.c.l.b16 %v240
    %v1455 = vunpack.c.h.b16 %v240
    %v1456 = vunpack.c.l.b16 %v241
    %v1457 = vunpack.c.h.b16 %v241
    %v1458 = vunpack.c.l.b16 %v242
    %v1459 = vunpack.c.h.b16 %v242
    %v1460 = vunpack.c.l.b16 %v243
    %v1461 = vunpack.c.h.b16 %v243
    %v1462 = vunpack.c.l.b16 %v244
    %v1463 = vunpack.c.h.b16 %v244
    %v1464 = vunpack.c.l.b16 %v245
    %v1465 = vunpack.c.h.b16 %v245
    %v1466 = vunpack.c.l.b16 %v246
    %v1467 = vunpack.c.h.b16 %v246
    %v1468 = vunpack.c.l.b16 %v247
    %v1469 = vunpack.c.h.b16 %v247
    %v1470 = vunpack.c.l.b16 %v248
    %v1471 = vunpack.c.h.b16 %v248
    %v1472 = vunpack.c.l.b16 %v249
    %v1473 = vunpack.c.h.b16 %v249
    %v1474 = vunpack.c.l.b16 %v250
    %v1475 = vunpack.c.h.b16 %v250
    %v1476 = vunpack.c.l.b16 %v251
    %v1477 = vunpack.c.h.b16 %v251
    %v1478 = vunpack.c.l.b16 %v252
    %v1479 = vunpack.c.h.b16 %v252
    %v1480 = vunpack.c.l.b16 %v253
    %v1481 = vunpack.c.h.b16 %v253
    %v1482 = vunpack.c.l.b16 %v254
    %v1483 = vunpack.c.h.b16 %v254
    %v1484 = vunpack.c.l.b16 %v255
    %v1485 = vunpack.c.h.b16 %v255
    %v1486 = vunpack.c.l.b16 %v256
    %v1487 = vunpack.c.h.b16 %v256
    %v1488 = vunpack.c.l.b16 %v257
    %v1489 = vunpack.c.h.b16 %v257
    %v1490 = vunpack.c.l.b16 %v258
    %v1491 = vunpack.c.h.b16 %v258
    %v1492 = vunpack.c.l.b16 %v259
    %v1493 = vunpack.c.h.b16 %v259
    %v1494 = vunpack.c.l.b16 %v260
    %v1495 = vunpack.c.h.b16 %v260
    %v1496 = vunpack.c.l.b16 %v261
    %v1497 = vunpack.c.h.b16 %v261
    %v1498 = vunpack.c.l.b16 %v262
    %v1499 = vunpack.c.h.b16 %v262
    %v1500 = vunpack.c.l.b16 %v263
    %v1501 = vunpack.c.h.b16 %v263
    %v1502 = vunpack.c.l.b16 %v264
    %v1503 = vunpack.c.h.b16 %v264
    %v1504 = vunpack.c.l.b16 %v265
    %v1505 = vunpack.c.h.b16 %v265
    %v1506 = vunpack.c.l.b16 %v266
    %v1507 = vunpack.c.h.b16 %v266
    %v1508 = vunpack.c.l.b16 %v267
    %v1509 = vunpack.c.h.b16 %v267
    %v1510 = vunpack.c.l.b16 %v268
    %v1511 = vunpack.c.h.b16 %v268
    %v1512 = vunpack.c.l.b16 %v269
    %v1513 = vunpack.c.h.b16 %v269
    %v1514 = vunpack.c.l.b16 %v270
    %v1515 = vunpack.c.h.b16 %v270
    %v1516 = vunpack.c.l.b16 %v271
    %v1517 = vunpack.c.h.b16 %v271
    %v1518 = vunpack.c.l.b16 %v272
    %v1519 = vunpack.c.h.b16 %v272
    %v1520 = vunpack.c.l.b16 %v273
    %v1521 = vunpack.c.h.b16 %v273
    %v1522 = vunpack.c.l.b16 %v274
    %v1523 = vunpack.c.h.b16 %v274
    %v1524 = vunpack.c.l.b16 %v275
    %v1525 = vunpack.c.h.b16 %v275
    %v1526 = vunpack.c.l.b16 %v276
    %v1527 = vunpack.c.h.b16 %v276
    %v1528 = vunpack.c.l.b16 %v277
    %v1529 = vunpack.c.h.b16 %v277
    %v1530 = vunpack.c.l.b16 %v278
    %v1531 = vunpack.c.h.b16 %v278
    %v1532 = vunpack.c.l.b16 %v279
    %v1533 = vunpack.c.h.b16 %v279
    %v1534 = vunpack.c.l.b16 %v280
    %v1535 = vunpack.c.h.b16 %v280
    %v1536 = vunpack.c.l.b16 %v281
    %v1537 = vunpack.c.h.b16 %v281
    %v1538 = vunpack.c.l.b16 %v282
    %v1539 = vunpack.c.h.b16 %v282
    %v1540 = vunpack.c.l.b16 %v283
    %v1541 = vunpack.c.h.b16 %v283
    %v1542 = vunpack.c.l.b16 %v284
    %v1543 = vunpack.c.h.b16 %v284
    %v1544 = vunpack.c.l.b16 %v285
    %v1545 = vunpack.c.h.b16 %v285
    %v1546 = vunpack.c.l.b16 %v286
    %v1547 = vunpack.c.h.b16 %v286
    %v1548 = vunpack.c.l.b16 %v287
    %v1549 = vunpack.c.h.b16 %v287
    %v1550 = vunpack.c.l.b16 %v288
    %v1551 = vunpack.c.h.b16 %v288
    %v1552 = vunpack.c.l.b16 %v289
    %v1553 = vunpack.c.h.b16 %v289
    %v1554 = vunpack.c.l.b16 %v290
    %v1555 = vunpack.c.h.b16 %v290
    %v1556 = vunpack.c.l.b16 %v291
    %v1557 = vunpack.c.h.b16 %v291
    %v1558 = vunpack.c.l.b16 %v292
    %v1559 = vunpack.c.h.b16 %v292
    %v1560 = vunpack.c.l.b16 %v293
    %v1561 = vunpack.c.h.b16 %v293
    %v1562 = vunpack.c.l.b16 %v294
    %v1563 = vunpack.c.h.b16 %v294
    %v1564 = vunpack.c.l.b16 %v295
    %v1565 = vunpack.c.h.b16 %v295
    %v1566 = vunpack.c.l.b16 %v296
    %v1567 = vunpack.c.h.b16 %v296
    %v1568 = vunpack.c.l.b16 %v297
    %v1569 = vunpack.c.h.b16 %v297
    %v1570 = vunpack.c.l.b16 %v298
    %v1571 = vunpack.c.h.b16 %v298
    %v1572 = vunpack.c.l.b16 %v299
    %v1573 = vunpack.c.h.b16 %v299
    %v1574 = vunpack.c.l.b16 %v300
    %v1575 = vunpack.c.h.b16 %v300
    %v1576 = vunpack.c.l.b16 %v301
    %v1577 = vunpack.c.h.b16 %v301
    %v1578 = vunpack.c.l.b16 %v302
    %v1579 = vunpack.c.h.b16 %v302
    %v1580 = vunpack.c.l.b16 %v303
    %v1581 = vunpack.c.h.b16 %v303
    %v1582 = vunpack.c.l.b16 %v304
    %v1583 = vunpack.c.h.b16 %v304
    %v1584 = vunpack.c.l.b16 %v305
    %v1585 = vunpack.c.h.b16 %v305
    %v1586 = vunpack.c.l.b16 %v306
    %v1587 = vunpack.c.h.b16 %v306
    %v1588 = vunpack.c.l.b16 %v307
    %v1589 = vunpack.c.h.b16 %v307
    %v1590 = vunpack.c.l.b16 %v308
    %v1591 = vunpack.c.h.b16 %v308
    %v1592 = vunpack.c.l.b16 %v309
    %v1593 = vunpack.c.h.b16 %v309
    %v1594 = vunpack.c.l.b16 %v310
    %v1595 = vunpack.c.h.b16 %v310
    %v1596 = vunpack.c.l.b16 %v311
    %v1597 = vunpack.c.h.b16 %v311
    %v1598 = vunpack.c.l.b16 %v312
    %v1599 = vunpack.c.h.b16 %v312
    %v1600 = vunpack.c.l.b16 %v313
    %v1601 = vunpack.c.h.b16 %v313
    %v1602 = vunpack.c.l.b16 %v314
    %v1603 = vunpack.c.h.b16 %v314
    %v1604 = vunpack.c.l.b16 %v315
    %v1605 = vunpack.c.h.b16 %v315
    %v1606 = vunpack.c.l.b16 %v316
    %v1607 = vunpack.c.h.b16 %v316
    %v1608 = vunpack.c.l.b16 %v317
    %v1609 = vunpack.c.h.b16 %v317
    %v1610 = vunpack.c.l.b16 %v318
    %v1611 = vunpack.c.h.b16 %v318
    %v1612 = vunpack.c.l.b16 %v319
    %v1613 = vunpack.c.h.b16 %v319
    %v1614 = vunpack.c.l.b16 %v320
    %v1615 = vunpack.c.h.b16 %v320
    %v1616 = vunpack.c.l.b16 %v321
    %v1617 = vunpack.c.h.b16 %v321
    %v1618 = vunpack.c.l.b16 %v322
    %v1619 = vunpack.c.h.b16 %v322
    %v1620 = vunpack.c.l.b16 %v323
    %v1621 = vunpack.c.h.b16 %v323
    %v1622 = vunpack.c.l.b16 %v324
    %v1623 = vunpack.c.h.b16 %v324
    %v1624 = vunpack.c.l.b16 %v325
    %v1625 = vunpack.c.h.b16 %v325
    %v1626 = vunpack.c.l.b16 %v326
    %v1627 = vunpack.c.h.b16 %v326
    %v1628 = vunpack.c.l.b16 %v327
    %v1629 = vunpack.c.h.b16 %v327
    %v1630 = vunpack.c.l.b16 %v328
    %v1631 = vunpack.c.h.b16 %v328
    %v1632 = vunpack.c.l.b16 %v329
    %v1633 = vunpack.c.h.b16 %v329
    %v1634 = vunpack.c.l.b16 %v330
    %v1635 = vunpack.c.h.b16 %v330
    %v1636 = vunpack.c.l.b16 %v331
    %v1637 = vunpack.c.h.b16 %v331
    %v1638 = vunpack.c.l.b16 %v332
    %v1639 = vunpack.c.h.b16 %v332
    %v1640 = vunpack.c.l.b16 %v333
    %v1641 = vunpack.c.h.b16 %v333
    %v1642 = vunpack.c.l.b16 %v334
    %v1643 = vunpack.c.h.b16 %v334
    %v1644 = vunpack.c.l.b16 %v335
    %v1645 = vunpack.c.h.b16 %v335
    %v1646 = vunpack.c.l.b16 %v336
    %v1647 = vunpack.c.h.b16 %v336
    %v1648 = vunpack.c.l.b16 %v337
    %v1649 = vunpack.c.h.b16 %v337
    %v1650 = vunpack.c.l.b16 %v338
    %v1651 = vunpack.c.h.b16 %v338
    %v1652 = vunpack.c.l.b16 %v339
    %v1653 = vunpack.c.h.b16 %v339
    %v1654 = vunpack.c.l.b16 %v340
    %v1655 = vunpack.c.h.b16 %v340
    %v1656 = vunpack.c.l.b16 %v341
    %v1657 = vunpack.c.h.b16 %v341
    %v1658 = vunpack.c.l.b16 %v342
    %v1659 = vunpack.c.h.b16 %v342
    %v1660 = vunpack.c.l.b16 %v343
    %v1661 = vunpack.c.h.b16 %v343
    %v1662 = vunpack.c.l.b16 %v344
    %v1663 = vunpack.c.h.b16 %v344
    %v1664 = vunpack.c.l.b16 %v345
    %v1665 = vunpack.c.h.b16 %v345
    %v1666 = vunpack.c.l.b16 %v346
    %v1667 = vunpack.c.h.b16 %v346
    %v1668 = vunpack.c.l.b16 %v347
    %v1669 = vunpack.c.h.b16 %v347
    %v1670 = vunpack.c.l.b16 %v348
    %v1671 = vunpack.c.h.b16 %v348
    %v1672 = vunpack.c.l.b16 %v349
    %v1673 = vunpack.c.h.b16 %v349
    %v1674 = vunpack.c.l.b16 %v350
    %v1675 = vunpack.c.h.b16 %v350
    %v1676 = vunpack.c.l.b16 %v351
    %v1677 = vunpack.c.h.b16 %v351
    %v1678 = vunpack.c.l.b16 %v352
    %v1679 = vunpack.c.h.b16 %v352
    %v1680 = vunpack.c.l.b16 %v353
    %v1681 = vunpack.c.h.b16 %v353
    %v1682 = vunpack.c.l.b16 %v354
    %v1683 = vunpack.c.h.b16 %v354
    %v1684 = vunpack.c.l.b16 %v355
    %v1685 = vunpack.c.h.b16 %v355
    %v1686 = vunpack.c.l.b16 %v356
    %v1687 = vunpack.c.h.b16 %v356
    %v1688 = vunpack.c.l.b16 %v357
    %v1689 = vunpack.c.h.b16 %v357
    %v1690 = vunpack.c.l.b16 %v358
    %v1691 = vunpack.c.h.b16 %v358
    %v1692 = vunpack.c.l.b16 %v359
    %v1693 = vunpack.c.h.b16 %v359
    %v1694 = vunpack.c.l.b16 %v360
    %v1695 = vunpack.c.h.b16 %v360
    %v1696 = vunpack.c.l.b16 %v361
    %v1697 = vunpack.c.h.b16 %v361
    %v1698 = vunpack.c.l.b16 %v362
    %v1699 = vunpack.c.h.b16 %v362
    %v1700 = vunpack.c.l.b16 %v363
    %v1701 = vunpack.c.h.b16 %v363
    %v1702 = vunpack.c.l.b16 %v364
    %v1703 = vunpack.c.h.b16 %v364
    %v1704 = vunpack.c.l.b16 %v365
    %v1705 = vunpack.c.h.b16 %v365
    %v1706 = vunpack.c.l.b16 %v366
    %v1707 = vunpack.c.h.b16 %v366
    %v1708 = vunpack.c.l.b16 %v367
    %v1709 = vunpack.c.h.b16 %v367
    %v1710 = vunpack.c.l.b16 %v368
    %v1711 = vunpack.c.h.b16 %v368
    %v1712 = vunpack.c.l.b16 %v369
    %v1713 = vunpack.c.h.b16 %v369
    %v1714 = vunpack.c.l.b16 %v370
    %v1715 = vunpack.c.h.b16 %v370
    %v1716 = vunpack.c.l.b16 %v371
    %v1717 = vunpack.c.h.b16 %v371
    %v1718 = vunpack.c.l.b16 %v372
    %v1719 = vunpack.c.h.b16 %v372
    %v1720 = vunpack.c.l.b16 %v373
    %v1721 = vunpack.c.h.b16 %v373
    %v1722 = vunpack.c.l.b16 %v374
    %v1723 = vunpack.c.h.b16 %v374
    %v1724 = vunpack.c.l.b16 %v375
    %v1725 = vunpack.c.h.b16 %v375
    %v1726 = vunpack.c.l.b16 %v376
    %v1727 = vunpack.c.h.b16 %v376
    %v1728 = vunpack.c.l.b16 %v377
    %v1729 = vunpack.c.h.b16 %v377
    %v1730 = vunpack.c.l.b16 %v378
    %v1731 = vunpack.c.h.b16 %v378
    %v1732 = vunpack.c.l.b16 %v379
    %v1733 = vunpack.c.h.b16 %v379
    %v1734 = vunpack.c.l.b16 %v380
    %v1735 = vunpack.c.h.b16 %v380
    %v1736 = vunpack.c.l.b16 %v381
    %v1737 = vunpack.c.h.b16 %v381
    %v1738 = vunpack.c.l.b16 %v382
    %v1739 = vunpack.c.h.b16 %v382
    %v1740 = vunpack.c.l.b16 %v383
    %v1741 = vunpack.c.h.b16 %v383
    %v1742 = vunpack.c.l.b16 %v384
    %v1743 = vunpack.c.h.b16 %v384
    %v1744 = vunpack.c.l.b16 %v385
    %v1745 = vunpack.c.h.b16 %v385
    %v1746 = vunpack.c.l.b16 %v386
    %v1747 = vunpack.c.h.b16 %v386
    %v1748 = vunpack.c.l.b16 %v387
    %v1749 = vunpack.c.h.b16 %v387
    %v1750 = vunpack.c.l.b16 %v388
    %v1751 = vunpack.c.h.b16 %v388
    %v1752 = vunpack.c.l.b16 %v389
    %v1753 = vunpack.c.h.b16 %v389
    %v1754 = vunpack.c.l.b16 %v390
    %v1755 = vunpack.c.h.b16 %v390
    %v1756 = vunpack.c.l.b16 %v391
    %v1757 = vunpack.c.h.b16 %v391
    %v1758 = vunpack.c.l.b16 %v392
    %v1759 = vunpack.c.h.b16 %v392
    %v1760 = vunpack.c.l.b16 %v393
    %v1761 = vunpack.c.h.b16 %v393
    %v1762 = vunpack.c.l.b16 %v394
    %v1763 = vunpack.c.h.b16 %v394
    %v1764 = vunpack.c.l.b16 %v395
    %v1765 = vunpack.c.h.b16 %v395
    %v1766 = vunpack.c.l.b16 %v396
    %v1767 = vunpack.c.h.b16 %v396
    %v1768 = vunpack.c.l.b16 %v397
    %v1769 = vunpack.c.h.b16 %v397
    %v1770 = vunpack.c.l.b16 %v398
    %v1771 = vunpack.c.h.b16 %v398
    %v1772 = vunpack.c.l.b16 %v399
    %v1773 = vunpack.c.h.b16 %v399
    %v1774 = vunpack.c.l.b16 %v400
    %v1775 = vunpack.c.h.b16 %v400
    %v1776 = vunpack.c.l.b16 %v401
    %v1777 = vunpack.c.h.b16 %v401
    %v1778 = vunpack.c.l.b16 %v402
    %v1779 = vunpack.c.h.b16 %v402
    %v1780 = vunpack.c.l.b16 %v403
    %v1781 = vunpack.c.h.b16 %v403
    %v1782 = vunpack.c.l.b16 %v404
    %v1783 = vunpack.c.h.b16 %v404
    %v1784 = vunpack.c.l.b16 %v405
    %v1785 = vunpack.c.h.b16 %v405
    %v1786 = vunpack.c.l.b16 %v406
    %v1787 = vunpack.c.h.b16 %v406
    %v1788 = vunpack.c.l.b16 %v407
    %v1789 = vunpack.c.h.b16 %v407
    %v1790 = vunpack.c.l.b16 %v408
    %v1791 = vunpack.c.h.b16 %v408
    %v1792 = vunpack.c.l.b16 %v409
    %v1793 = vunpack.c.h.b16 %v409
    %v1794 = vunpack.c.l.b16 %v410
    %v1795 = vunpack.c.h.b16 %v410
    %v1796 = vunpack.c.l.b16 %v411
    %v1797 = vunpack.c.h.b16 %v411
    %v1798 = vunpack.c.l.b16 %v412
    %v1799 = vunpack.c.h.b16 %v412
    %v1800 = vunpack.c.l.b16 %v413
    %v1801 = vunpack.c.h.b16 %v413
    %v1802 = vunpack.c.l.b16 %v414
    %v1803 = vunpack.c.h.b16 %v414
    %v1804 = vunpack.c.l.b16 %v415
    %v1805 = vunpack.c.h.b16 %v415
    %v1806 = vunpack.c.l.b16 %v416
    %v1807 = vunpack.c.h.b16 %v416
    %v1808 = vunpack.c.l.b16 %v417
    %v1809 = vunpack.c.h.b16 %v417
    %v1810 = vunpack.c.l.b16 %v418
    %v1811 = vunpack.c.h.b16 %v418
    %v1812 = vunpack.c.l.b16 %v419
    %v1813 = vunpack.c.h.b16 %v419
    %v1814 = vunpack.c.l.b16 %v420
    %v1815 = vunpack.c.h.b16 %v420
    %v1816 = vunpack.c.l.b16 %v421
    %v1817 = vunpack.c.h.b16 %v421
    %v1818 = vunpack.c.l.b16 %v422
    %v1819 = vunpack.c.h.b16 %v422
    %v1820 = vunpack.c.l.b16 %v423
    %v1821 = vunpack.c.h.b16 %v423
    %v1822 = vunpack.c.l.b16 %v424
    %v1823 = vunpack.c.h.b16 %v424
    %v1824 = vunpack.c.l.b16 %v425
    %v1825 = vunpack.c.h.b16 %v425
    %v1826 = vunpack.c.l.b16 %v426
    %v1827 = vunpack.c.h.b16 %v426
    %v1828 = vunpack.c.l.b16 %v427
    %v1829 = vunpack.c.h.b16 %v427
    %v1830 = vunpack.c.l.b16 %v428
    %v1831 = vunpack.c.h.b16 %v428
    %v1832 = vunpack.c.l.b16 %v429
    %v1833 = vunpack.c.h.b16 %v429
    %v1834 = vunpack.c.l.b16 %v430
    %v1835 = vunpack.c.h.b16 %v430
    %v1836 = vunpack.c.l.b16 %v431
    %v1837 = vunpack.c.h.b16 %v431
    %v1838 = vunpack.c.l.b16 %v432
    %v1839 = vunpack.c.h.b16 %v432
    %v1840 = vunpack.c.l.b16 %v433
    %v1841 = vunpack.c.h.b16 %v433
    %v1842 = vunpack.c.l.b16 %v434
    %v1843 = vunpack.c.h.b16 %v434
    %v1844 = vunpack.c.l.b16 %v435
    %v1845 = vunpack.c.h.b16 %v435
    %v1846 = vunpack.c.l.b16 %v436
    %v1847 = vunpack.c.h.b16 %v436
    %v1848 = vunpack.c.l.b16 %v437
    %v1849 = vunpack.c.h.b16 %v437
    %v1850 = vunpack.c.l.b16 %v438
    %v1851 = vunpack.c.h.b16 %v438
    %v1852 = vunpack.c.l.b16 %v439
    %v1853 = vunpack.c.h.b16 %v439
    %v1854 = vunpack.c.l.b16 %v440
    %v1855 = vunpack.c.h.b16 %v440
    %v1856 = vunpack.c.l.b16 %v441
    %v1857 = vunpack.c.h.b16 %v441
    %v1858 = vunpack.c.l.b16 %v442
    %v1859 = vunpack.c.h.b16 %v442
    %v1860 = vunpack.c.l.b16 %v443
    %v1861 = vunpack.c.h.b16 %v443
    %v1862 = vunpack.c.l.b16 %v444
    %v1863 = vunpack.c.h.b16 %v444
    %v1864 = vunpack.c.l.b16 %v445
    %v1865 = vunpack.c.h.b16 %v445
    %v1866 = vunpack.c.l.b16 %v446
    %v1867 = vunpack.c.h.b16 %v446
    %v1868 = vunpack.c.l.b16 %v447
    %v1869 = vunpack.c.h.b16 %v447
    %v1870 = vunpack.c.l.b16 %v448
    %v1871 = vunpack.c.h.b16 %v448
    %v1872 = vunpack.c.l.b16 %v449
    %v1873 = vunpack.c.h.b16 %v449
    %v1874 = vunpack.c.l.b16 %v450
    %v1875 = vunpack.c.h.b16 %v450
    %v1876 = vunpack.c.l.b16 %v451
    %v1877 = vunpack.c.h.b16 %v451
    %v1878 = vunpack.c.l.b16 %v452
    %v1879 = vunpack.c.h.b16 %v452
    %v1880 = vunpack.c.l.b16 %v453
    %v1881 = vunpack.c.h.b16 %v453
    %v1882 = vunpack.c.l.b16 %v454
    %v1883 = vunpack.c.h.b16 %v454
    %v1884 = vunpack.c.l.b16 %v455
    %v1885 = vunpack.c.h.b16 %v455
    %v1886 = vunpack.c.l.b16 %v456
    %v1887 = vunpack.c.h.b16 %v456
    %v1888 = vunpack.c.l.b16 %v457
    %v1889 = vunpack.c.h.b16 %v457
    %v1890 = vunpack.c.l.b16 %v458
    %v1891 = vunpack.c.h.b16 %v458
    %v1892 = vunpack.c.l.b16 %v459
    %v1893 = vunpack.c.h.b16 %v459
    %v1894 = vunpack.c.l.b16 %v460
    %v1895 = vunpack.c.h.b16 %v460
    %v1896 = vunpack.c.l.b16 %v461
    %v1897 = vunpack.c.h.b16 %v461
    %v1898 = vunpack.c.l.b16 %v462
    %v1899 = vunpack.c.h.b16 %v462
    %v1900 = vunpack.c.l.b16 %v463
    %v1901 = vunpack.c.h.b16 %v463
    %v1902 = vunpack.c.l.b16 %v464
    %v1903 = vunpack.c.h.b16 %v464
    %v1904 = vunpack.c.l.b16 %v465
    %v1905 = vunpack.c.h.b16 %v465
    %v1906 = vunpack.c.l.b16 %v466
    %v1907 = vunpack.c.h.b16 %v466
    %v1908 = vunpack.c.l.b16 %v467
    %v1909 = vunpack.c.h.b16 %v467
    %v1910 = vunpack.c.l.b16 %v468
    %v1911 = vunpack.c.h.b16 %v468
    %v1912 = vunpack.c.l.b16 %v469
    %v1913 = vunpack.c.h.b16 %v469
    %v1914 = vunpack.c.l.b16 %v470
    %v1915 = vunpack.c.h.b16 %v470
    %v1916 = vunpack.c.l.b16 %v471
    %v1917 = vunpack.c.h.b16 %v471
    %v1918 = vunpack.c.l.b16 %v472
    %v1919 = vunpack.c.h.b16 %v472
    %v1920 = vunpack.c.l.b16 %v473
    %v1921 = vunpack.c.h.b16 %v473
    %v1922 = vunpack.c.l.b16 %v474
    %v1923 = vunpack.c.h.b16 %v474
    %v1924 = vunpack.c.l.b16 %v475
    %v1925 = vunpack.c.h.b16 %v475
    %v1926 = vunpack.c.l.b16 %v476
    %v1927 = vunpack.c.h.b16 %v476
    %v1928 = vunpack.c.l.b16 %v477
    %v1929 = vunpack.c.h.b16 %v477
    %v1930 = vunpack.c.l.b16 %v478
    %v1931 = vunpack.c.h.b16 %v478
    %v1932 = vunpack.c.l.b16 %v479
    %v1933 = vunpack.c.h.b16 %v479
    %v1934 = vunpack.c.l.b16 %v480
    %v1935 = vunpack.c.h.b16 %v480
    %v1936 = vunpack.c.l.b16 %v481
    %v1937 = vunpack.c.h.b16 %v481
    %v1938 = vunpack.c.l.b16 %v482
    %v1939 = vunpack.c.h.b16 %v482
    %v1940 = vunpack.c.l.b16 %v483
    %v1941 = vunpack.c.h.b16 %v483
    %v1942 = vunpack.c.l.b16 %v484
    %v1943 = vunpack.c.h.b16 %v484
    %v1944 = vunpack.c.l.b16 %v485
    %v1945 = vunpack.c.h.b16 %v485
    %v1946 = vunpack.c.l.b16 %v486
    %v1947 = vunpack.c.h.b16 %v486
    %v1948 = vunpack.c.l.b16 %v487
    %v1949 = vunpack.c.h.b16 %v487
    %v1950 = vunpack.c.l.b16 %v488
    %v1951 = vunpack.c.h.b16 %v488
    %v1952 = vunpack.c.l.b16 %v489
    %v1953 = vunpack.c.h.b16 %v489
    %v1954 = vunpack.c.l.b16 %v490
    %v1955 = vunpack.c.h.b16 %v490
    %v1956 = vunpack.c.l.b16 %v491
    %v1957 = vunpack.c.h.b16 %v491
    %v1958 = vunpack.c.l.b16 %v492
    %v1959 = vunpack.c.h.b16 %v492
    %v1960 = vunpack.c.l.b16 %v493
    %v1961 = vunpack.c.h.b16 %v493
    %v1962 = vunpack.c.l.b16 %v494
    %v1963 = vunpack.c.h.b16 %v494
    %v1964 = vunpack.c.l.b16 %v495
    %v1965 = vunpack.c.h.b16 %v495
    %v1966 = vunpack.c.l.b16 %v496
    %v1967 = vunpack.c.h.b16 %v496
    %v1968 = vunpack.c.l.b16 %v497
    %v1969 = vunpack.c.h.b16 %v497
    %v1970 = vunpack.c.l.b16 %v498
    %v1971 = vunpack.c.h.b16 %v498
    %v1972 = vunpack.c.l.b16 %v499
    %v1973 = vunpack.c.h.b16 %v499
    %v1974 = vunpack.c.l.b16 %v500
    %v1975 = vunpack.c.h.b16 %v500
    %v1976 = vunpack.c.l.b16 %v501
    %v1977 = vunpack.c.h.b16 %v501
    %v1978 = vunpack.c.l.b16 %v502
    %v1979 = vunpack.c.h.b16 %v502
    %v1980 = vunpack.c.l.b16 %v503
    %v1981 = vunpack.c.h.b16 %v503
    %v1982 = vunpack.c.l.b16 %v504
    %v1983 = vunpack.c.h.b16 %v504
    %v1984 = vunpack.c.l.b16 %v505
    %v1985 = vunpack.c.h.b16 %v505
    %v1986 = vunpack.c.l.b16 %v506
    %v1987 = vunpack.c.h.b16 %v506
    %v1988 = vunpack.c.l.b16 %v507
    %v1989 = vunpack.c.h.b16 %v507
    %v1990 = vunpack.c.l.b16 %v508
    %v1991 = vunpack.c.h.b16 %v508
    %v1992 = vunpack.c.l.b16 %v509
    %v1993 = vunpack.c.h.b16 %v509
    %v1994 = vunpack.c.l.b16 %v510
    %v1995 = vunpack.c.h.b16 %v510
    %v1996 = vunpack.c.l.b16 %v511
    %v1997 = vunpack.c.h.b16 %v511
    %v1998 = vunpack.c.l.b16 %v512
    %v1999 = vunpack.c.h.b16 %v512
    %v2000 = vunpack.c.l.b16 %v513
    %v2001 = vunpack.c.h.b16 %v513
    %v2002 = vunpack.c.l.b16 %v514
    %v2003 = vunpack.c.h.b16 %v514
    %v2004 = vunpack.c.l.b16 %v515
    %v2005 = vunpack.c.h.b16 %v515
    %v2006 = vunpack.c.l.b16 %v516
    %v2007 = vunpack.c.h.b16 %v516
    %v2008 = vunpack.c.l.b16 %v517
    %v2009 = vunpack.c.h.b16 %v517
    %v2010 = vunpack.c.l.b16 %v518
    %v2011 = vunpack.c.h.b16 %v518
    %v2012 = vunpack.c.l.b16 %v519
    %v2013 = vunpack.c.h.b16 %v519
    %v2014 = vunpack.c.l.b16 %v520
    %v2015 = vunpack.c.h.b16 %v520
    %v2016 = vunpack.c.l.b16 %v521
    %v2017 = vunpack.c.h.b16 %v521
    %v2018 = vunpack.c.l.b16 %v522
    %v2019 = vunpack.c.h.b16 %v522
    %v2020 = vunpack.c.l.b16 %v523
    %v2021 = vunpack.c.h.b16 %v523
    %v2022 = vunpack.c.l.b16 %v524
    %v2023 = vunpack.c.h.b16 %v524
    %v2024 = vunpack.c.l.b16 %v525
    %v2025 = vunpack.c.h.b16 %v525
    %v2026 = vunpack.c.l.b16 %v526
    %v2027 = vunpack.c.h.b16 %v526
    %v2028 = vunpack.c.l.b16 %v527
    %v2029 = vunpack.c.h.b16 %v527
    %v2030 = vunpack.c.l.b16 %v528
    %v2031 = vunpack.c.h.b16 %v528
    %v2032 = vunpack.c.l.b16 %v529
    %v2033 = vunpack.c.h.b16 %v529
    %v2034 = vunpack.c.l.b16 %v530
    %v2035 = vunpack.c.h.b16 %v530
    %v2036 = vunpack.c.l.b16 %v531
    %v2037 = vunpack.c.h.b16 %v531
    %v2038 = vunpack.c.l.b16 %v532
    %v2039 = vunpack.c.h.b16 %v532
    %v2040 = vunpack.c.l.b16 %v533
    %v2041 = vunpack.c.h.b16 %v533
    %v2042 = vunpack.c.l.b16 %v534
    %v2043 = vunpack.c.h.b16 %v534
    %v2044 = vunpack.c.l.b16 %v535
    %v2045 = vunpack.c.h.b16 %v535
    %v2046 = vunpack.c.l.b16 %v536
    %v2047 = vunpack.c.h.b16 %v536
    %v2048 = vunpack.c.l.b16 %v537
    %v2049 = vunpack.c.h.b16 %v537
    %v2050 = vunpack.c.l.b16 %v538
    %v2051 = vunpack.c.h.b16 %v538
    %v2052 = vunpack.c.l.b16 %v539
    %v2053 = vunpack.c.h.b16 %v539
    %v2054 = vunpack.c.l.b16 %v540
    %v2055 = vunpack.c.h.b16 %v540
    %v2056 = vunpack.c.l.b16 %v541
    %v2057 = vunpack.c.h.b16 %v541
    %v2058 = vunpack.c.l.b16 %v542
    %v2059 = vunpack.c.h.b16 %v542
    %v2060 = vunpack.c.l.b16 %v543
    %v2061 = vunpack.c.h.b16 %v543
    %v2062 = vunpack.c.l.b16 %v544
    %v2063 = vunpack.c.h.b16 %v544
    %v2064 = vunpack.c.l.b16 %v545
    %v2065 = vunpack.c.h.b16 %v545
    %v2066 = vpack.c.b16 %v1290, %v1282
    %v2067 = vpack.c.b16 %v1291, %v1283
    %v2068 = vpack.c.b16 %v1292, %v1284
    %v2069 = vpack.c.b16 %v1293, %v1285
    %v2070 = vpack.c.b16 %v1294, %v1286
    %v2071 = vpack.c.b16 %v1295, %v1287
    %v2072 = vpack.c.b16 %v1296, %v1288
    %v2073 = vpack.c.b16 %v1297, %v1289
    %v2074 = vpack.c.b16 %v1306, %v1298
    %v2075 = vpack.c.b16 %v1307, %v1299
    %v2076 = vpack.c.b16 %v1308, %v1300
    %v2077 = vpack.c.b16 %v1309, %v1301
    %v2078 = vpack.c.b16 %v1310, %v1302
    %v2079 = vpack.c.b16 %v1311, %v1303
    %v2080 = vpack.c.b16 %v1312, %v1304
    %v2081 = vpack.c.b16 %v1313, %v1305
    %v2082 = vpack.c.b16 %v1322, %v1314
    %v2083 = vpack.c.b16 %v1323, %v1315
    %v2084 = vpack.c.b16 %v1324, %v1316
    %v2085 = vpack.c.b16 %v1325, %v1317
    %v2086 = vpack.c.b16 %v1326, %v1318
    %v2087 = vpack.c.b16 %v1327, %v1319
    %v2088 = vpack.c.b16 %v1328, %v1320
    %v2089 = vpack.c.b16 %v1329, %v1321
    %v2090 = vpack.c.b16 %v1338, %v1330
    %v2091 = vpack.c.b16 %v1339, %v1331
    %v2092 = vpack.c.b16 %v1340, %v1332
    %v2093 = vpack.c.b16 %v1341, %v1333
    %v2094 = vpack.c.b16 %v1342, %v1334
    %v2095 = vpack.c.b16 %v1343, %v1335
    %v2096 = vpack.c.b16 %v1344, %v1336
    %v2097 = vpack.c.b16 %v1345, %v1337
    %v2098 = vpack.c.b16 %v1354, %v1346
    %v2099 = vpack.c.b16 %v1355, %v1347
    %v2100 = vpack.c.b16 %v1356, %v1348
    %v2101 = vpack.c.b16 %v1357, %v1349
    %v2102 = vpack.c.b16 %v1358, %v1350
    %v2103 = vpack.c.b16 %v1359, %v1351
    %v2104 = vpack.c.b16 %v1360, %v1352
    %v2105 = vpack.c.b16 %v1361, %v1353
    %v2106 = vpack.c.b16 %v1370, %v1362
    %v2107 = vpack.c.b16 %v1371, %v1363
    %v2108 = vpack.c.b16 %v1372, %v1364
    %v2109 = vpack.c.b16 %v1373, %v1365
    %v2110 = vpack.c.b16 %v1374, %v1366
    %v2111 = vpack.c.b16 %v1375, %v1367
    %v2112 = vpack.c.b16 %v1376, %v1368
    %v2113 = vpack.c.b16 %v1377, %v1369
    %v2114 = vpack.c.b16 %v1386, %v1378
    %v2115 = vpack.c.b16 %v1387, %v1379
    %v2116 = vpack.c.b16 %v1388, %v1380
    %v2117 = vpack.c.b16 %v1389, %v1381
    %v2118 = vpack.c.b16 %v1390, %v1382
    %v2119 = vpack.c.b16 %v1391, %v1383
    %v2120 = vpack.c.b16 %v1392, %v1384
    %v2121 = vpack.c.b16 %v1393, %v1385
    %v2122 = vpack.c.b16 %v1402, %v1394
    %v2123 = vpack.c.b16 %v1403, %v1395
    %v2124 = vpack.c.b16 %v1404, %v1396
    %v2125 = vpack.c.b16 %v1405, %v1397
    %v2126 = vpack.c.b16 %v1406, %v1398
    %v2127 = vpack.c.b16 %v1407, %v1399
    %v2128 = vpack.c.b16 %v1408, %v1400
    %v2129 = vpack.c.b16 %v1409, %v1401
    %v2130 = vpack.c.b16 %v1418, %v1410
    %v2131 = vpack.c.b16 %v1419, %v1411
    %v2132 = vpack.c.b16 %v1420, %v1412
    %v2133 = vpack.c.b16 %v1421, %v1413
    %v2134 = vpack.c.b16 %v1422, %v1414
    %v2135 = vpack.c.b16 %v1423, %v1415
    %v2136 = vpack.c.b16 %v1424, %v1416
    %v2137 = vpack.c.b16 %v1425, %v1417
    %v2138 = vpack.c.b16 %v1434, %v1426
    %v2139 = vpack.c.b16 %v1435, %v1427
    %v2140 = vpack.c.b16 %v1436, %v1428
    %v2141 = vpack.c.b16 %v1437, %v1429
    %v2142 = vpack.c.b16 %v1438, %v1430
    %v2143 = vpack.c.b16 %v1439, %v1431
    %v2144 = vpack.c.b16 %v1440, %v1432
    %v2145 = vpack.c.b16 %v1441, %v1433
    %v2146 = vpack.c.b16 %v1450, %v1442
    %v2147 = vpack.c.b16 %v1451, %v1443
    %v2148 = vpack.c.b16 %v1452, %v1444
    %v2149 = vpack.c.b16 %v1453, %v1445
    %v2150 = vpack.c.b16 %v1454, %v1446
    %v2151 = vpack.c.b16 %v1455, %v1447
    %v2152 = vpack.c.b16 %v1456, %v1448
    %v2153 = vpack.c.b16 %v1457, %v1449
    %v2154 = vpack.c.b16 %v1466, %v1458
    %v2155 = vpack.c.b16 %v1467, %v1459
    %v2156 = vpack.c.b16 %v1468, %v1460
    %v2157 = vpack.c.b16 %v1469, %v1461
    %v2158 = vpack.c.b16 %v1470, %v1462
    %v2159 = vpack.c.b16 %v1471, %v1463
    %v2160 = vpack.c.b16 %v1472, %v1464
    %v2161 = vpack.c.b16 %v1473, %v1465
    %v2162 = vpack.c.b16 %v1482, %v1474
    %v2163 = vpack.c.b16 %v1483, %v1475
    %v2164 = vpack.c.b16 %v1484, %v1476
    %v2165 = vpack.c.b16 %v1485, %v1477
    %v2166 = vpack.c.b16 %v1486, %v1478
    %v2167 = vpack.c.b16 %v1487, %v1479
    %v2168 = vpack.c.b16 %v1488, %v1480
    %v2169 = vpack.c.b16 %v1489, %v1481
    %v2170 = vpack.c.b16 %v1498, %v1490
    %v2171 = vpack.c.b16 %v1499, %v1491
    %v2172 = vpack.c.b16 %v1500, %v1492
    %v2173 = vpack.c.b16 %v1501, %v1493
    %v2174 = vpack.c.b16 %v1502, %v1494
    %v2175 = vpack.c.b16 %v1503, %v1495
    %v2176 = vpack.c.b16 %v1504, %v1496
    %v2177 = vpack.c.b16 %v1505, %v1497
    %v2178 = vpack.c.b16 %v1514, %v1506
    %v2179 = vpack.c.b16 %v1515, %v1507
    %v2180 = vpack.c.b16 %v1516, %v1508
    %v2181 = vpack.c.b16 %v1517, %v1509
    %v2182 = vpack.c.b16 %v1518, %v1510
    %v2183 = vpack.c.b16 %v1519, %v1511
    %v2184 = vpack.c.b16 %v1520, %v1512
    %v2185 = vpack.c.b16 %v1521, %v1513
    %v2186 = vpack.c.b16 %v1530, %v1522
    %v2187 = vpack.c.b16 %v1531, %v1523
    %v2188 = vpack.c.b16 %v1532, %v1524
    %v2189 = vpack.c.b16 %v1533, %v1525
    %v2190 = vpack.c.b16 %v1534, %v1526
    %v2191 = vpack.c.b16 %v1535, %v1527
    %v2192 = vpack.c.b16 %v1536, %v1528
    %v2193 = vpack.c.b16 %v1537, %v1529
    %v2194 = vpack.c.b16 %v1546, %v1538
    %v2195 = vpack.c.b16 %v1547, %v1539
    %v2196 = vpack.c.b16 %v1548, %v1540
    %v2197 = vpack.c.b16 %v1549, %v1541
    %v2198 = vpack.c.b16 %v1550, %v1542
    %v2199 = vpack.c.b16 %v1551, %v1543
    %v2200 = vpack.c.b16 %v1552, %v1544
    %v2201 = vpack.c.b16 %v1553, %v1545
    %v2202 = vpack.c.b16 %v1562, %v1554
    %v2203 = vpack.c.b16 %v1563, %v1555
    %v2204 = vpack.c.b16 %v1564, %v1556
    %v2205 = vpack.c.b16 %v1565, %v1557
    %v2206 = vpack.c.b16 %v1566, %v1558
    %v2207 = vpack.c.b16 %v1567, %v1559
    %v2208 = vpack.c.b16 %v1568, %v1560
    %v2209 = vpack.c.b16 %v1569, %v1561
    %v2210 = vpack.c.b16 %v1578, %v1570
    %v2211 = vpack.c.b16 %v1579, %v1571
    %v2212 = vpack.c.b16 %v1580, %v1572
    %v2213 = vpack.c.b16 %v1581, %v1573
    %v2214 = vpack.c.b16 %v1582, %v1574
    %v2215 = vpack.c.b16 %v1583, %v1575
    %v2216 = vpack.c.b16 %v1584, %v1576
    %v2217 = vpack.c.b16 %v1585, %v1577
    %v2218 = vpack.c.b16 %v1594, %v1586
    %v2219 = vpack.c.b16 %v1595, %v1587
    %v2220 = vpack.c.b16 %v1596, %v1588
    %v2221 = vpack.c.b16 %v1597, %v1589
    %v2222 = vpack.c.b16 %v1598, %v1590
    %v2223 = vpack.c.b16 %v1599, %v1591
    %v2224 = vpack.c.b16 %v1600, %v1592
    %v2225 = vpack.c.b16 %v1601, %v1593
    %v2226 = vpack.c.b16 %v1610, %v1602
    %v2227 = vpack.c.b16 %v1611, %v1603
    %v2228 = vpack.c.b16 %v1612, %v1604
    %v2229 = vpack.c.b16 %v1613, %v1605
    %v2230 = vpack.c.b16 %v1614, %v1606
    %v2231 = vpack.c.b16 %v1615, %v1607
    %v2232 = vpack.c.b16 %v1616, %v1608
    %v2233 = vpack.c.b16 %v1617, %v1609
    %v2234 = vpack.c.b16 %v1626, %v1618
    %v2235 = vpack.c.b16 %v1627, %v1619
    %v2236 = vpack.c.b16 %v1628, %v1620
    %v2237 = vpack.c.b16 %v1629, %v1621
    %v2238 = vpack.c.b16 %v1630, %v1622
    %v2239 = vpack.c.b16 %v1631, %v1623
    %v2240 = vpack.c.b16 %v1632, %v1624
    %v2241 = vpack.c.b16 %v1633, %v1625
    %v2242 = vpack.c.b16 %v1642, %v1634
    %v2243 = vpack.c.b16 %v1643, %v1635
    %v2244 = vpack.c.b16 %v1644, %v1636
    %v2245 = vpack.c.b16 %v1645, %v1637
    %v2246 = vpack.c.b16 %v1646, %v1638
    %v2247 = vpack.c.b16 %v1647, %v1639
    %v2248 = vpack.c.b16 %v1648, %v1640
    %v2249 = vpack.c.b16 %v1649, %v1641
    %v2250 = vpack.c.b16 %v1658, %v1650
    %v2251 = vpack.c.b16 %v1659, %v1651
    %v2252 = vpack.c.b16 %v1660, %v1652
    %v2253 = vpack.c.b16 %v1661, %v1653
    %v2254 = vpack.c.b16 %v1662, %v1654
    %v2255 = vpack.c.b16 %v1663, %v1655
    %v2256 = vpack.c.b16 %v1664, %v1656
    %v2257 = vpack.c.b16 %v1665, %v1657
    %v2258 = vpack.c.b16 %v1674, %v1666
    %v2259 = vpack.c.b16 %v1675, %v1667
    %v2260 = vpack.c.b16 %v1676, %v1668
    %v2261 = vpack.c.b16 %v1677, %v1669
    %v2262 = vpack.c.b16 %v1678, %v1670
    %v2263 = vpack.c.b16 %v1679, %v1671
    %v2264 = vpack.c.b16 %v1680, %v1672
    %v2265 = vpack.c.b16 %v1681, %v1673
    %v2266 = vpack.c.b16 %v1690, %v1682
    %v2267 = vpack.c.b16 %v1691, %v1683
    %v2268 = vpack.c.b16 %v1692, %v1684
    %v2269 = vpack.c.b16 %v1693, %v1685
    %v2270 = vpack.c.b16 %v1694, %v1686
    %v2271 = vpack.c.b16 %v1695, %v1687
    %v2272 = vpack.c.b16 %v1696, %v1688
    %v2273 = vpack.c.b16 %v1697, %v1689
    %v2274 = vpack.c.b16 %v1706, %v1698
    %v2275 = vpack.c.b16 %v1707, %v1699
    %v2276 = vpack.c.b16 %v1708, %v1700
    %v2277 = vpack.c.b16 %v1709, %v1701
    %v2278 = vpack.c.b16 %v1710, %v1702
    %v2279 = vpack.c.b16 %v1711, %v1703
    %v2280 = vpack.c.b16 %v1712, %v1704
    %v2281 = vpack.c.b16 %v1713, %v1705
    %v2282 = vpack.c.b16 %v1722, %v1714
    %v2283 = vpack.c.b16 %v1723, %v1715
    %v2284 = vpack.c.b16 %v1724, %v1716
    %v2285 = vpack.c.b16 %v1725, %v1717
    %v2286 = vpack.c.b16 %v1726, %v1718
    %v2287 = vpack.c.b16 %v1727, %v1719
    %v2288 = vpack.c.b16 %v1728, %v1720
    %v2289 = vpack.c.b16 %v1729, %v1721
    %v2290 = vpack.c.b16 %v1738, %v1730
    %v2291 = vpack.c.b16 %v1739, %v1731
    %v2292 = vpack.c.b16 %v1740, %v1732
    %v2293 = vpack.c.b16 %v1741, %v1733
    %v2294 = vpack.c.b16 %v1742, %v1734
    %v2295 = vpack.c.b16 %v1743, %v1735
    %v2296 = vpack.c.b16 %v1744, %v1736
    %v2297 = vpack.c.b16 %v1745, %v1737
    %v2298 = vpack.c.b16 %v1754, %v1746
    %v2299 = vpack.c.b16 %v1755, %v1747
    %v2300 = vpack.c.b16 %v1756, %v1748
    %v2301 = vpack.c.b16 %v1757, %v1749
    %v2302 = vpack.c.b16 %v1758, %v1750
    %v2303 = vpack.c.b16 %v1759, %v1751
    %v2304 = vpack.c.b16 %v1760, %v1752
    %v2305 = vpack.c.b16 %v1761, %v1753
    %v2306 = vpack.c.b16 %v1770, %v1762
    %v2307 = vpack.c.b16 %v1771, %v1763
    %v2308 = vpack.c.b16 %v1772, %v1764
    %v2309 = vpack.c.b16 %v1773, %v1765
    %v2310 = vpack.c.b16 %v1774, %v1766
    %v2311 = vpack.c.b16 %v1775, %v1767
    %v2312 = vpack.c.b16 %v1776, %v1768
    %v2313 = vpack.c.b16 %v1777, %v1769
    %v2314 = vpack.c.b16 %v1786, %v1778
    %v2315 = vpack.c.b16 %v1787, %v1779
    %v2316 = vpack.c.b16 %v1788, %v1780
    %v2317 = vpack.c.b16 %v1789, %v1781
    %v2318 = vpack.c.b16 %v1790, %v1782
    %v2319 = vpack.c.b16 %v1791, %v1783
    %v2320 = vpack.c.b16 %v1792, %v1784
    %v2321 = vpack.c.b16 %v1793, %v1785
    %v2322 = vpack.c.b16 %v1802, %v1794
    %v2323 = vpack.c.b16 %v1803, %v1795
    %v2324 = vpack.c.b16 %v1804, %v1796
    %v2325 = vpack.c.b16 %v1805, %v1797
    %v2326 = vpack.c.b16 %v1806, %v1798
    %v2327 = vpack.c.b16 %v1807, %v1799
    %v2328 = vpack.c.b16 %v1808, %v1800
    %v2329 = vpack.c.b16 %v1809, %v1801
    %v2330 = vpack.c.b16 %v1818, %v1810
    %v2331 = vpack.c.b16 %v1819, %v1811
    %v2332 = vpack.c.b16 %v1820, %v1812
    %v2333 = vpack.c.b16 %v1821, %v1813
    %v2334 = vpack.c.b16 %v1822, %v1814
    %v2335 = vpack.c.b16 %v1823, %v1815
    %v2336 = vpack.c.b16 %v1824, %v1816
    %v2337 = vpack.c.b16 %v1825, %v1817
    %v2338 = vpack.c.b16 %v1834, %v1826
    %v2339 = vpack.c.b16 %v1835, %v1827
    %v2340 = vpack.c.b16 %v1836, %v1828
    %v2341 = vpack.c.b16 %v1837, %v1829
    %v2342 = vpack.c.b16 %v1838, %v1830
    %v2343 = vpack.c.b16 %v1839, %v1831
    %v2344 = vpack.c.b16 %v1840, %v1832
    %v2345 = vpack.c.b16 %v1841, %v1833
    %v2346 = vpack.c.b16 %v1850, %v1842
    %v2347 = vpack.c.b16 %v1851, %v1843
    %v2348 = vpack.c.b16 %v1852, %v1844
    %v2349 = vpack.c.b16 %v1853, %v1845
    %v2350 = vpack.c.b16 %v1854, %v1846
    %v2351 = vpack.c.b16 %v1855, %v1847
    %v2352 = vpack.c.b16 %v1856, %v1848
    %v2353 = vpack.c.b16 %v1857, %v1849
    %v2354 = vpack.c.b16 %v1866, %v1858
    %v2355 = vpack.c.b16 %v1867, %v1859
    %v2356 = vpack.c.b16 %v1868, %v1860
    %v2357 = vpack.c.b16 %v1869, %v1861
    %v2358 = vpack.c.b16 %v1870, %v1862
    %v2359 = vpack.c.b16 %v1871, %v1863
    %v2360 = vpack.c.b16 %v1872, %v1864
    %v2361 = vpack.c.b16 %v1873, %v1865
    %v2362 = vpack.c.b16 %v1882, %v1874
    %v2363 = vpack.c.b16 %v1883, %v1875
    %v2364 = vpack.c.b16 %v1884, %v1876
    %v2365 = vpack.c.b16 %v1885, %v1877
    %v2366 = vpack.c.b16 %v1886, %v1878
    %v2367 = vpack.c.b16 %v1887, %v1879
    %v2368 = vpack.c.b16 %v1888, %v1880
    %v2369 = vpack.c.b16 %v1889, %v1881
    %v2370 = vpack.c.b16 %v1898, %v1890
    %v2371 = vpack.c.b16 %v1899, %v1891
    %v2372 = vpack.c.b16 %v1900, %v1892
    %v2373 = vpack.c.b16 %v1901, %v1893
    %v2374 = vpack.c.b16 %v1902, %v1894
    %v2375 = vpack.c.b16 %v1903, %v1895
    %v2376 = vpack.c.b16 %v1904, %v1896
    %v2377 = vpack.c.b16 %v1905, %v1897
    %v2378 = vpack.c.b16 %v1914, %v1906
    %v2379 = vpack.c.b16 %v1915, %v1907
    %v2380 = vpack.c.b16 %v1916, %v1908
    %v2381 = vpack.c.b16 %v1917, %v1909
    %v2382 = vpack.c.b16 %v1918, %v1910
    %v2383 = vpack.c.b16 %v1919, %v1911
    %v2384 = vpack.c.b16 %v1920, %v1912
    %v2385 = vpack.c.b16 %v1921, %v1913
    %v2386 = vpack.c.b16 %v1930, %v1922
    %v2387 = vpack.c.b16 %v1931, %v1923
    %v2388 = vpack.c.b16 %v1932, %v1924
    %v2389 = vpack.c.b16 %v1933, %v1925
    %v2390 = vpack.c.b16 %v1934, %v1926
    %v2391 = vpack.c.b16 %v1935, %v1927
    %v2392 = vpack.c.b16 %v1936, %v1928
    %v2393 = vpack.c.b16 %v1937, %v1929
    %v2394 = vpack.c.b16 %v1946, %v1938
    %v2395 = vpack.c.b16 %v1947, %v1939
    %v2396 = vpack.c.b16 %v1948, %v1940
    %v2397 = vpack.c.b16 %v1949, %v1941
    %v2398 = vpack.c.b16 %v1950, %v1942
    %v2399 = vpack.c.b16 %v1951, %v1943
    %v2400 = vpack.c.b16 %v1952, %v1944
    %v2401 = vpack.c.b16 %v1953, %v1945
    %v2402 = vpack.c.b16 %v1962, %v1954
    %v2403 = vpack.c.b16 %v1963, %v1955
    %v2404 = vpack.c.b16 %v1964, %v1956
    %v2405 = vpack.c.b16 %v1965, %v1957
    %v2406 = vpack.c.b16 %v1966, %v1958
    %v2407 = vpack.c.b16 %v1967, %v1959
    %v2408 = vpack.c.b16 %v1968, %v1960
    %v2409 = vpack.c.b16 %v1969, %v1961
    %v2410 = vpack.c.b16 %v1978, %v1970
    %v2411 = vpack.c.b16 %v1979, %v1971
    %v2412 = vpack.c.b16 %v1980, %v1972
    %v2413 = vpack.c.b16 %v1981, %v1973
    %v2414 = vpack.c.b16 %v1982, %v1974
    %v2415 = vpack.c.b16 %v1983, %v1975
    %v2416 = vpack.c.b16 %v1984, %v1976
    %v2417 = vpack.c.b16 %v1985, %v1977
    %v2418 = vpack.c.b16 %v1994, %v1986
    %v2419 = vpack.c.b16 %v1995, %v1987
    %v2420 = vpack.c.b16 %v1996, %v1988
    %v2421 = vpack.c.b16 %v1997, %v1989
    %v2422 = vpack.c.b16 %v1998, %v1990
    %v2423 = vpack.c.b16 %v1999, %v1991
    %v2424 = vpack.c.b16 %v2000, %v1992
    %v2425 = vpack.c.b16 %v2001, %v1993
    %v2426 = vpack.c.b16 %v2010, %v2002
    %v2427 = vpack.c.b16 %v2011, %v2003
    %v2428 = vpack.c.b16 %v2012, %v2004
    %v2429 = vpack.c.b16 %v2013, %v2005
    %v2430 = vpack.c.b16 %v2014, %v2006
    %v2431 = vpack.c.b16 %v2015, %v2007
    %v2432 = vpack.c.b16 %v2016, %v2008
    %v2433 = vpack.c.b16 %v2017, %v2009
    %v2434 = vpack.c.b16 %v2026, %v2018
    %v2435 = vpack.c.b16 %v2027, %v2019
    %v2436 = vpack.c.b16 %v2028, %v2020
    %v2437 = vpack.c.b16 %v2029, %v2021
    %v2438 = vpack.c.b16 %v2030, %v2022
    %v2439 = vpack.c.b16 %v2031, %v2023
    %v2440 = vpack.c.b16 %v2032, %v2024
    %v2441 = vpack.c.b16 %v2033, %v2025
    %v2442 = vpack.c.b16 %v2042, %v2034
    %v2443 = vpack.c.b16 %v2043, %v2035
    %v2444 = vpack.c.b16 %v2044, %v2036
    %v2445 = vpack.c.b16 %v2045, %v2037
    %v2446 = vpack.c.b16 %v2046, %v2038
    %v2447 = vpack.c.b16 %v2047, %v2039
    %v2448 = vpack.c.b16 %v2048, %v2040
    %v2449 = vpack.c.b16 %v2049, %v2041
    %v2450 = vpack.c.b16 %v2058, %v2050
    %v2451 = vpack.c.b16 %v2059, %v2051
    %v2452 = vpack.c.b16 %v2060, %v2052
    %v2453 = vpack.c.b16 %v2061, %v2053
    %v2454 = vpack.c.b16 %v2062, %v2054
    %v2455 = vpack.c.b16 %v2063, %v2055
    %v2456 = vpack.c.b16 %v2064, %v2056
    %v2457 = vpack.c.b16 %v2065, %v2057
    %vm2850 = vcmask 130048
    %v2852 = vsel %vm2850, %v153, 0
    %2854 = vmatprep.subr.bf16.mxu0 %v2123
    %2855 = vmatpush1.bf16.msra.mxu0 %v2122
    %2856 = vmatprep.subr.bf16.mxu0 %v2115
    %2857 = vmatpush1.bf16.msra.mxu0 %v2114
    %2858 = vmatprep.subr.bf16.mxu0 %v2107
    %2859 = vmatpush1.bf16.msra.mxu0 %v2106
    %2860 = vmatprep.subr.bf16.mxu0 %v2099
    %2861 = vmatpush1.bf16.msra.mxu0 %v2098
    %2862 = vmatprep.subr.bf16.mxu0 %v2091
    %2863 = vmatpush1.bf16.msra.mxu0 %v2090
    %2864 = vmatprep.subr.bf16.mxu0 %v2083
    %2865 = vmatpush1.bf16.msra.mxu0 %v2082
    %2866 = vmatprep.subr.bf16.mxu0 %v2075
    %2867 = vmatpush1.bf16.msra.mxu0 %v2074
    %2868 = vmatprep.subr.bf16.mxu0 %v2067
    %2869 = vmatpush1.bf16.msra.mxu0 %v2066
    %2870 = vmatprep.subr.bf16.mxu0 %v2187
    %2871 = vmatpush2.bf16.msra.mxu0 %v2186
    %2872 = vmatprep.subr.bf16.mxu0 %v2179
    %2873 = vmatpush2.bf16.msra.mxu0 %v2178
    %2874 = vmatprep.subr.bf16.mxu0 %v2171
    %2875 = vmatpush2.bf16.msra.mxu0 %v2170
    %2876 = vmatprep.subr.bf16.mxu0 %v2163
    %2877 = vmatpush2.bf16.msra.mxu0 %v2162
    %2878 = vmatprep.subr.bf16.mxu0 %v2155
    %2879 = vmatpush2.bf16.msra.mxu0 %v2154
    %2880 = vmatprep.subr.bf16.mxu0 %v2147
    %2881 = vmatpush2.bf16.msra.mxu0 %v2146
    %2882 = vmatprep.subr.bf16.mxu0 %v2139
    %2883 = vmatpush2.bf16.msra.mxu0 %v2138
    %2884 = vmatprep.subr.bf16.mxu0 %v2131
    %2885 = vmatpush2.bf16.msra.mxu0 %v2130
    %2886 = vmatprep.mubr.bf16.mxu0 %v148
    %2887 = vmatmul.mubr.bf16.gmra.mxu0 %v147
    %v2888 = vpop.f32.mrf.mxu0
    %v2889 = vadd.f32 %v673, %v2888
    %v2890 = vpop.f32.mrf.mxu0
    %v2891 = vadd.f32 %v675, %v2890
    %v2892 = vpop.f32.mrf.mxu0
    %v2893 = vpop.f32.mrf.mxu0
    %2894 = vdwg.mxu0
    %2895 = vmatprep.subr.bf16.mxu0 %v2251
    %2896 = vmatpush1.bf16.msra.mxu0 %v2250
    %2897 = vmatprep.subr.bf16.mxu0 %v2243
    %2898 = vmatpush1.bf16.msra.mxu0 %v2242
    %2899 = vmatprep.subr.bf16.mxu0 %v2235
    %2900 = vmatpush1.bf16.msra.mxu0 %v2234
    %2901 = vmatprep.subr.bf16.mxu0 %v2227
    %2902 = vmatpush1.bf16.msra.mxu0 %v2226
    %2903 = vmatprep.subr.bf16.mxu0 %v2219
    %2904 = vmatpush1.bf16.msra.mxu0 %v2218
    %2905 = vmatprep.subr.bf16.mxu0 %v2211
    %2906 = vmatpush1.bf16.msra.mxu0 %v2210
    %2907 = vmatprep.subr.bf16.mxu0 %v2203
    %2908 = vmatpush1.bf16.msra.mxu0 %v2202
    %2909 = vmatprep.subr.bf16.mxu0 %v2195
    %2910 = vmatpush1.bf16.msra.mxu0 %v2194
    %2911 = vmatprep.subr.bf16.mxu0 %v2315
    %2912 = vmatpush2.bf16.msra.mxu0 %v2314
    %2913 = vmatprep.subr.bf16.mxu0 %v2307
    %2914 = vmatpush2.bf16.msra.mxu0 %v2306
    %2915 = vmatprep.subr.bf16.mxu0 %v2299
    %2916 = vmatpush2.bf16.msra.mxu0 %v2298
    %2917 = vmatprep.subr.bf16.mxu0 %v2291
    %2918 = vmatpush2.bf16.msra.mxu0 %v2290
    %2919 = vmatprep.subr.bf16.mxu0 %v2283
    %2920 = vmatpush2.bf16.msra.mxu0 %v2282
    %2921 = vmatprep.subr.bf16.mxu0 %v2275
    %2922 = vmatpush2.bf16.msra.mxu0 %v2274
    %2923 = vmatprep.subr.bf16.mxu0 %v2267
    %2924 = vmatpush2.bf16.msra.mxu0 %v2266
    %2925 = vmatprep.subr.bf16.mxu0 %v2259
    %2926 = vmatpush2.bf16.msra.mxu0 %v2258
    %2927 = vmatprep.mubr.bf16.mxu0 %v150
    %2928 = vmatmul.mubr.bf16.gmra.mxu0 %v149
    %v2929 = vpop.f32.mrf.mxu0
    %v2930 = vadd.f32 %v2889, %v2929
    %v2931 = vpop.f32.mrf.mxu0
    %v2932 = vadd.f32 %v2891, %v2931
    %v2933 = vpop.f32.mrf.mxu0
    %v2934 = vpop.f32.mrf.mxu0
    %2935 = vdwg.mxu0
    %2936 = vmatprep.subr.bf16.mxu0 %v2379
    %2937 = vmatpush1.bf16.msra.mxu0 %v2378
    %2938 = vmatprep.subr.bf16.mxu0 %v2371
    %2939 = vmatpush1.bf16.msra.mxu0 %v2370
    %2940 = vmatprep.subr.bf16.mxu0 %v2363
    %2941 = vmatpush1.bf16.msra.mxu0 %v2362
    %2942 = vmatprep.subr.bf16.mxu0 %v2355
    %2943 = vmatpush1.bf16.msra.mxu0 %v2354
    %2944 = vmatprep.subr.bf16.mxu0 %v2347
    %2945 = vmatpush1.bf16.msra.mxu0 %v2346
    %2946 = vmatprep.subr.bf16.mxu0 %v2339
    %2947 = vmatpush1.bf16.msra.mxu0 %v2338
    %2948 = vmatprep.subr.bf16.mxu0 %v2331
    %2949 = vmatpush1.bf16.msra.mxu0 %v2330
    %2950 = vmatprep.subr.bf16.mxu0 %v2323
    %2951 = vmatpush1.bf16.msra.mxu0 %v2322
    %2952 = vmatprep.subr.bf16.mxu0 %v2443
    %2953 = vmatpush2.bf16.msra.mxu0 %v2442
    %2954 = vmatprep.subr.bf16.mxu0 %v2435
    %2955 = vmatpush2.bf16.msra.mxu0 %v2434
    %2956 = vmatprep.subr.bf16.mxu0 %v2427
    %2957 = vmatpush2.bf16.msra.mxu0 %v2426
    %2958 = vmatprep.subr.bf16.mxu0 %v2419
    %2959 = vmatpush2.bf16.msra.mxu0 %v2418
    %2960 = vmatprep.subr.bf16.mxu0 %v2411
    %2961 = vmatpush2.bf16.msra.mxu0 %v2410
    %2962 = vmatprep.subr.bf16.mxu0 %v2403
    %2963 = vmatpush2.bf16.msra.mxu0 %v2402
    %2964 = vmatprep.subr.bf16.mxu0 %v2395
    %2965 = vmatpush2.bf16.msra.mxu0 %v2394
    %2966 = vmatprep.subr.bf16.mxu0 %v2387
    %2967 = vmatpush2.bf16.msra.mxu0 %v2386
    %2968 = vmatprep.mubr.bf16.mxu0 %v152
    %2969 = vmatmul.mubr.bf16.gmra.mxu0 %v151
    %v2970 = vpop.f32.mrf.mxu0
    %v2971 = vadd.f32 %v2930, %v2970
    %v2972 = vpop.f32.mrf.mxu0
    %v2973 = vadd.f32 %v2932, %v2972
    %v2974 = vpop.f32.mrf.mxu0
    %v2975 = vpop.f32.mrf.mxu0
    %2976 = vdwg.mxu0
    %2977 = vmatprep.subr.bf16.mxu0 0
    %2978 = vmatpush1.bf16.msra.mxu0 0
    %2979 = vmatprep.subr.bf16.mxu0 0
    %2980 = vmatpush1.bf16.msra.mxu0 0
    %2981 = vmatprep.subr.bf16.mxu0 0
    %2982 = vmatpush1.bf16.msra.mxu0 0
    %2983 = vmatprep.subr.bf16.mxu0 0
    %2984 = vmatpush1.bf16.msra.mxu0 0
    %2985 = vmatprep.subr.bf16.mxu0 0
    %2986 = vmatpush1.bf16.msra.mxu0 0
    %2987 = vmatprep.subr.bf16.mxu0 0
    %2988 = vmatpush1.bf16.msra.mxu0 0
    %2989 = vmatprep.subr.bf16.mxu0 0
    %2990 = vmatpush1.bf16.msra.mxu0 0
    %2991 = vmatprep.subr.bf16.mxu0 %v2451
    %2992 = vmatpush1.bf16.msra.mxu0 %v2450
    %2993 = vmatprep.subr.bf16.mxu0 0
    %2994 = vmatpush2.bf16.msra.mxu0 0
    %2995 = vmatprep.subr.bf16.mxu0 0
    %2996 = vmatpush2.bf16.msra.mxu0 0
    %2997 = vmatprep.subr.bf16.mxu0 0
    %2998 = vmatpush2.bf16.msra.mxu0 0
    %2999 = vmatprep.subr.bf16.mxu0 0
    %3000 = vmatpush2.bf16.msra.mxu0 0
    %3001 = vmatprep.subr.bf16.mxu0 0
    %3002 = vmatpush2.bf16.msra.mxu0 0
    %3003 = vmatprep.subr.bf16.mxu0 0
    %3004 = vmatpush2.bf16.msra.mxu0 0
    %3005 = vmatprep.subr.bf16.mxu0 0
    %3006 = vmatpush2.bf16.msra.mxu0 0
    %3007 = vmatprep.subr.bf16.mxu0 0
    %3008 = vmatpush2.bf16.msra.mxu0 0
    %3009 = vmatprep.mubr.bf16.mxu0 0
    %3010 = vmatmul.mubr.bf16.gmra.mxu0 %v2852
    %v3011 = vpop.f32.mrf.mxu0
    %v3012 = vadd.f32 %v2971, %v3011
    %v3013 = vpop.f32.mrf.mxu0
    %v3014 = vadd.f32 %v2973, %v3013
    %v3015 = vpop.f32.mrf.mxu0
    %v3016 = vpop.f32.mrf.mxu0
    %3017 = vdwg.mxu0
    %3018 = vmatprep.subr.bf16.mxu0 %v2125
    %3019 = vmatpush1.bf16.msra.mxu0 %v2124
    %3020 = vmatprep.subr.bf16.mxu0 %v2117
    %3021 = vmatpush1.bf16.msra.mxu0 %v2116
    %3022 = vmatprep.subr.bf16.mxu0 %v2109
    %3023 = vmatpush1.bf16.msra.mxu0 %v2108
    %3024 = vmatprep.subr.bf16.mxu0 %v2101
    %3025 = vmatpush1.bf16.msra.mxu0 %v2100
    %3026 = vmatprep.subr.bf16.mxu0 %v2093
    %3027 = vmatpush1.bf16.msra.mxu0 %v2092
    %3028 = vmatprep.subr.bf16.mxu0 %v2085
    %3029 = vmatpush1.bf16.msra.mxu0 %v2084
    %3030 = vmatprep.subr.bf16.mxu0 %v2077
    %3031 = vmatpush1.bf16.msra.mxu0 %v2076
    %3032 = vmatprep.subr.bf16.mxu0 %v2069
    %3033 = vmatpush1.bf16.msra.mxu0 %v2068
    %3034 = vmatprep.subr.bf16.mxu0 %v2189
    %3035 = vmatpush2.bf16.msra.mxu0 %v2188
    %3036 = vmatprep.subr.bf16.mxu0 %v2181
    %3037 = vmatpush2.bf16.msra.mxu0 %v2180
    %3038 = vmatprep.subr.bf16.mxu0 %v2173
    %3039 = vmatpush2.bf16.msra.mxu0 %v2172
    %3040 = vmatprep.subr.bf16.mxu0 %v2165
    %3041 = vmatpush2.bf16.msra.mxu0 %v2164
    %3042 = vmatprep.subr.bf16.mxu0 %v2157
    %3043 = vmatpush2.bf16.msra.mxu0 %v2156
    %3044 = vmatprep.subr.bf16.mxu0 %v2149
    %3045 = vmatpush2.bf16.msra.mxu0 %v2148
    %3046 = vmatprep.subr.bf16.mxu0 %v2141
    %3047 = vmatpush2.bf16.msra.mxu0 %v2140
    %3048 = vmatprep.subr.bf16.mxu0 %v2133
    %3049 = vmatpush2.bf16.msra.mxu0 %v2132
    %3050 = vmatprep.mubr.bf16.mxu0 %v148
    %3051 = vmatmul.mubr.bf16.gmra.mxu0 %v147
    %v3052 = vpop.f32.mrf.mxu0
    %v3053 = vadd.f32 %v744, %v3052
    %v3054 = vpop.f32.mrf.mxu0
    %v3055 = vadd.f32 %v746, %v3054
    %v3056 = vpop.f32.mrf.mxu0
    %v3057 = vpop.f32.mrf.mxu0
    %3058 = vdwg.mxu0
    %3059 = vmatprep.subr.bf16.mxu0 %v2253
    %3060 = vmatpush1.bf16.msra.mxu0 %v2252
    %3061 = vmatprep.subr.bf16.mxu0 %v2245
    %3062 = vmatpush1.bf16.msra.mxu0 %v2244
    %3063 = vmatprep.subr.bf16.mxu0 %v2237
    %3064 = vmatpush1.bf16.msra.mxu0 %v2236
    %3065 = vmatprep.subr.bf16.mxu0 %v2229
    %3066 = vmatpush1.bf16.msra.mxu0 %v2228
    %3067 = vmatprep.subr.bf16.mxu0 %v2221
    %3068 = vmatpush1.bf16.msra.mxu0 %v2220
    %3069 = vmatprep.subr.bf16.mxu0 %v2213
    %3070 = vmatpush1.bf16.msra.mxu0 %v2212
    %3071 = vmatprep.subr.bf16.mxu0 %v2205
    %3072 = vmatpush1.bf16.msra.mxu0 %v2204
    %3073 = vmatprep.subr.bf16.mxu0 %v2197
    %3074 = vmatpush1.bf16.msra.mxu0 %v2196
    %3075 = vmatprep.subr.bf16.mxu0 %v2317
    %3076 = vmatpush2.bf16.msra.mxu0 %v2316
    %3077 = vmatprep.subr.bf16.mxu0 %v2309
    %3078 = vmatpush2.bf16.msra.mxu0 %v2308
    %3079 = vmatprep.subr.bf16.mxu0 %v2301
    %3080 = vmatpush2.bf16.msra.mxu0 %v2300
    %3081 = vmatprep.subr.bf16.mxu0 %v2293
    %3082 = vmatpush2.bf16.msra.mxu0 %v2292
    %3083 = vmatprep.subr.bf16.mxu0 %v2285
    %3084 = vmatpush2.bf16.msra.mxu0 %v2284
    %3085 = vmatprep.subr.bf16.mxu0 %v2277
    %3086 = vmatpush2.bf16.msra.mxu0 %v2276
    %3087 = vmatprep.subr.bf16.mxu0 %v2269
    %3088 = vmatpush2.bf16.msra.mxu0 %v2268
    %3089 = vmatprep.subr.bf16.mxu0 %v2261
    %3090 = vmatpush2.bf16.msra.mxu0 %v2260
    %3091 = vmatprep.mubr.bf16.mxu0 %v150
    %3092 = vmatmul.mubr.bf16.gmra.mxu0 %v149
    %v3093 = vpop.f32.mrf.mxu0
    %v3094 = vadd.f32 %v3053, %v3093
    %v3095 = vpop.f32.mrf.mxu0
    %v3096 = vadd.f32 %v3055, %v3095
    %v3097 = vpop.f32.mrf.mxu0
    %v3098 = vpop.f32.mrf.mxu0
    %3099 = vdwg.mxu0
    %3100 = vmatprep.subr.bf16.mxu0 %v2381
    %3101 = vmatpush1.bf16.msra.mxu0 %v2380
    %3102 = vmatprep.subr.bf16.mxu0 %v2373
    %3103 = vmatpush1.bf16.msra.mxu0 %v2372
    %3104 = vmatprep.subr.bf16.mxu0 %v2365
    %3105 = vmatpush1.bf16.msra.mxu0 %v2364
    %3106 = vmatprep.subr.bf16.mxu0 %v2357
    %3107 = vmatpush1.bf16.msra.mxu0 %v2356
    %3108 = vmatprep.subr.bf16.mxu0 %v2349
    %3109 = vmatpush1.bf16.msra.mxu0 %v2348
    %3110 = vmatprep.subr.bf16.mxu0 %v2341
    %3111 = vmatpush1.bf16.msra.mxu0 %v2340
    %3112 = vmatprep.subr.bf16.mxu0 %v2333
    %3113 = vmatpush1.bf16.msra.mxu0 %v2332
    %3114 = vmatprep.subr.bf16.mxu0 %v2325
    %3115 = vmatpush1.bf16.msra.mxu0 %v2324
    %3116 = vmatprep.subr.bf16.mxu0 %v2445
    %3117 = vmatpush2.bf16.msra.mxu0 %v2444
    %3118 = vmatprep.subr.bf16.mxu0 %v2437
    %3119 = vmatpush2.bf16.msra.mxu0 %v2436
    %3120 = vmatprep.subr.bf16.mxu0 %v2429
    %3121 = vmatpush2.bf16.msra.mxu0 %v2428
    %3122 = vmatprep.subr.bf16.mxu0 %v2421
    %3123 = vmatpush2.bf16.msra.mxu0 %v2420
    %3124 = vmatprep.subr.bf16.mxu0 %v2413
    %3125 = vmatpush2.bf16.msra.mxu0 %v2412
    %3126 = vmatprep.subr.bf16.mxu0 %v2405
    %3127 = vmatpush2.bf16.msra.mxu0 %v2404
    %3128 = vmatprep.subr.bf16.mxu0 %v2397
    %3129 = vmatpush2.bf16.msra.mxu0 %v2396
    %3130 = vmatprep.subr.bf16.mxu0 %v2389
    %3131 = vmatpush2.bf16.msra.mxu0 %v2388
    %3132 = vmatprep.mubr.bf16.mxu0 %v152
    %3133 = vmatmul.mubr.bf16.gmra.mxu0 %v151
    %v3134 = vpop.f32.mrf.mxu0
    %v3135 = vadd.f32 %v3094, %v3134
    %v3136 = vpop.f32.mrf.mxu0
    %v3137 = vadd.f32 %v3096, %v3136
    %v3138 = vpop.f32.mrf.mxu0
    %v3139 = vpop.f32.mrf.mxu0
    %3140 = vdwg.mxu0
    %3141 = vmatprep.subr.bf16.mxu0 0
    %3142 = vmatpush1.bf16.msra.mxu0 0
    %3143 = vmatprep.subr.bf16.mxu0 0
    %3144 = vmatpush1.bf16.msra.mxu0 0
    %3145 = vmatprep.subr.bf16.mxu0 0
    %3146 = vmatpush1.bf16.msra.mxu0 0
    %3147 = vmatprep.subr.bf16.mxu0 0
    %3148 = vmatpush1.bf16.msra.mxu0 0
    %3149 = vmatprep.subr.bf16.mxu0 0
    %3150 = vmatpush1.bf16.msra.mxu0 0
    %3151 = vmatprep.subr.bf16.mxu0 0
    %3152 = vmatpush1.bf16.msra.mxu0 0
    %3153 = vmatprep.subr.bf16.mxu0 0
    %3154 = vmatpush1.bf16.msra.mxu0 0
    %3155 = vmatprep.subr.bf16.mxu0 %v2453
    %3156 = vmatpush1.bf16.msra.mxu0 %v2452
    %3157 = vmatprep.subr.bf16.mxu0 0
    %3158 = vmatpush2.bf16.msra.mxu0 0
    %3159 = vmatprep.subr.bf16.mxu0 0
    %3160 = vmatpush2.bf16.msra.mxu0 0
    %3161 = vmatprep.subr.bf16.mxu0 0
    %3162 = vmatpush2.bf16.msra.mxu0 0
    %3163 = vmatprep.subr.bf16.mxu0 0
    %3164 = vmatpush2.bf16.msra.mxu0 0
    %3165 = vmatprep.subr.bf16.mxu0 0
    %3166 = vmatpush2.bf16.msra.mxu0 0
    %3167 = vmatprep.subr.bf16.mxu0 0
    %3168 = vmatpush2.bf16.msra.mxu0 0
    %3169 = vmatprep.subr.bf16.mxu0 0
    %3170 = vmatpush2.bf16.msra.mxu0 0
    %3171 = vmatprep.subr.bf16.mxu0 0
    %3172 = vmatpush2.bf16.msra.mxu0 0
    %3173 = vmatprep.mubr.bf16.mxu0 0
    %3174 = vmatmul.mubr.bf16.gmra.mxu0 %v2852
    %v3175 = vpop.f32.mrf.mxu0
    %v3176 = vadd.f32 %v3135, %v3175
    %v3177 = vpop.f32.mrf.mxu0
    %v3178 = vadd.f32 %v3137, %v3177
    %v3179 = vpop.f32.mrf.mxu0
    %v3180 = vpop.f32.mrf.mxu0
    %3181 = vdwg.mxu0
    %3182 = vmatprep.subr.bf16.mxu0 %v2127
    %3183 = vmatpush1.bf16.msra.mxu0 %v2126
    %3184 = vmatprep.subr.bf16.mxu0 %v2119
    %3185 = vmatpush1.bf16.msra.mxu0 %v2118
    %3186 = vmatprep.subr.bf16.mxu0 %v2111
    %3187 = vmatpush1.bf16.msra.mxu0 %v2110
    %3188 = vmatprep.subr.bf16.mxu0 %v2103
    %3189 = vmatpush1.bf16.msra.mxu0 %v2102
    %3190 = vmatprep.subr.bf16.mxu0 %v2095
    %3191 = vmatpush1.bf16.msra.mxu0 %v2094
    %3192 = vmatprep.subr.bf16.mxu0 %v2087
    %3193 = vmatpush1.bf16.msra.mxu0 %v2086
    %3194 = vmatprep.subr.bf16.mxu0 %v2079
    %3195 = vmatpush1.bf16.msra.mxu0 %v2078
    %3196 = vmatprep.subr.bf16.mxu0 %v2071
    %3197 = vmatpush1.bf16.msra.mxu0 %v2070
    %3198 = vmatprep.subr.bf16.mxu0 %v2191
    %3199 = vmatpush2.bf16.msra.mxu0 %v2190
    %3200 = vmatprep.subr.bf16.mxu0 %v2183
    %3201 = vmatpush2.bf16.msra.mxu0 %v2182
    %3202 = vmatprep.subr.bf16.mxu0 %v2175
    %3203 = vmatpush2.bf16.msra.mxu0 %v2174
    %3204 = vmatprep.subr.bf16.mxu0 %v2167
    %3205 = vmatpush2.bf16.msra.mxu0 %v2166
    %3206 = vmatprep.subr.bf16.mxu0 %v2159
    %3207 = vmatpush2.bf16.msra.mxu0 %v2158
    %3208 = vmatprep.subr.bf16.mxu0 %v2151
    %3209 = vmatpush2.bf16.msra.mxu0 %v2150
    %3210 = vmatprep.subr.bf16.mxu0 %v2143
    %3211 = vmatpush2.bf16.msra.mxu0 %v2142
    %3212 = vmatprep.subr.bf16.mxu0 %v2135
    %3213 = vmatpush2.bf16.msra.mxu0 %v2134
    %3214 = vmatprep.mubr.bf16.mxu0 %v148
    %3215 = vmatmul.mubr.bf16.gmra.mxu0 %v147
    %v3216 = vpop.f32.mrf.mxu0
    %v3217 = vadd.f32 %v815, %v3216
    %v3218 = vpop.f32.mrf.mxu0
    %v3219 = vadd.f32 %v817, %v3218
    %v3220 = vpop.f32.mrf.mxu0
    %v3221 = vpop.f32.mrf.mxu0
    %3222 = vdwg.mxu0
    %3223 = vmatprep.subr.bf16.mxu0 %v2255
    %3224 = vmatpush1.bf16.msra.mxu0 %v2254
    %3225 = vmatprep.subr.bf16.mxu0 %v2247
    %3226 = vmatpush1.bf16.msra.mxu0 %v2246
    %3227 = vmatprep.subr.bf16.mxu0 %v2239
    %3228 = vmatpush1.bf16.msra.mxu0 %v2238
    %3229 = vmatprep.subr.bf16.mxu0 %v2231
    %3230 = vmatpush1.bf16.msra.mxu0 %v2230
    %3231 = vmatprep.subr.bf16.mxu0 %v2223
    %3232 = vmatpush1.bf16.msra.mxu0 %v2222
    %3233 = vmatprep.subr.bf16.mxu0 %v2215
    %3234 = vmatpush1.bf16.msra.mxu0 %v2214
    %3235 = vmatprep.subr.bf16.mxu0 %v2207
    %3236 = vmatpush1.bf16.msra.mxu0 %v2206
    %3237 = vmatprep.subr.bf16.mxu0 %v2199
    %3238 = vmatpush1.bf16.msra.mxu0 %v2198
    %3239 = vmatprep.subr.bf16.mxu0 %v2319
    %3240 = vmatpush2.bf16.msra.mxu0 %v2318
    %3241 = vmatprep.subr.bf16.mxu0 %v2311
    %3242 = vmatpush2.bf16.msra.mxu0 %v2310
    %3243 = vmatprep.subr.bf16.mxu0 %v2303
    %3244 = vmatpush2.bf16.msra.mxu0 %v2302
    %3245 = vmatprep.subr.bf16.mxu0 %v2295
    %3246 = vmatpush2.bf16.msra.mxu0 %v2294
    %3247 = vmatprep.subr.bf16.mxu0 %v2287
    %3248 = vmatpush2.bf16.msra.mxu0 %v2286
    %3249 = vmatprep.subr.bf16.mxu0 %v2279
    %3250 = vmatpush2.bf16.msra.mxu0 %v2278
    %3251 = vmatprep.subr.bf16.mxu0 %v2271
    %3252 = vmatpush2.bf16.msra.mxu0 %v2270
    %3253 = vmatprep.subr.bf16.mxu0 %v2263
    %3254 = vmatpush2.bf16.msra.mxu0 %v2262
    %3255 = vmatprep.mubr.bf16.mxu0 %v150
    %3256 = vmatmul.mubr.bf16.gmra.mxu0 %v149
    %v3257 = vpop.f32.mrf.mxu0
    %v3258 = vadd.f32 %v3217, %v3257
    %v3259 = vpop.f32.mrf.mxu0
    %v3260 = vadd.f32 %v3219, %v3259
    %v3261 = vpop.f32.mrf.mxu0
    %v3262 = vpop.f32.mrf.mxu0
    %3263 = vdwg.mxu0
    %3264 = vmatprep.subr.bf16.mxu0 %v2383
    %3265 = vmatpush1.bf16.msra.mxu0 %v2382
    %3266 = vmatprep.subr.bf16.mxu0 %v2375
    %3267 = vmatpush1.bf16.msra.mxu0 %v2374
    %3268 = vmatprep.subr.bf16.mxu0 %v2367
    %3269 = vmatpush1.bf16.msra.mxu0 %v2366
    %3270 = vmatprep.subr.bf16.mxu0 %v2359
    %3271 = vmatpush1.bf16.msra.mxu0 %v2358
    %3272 = vmatprep.subr.bf16.mxu0 %v2351
    %3273 = vmatpush1.bf16.msra.mxu0 %v2350
    %3274 = vmatprep.subr.bf16.mxu0 %v2343
    %3275 = vmatpush1.bf16.msra.mxu0 %v2342
    %3276 = vmatprep.subr.bf16.mxu0 %v2335
    %3277 = vmatpush1.bf16.msra.mxu0 %v2334
    %3278 = vmatprep.subr.bf16.mxu0 %v2327
    %3279 = vmatpush1.bf16.msra.mxu0 %v2326
    %3280 = vmatprep.subr.bf16.mxu0 %v2447
    %3281 = vmatpush2.bf16.msra.mxu0 %v2446
    %3282 = vmatprep.subr.bf16.mxu0 %v2439
    %3283 = vmatpush2.bf16.msra.mxu0 %v2438
    %3284 = vmatprep.subr.bf16.mxu0 %v2431
    %3285 = vmatpush2.bf16.msra.mxu0 %v2430
    %3286 = vmatprep.subr.bf16.mxu0 %v2423
    %3287 = vmatpush2.bf16.msra.mxu0 %v2422
    %3288 = vmatprep.subr.bf16.mxu0 %v2415
    %3289 = vmatpush2.bf16.msra.mxu0 %v2414
    %3290 = vmatprep.subr.bf16.mxu0 %v2407
    %3291 = vmatpush2.bf16.msra.mxu0 %v2406
    %3292 = vmatprep.subr.bf16.mxu0 %v2399
    %3293 = vmatpush2.bf16.msra.mxu0 %v2398
    %3294 = vmatprep.subr.bf16.mxu0 %v2391
    %3295 = vmatpush2.bf16.msra.mxu0 %v2390
    %3296 = vmatprep.mubr.bf16.mxu0 %v152
    %3297 = vmatmul.mubr.bf16.gmra.mxu0 %v151
    %v3298 = vpop.f32.mrf.mxu0
    %v3299 = vadd.f32 %v3258, %v3298
    %v3300 = vpop.f32.mrf.mxu0
    %v3301 = vadd.f32 %v3260, %v3300
    %v3302 = vpop.f32.mrf.mxu0
    %v3303 = vpop.f32.mrf.mxu0
    %3304 = vdwg.mxu0
    %3305 = vmatprep.subr.bf16.mxu0 0
    %3306 = vmatpush1.bf16.msra.mxu0 0
    %3307 = vmatprep.subr.bf16.mxu0 0
    %3308 = vmatpush1.bf16.msra.mxu0 0
    %3309 = vmatprep.subr.bf16.mxu0 0
    %3310 = vmatpush1.bf16.msra.mxu0 0
    %3311 = vmatprep.subr.bf16.mxu0 0
    %3312 = vmatpush1.bf16.msra.mxu0 0
    %3313 = vmatprep.subr.bf16.mxu0 0
    %3314 = vmatpush1.bf16.msra.mxu0 0
    %3315 = vmatprep.subr.bf16.mxu0 0
    %3316 = vmatpush1.bf16.msra.mxu0 0
    %3317 = vmatprep.subr.bf16.mxu0 0
    %3318 = vmatpush1.bf16.msra.mxu0 0
    %3319 = vmatprep.subr.bf16.mxu0 %v2455
    %3320 = vmatpush1.bf16.msra.mxu0 %v2454
    %3321 = vmatprep.subr.bf16.mxu0 0
    %3322 = vmatpush2.bf16.msra.mxu0 0
    %3323 = vmatprep.subr.bf16.mxu0 0
    %3324 = vmatpush2.bf16.msra.mxu0 0
    %3325 = vmatprep.subr.bf16.mxu0 0
    %3326 = vmatpush2.bf16.msra.mxu0 0
    %3327 = vmatprep.subr.bf16.mxu0 0
    %3328 = vmatpush2.bf16.msra.mxu0 0
    %3329 = vmatprep.subr.bf16.mxu0 0
    %3330 = vmatpush2.bf16.msra.mxu0 0
    %3331 = vmatprep.subr.bf16.mxu0 0
    %3332 = vmatpush2.bf16.msra.mxu0 0
    %3333 = vmatprep.subr.bf16.mxu0 0
    %3334 = vmatpush2.bf16.msra.mxu0 0
    %3335 = vmatprep.subr.bf16.mxu0 0
    %3336 = vmatpush2.bf16.msra.mxu0 0
    %3337 = vmatprep.mubr.bf16.mxu0 0
    %3338 = vmatmul.mubr.bf16.gmra.mxu0 %v2852
    %v3339 = vpop.f32.mrf.mxu0
    %v3340 = vadd.f32 %v3299, %v3339
    %v3341 = vpop.f32.mrf.mxu0
    %v3342 = vadd.f32 %v3301, %v3341
    %v3343 = vpop.f32.mrf.mxu0
    %v3344 = vpop.f32.mrf.mxu0
    %3345 = vdwg.mxu0
    %3346 = vmatprep.subr.bf16.mxu0 %v2129
    %3347 = vmatpush1.bf16.msra.mxu0 %v2128
    %3348 = vmatprep.subr.bf16.mxu0 %v2121
    %3349 = vmatpush1.bf16.msra.mxu0 %v2120
    %3350 = vmatprep.subr.bf16.mxu0 %v2113
    %3351 = vmatpush1.bf16.msra.mxu0 %v2112
    %3352 = vmatprep.subr.bf16.mxu0 %v2105
    %3353 = vmatpush1.bf16.msra.mxu0 %v2104
    %3354 = vmatprep.subr.bf16.mxu0 %v2097
    %3355 = vmatpush1.bf16.msra.mxu0 %v2096
    %3356 = vmatprep.subr.bf16.mxu0 %v2089
    %3357 = vmatpush1.bf16.msra.mxu0 %v2088
    %3358 = vmatprep.subr.bf16.mxu0 %v2081
    %3359 = vmatpush1.bf16.msra.mxu0 %v2080
    %3360 = vmatprep.subr.bf16.mxu0 %v2073
    %3361 = vmatpush1.bf16.msra.mxu0 %v2072
    %3362 = vmatprep.subr.bf16.mxu0 %v2193
    %3363 = vmatpush2.bf16.msra.mxu0 %v2192
    %3364 = vmatprep.subr.bf16.mxu0 %v2185
    %3365 = vmatpush2.bf16.msra.mxu0 %v2184
    %3366 = vmatprep.subr.bf16.mxu0 %v2177
    %3367 = vmatpush2.bf16.msra.mxu0 %v2176
    %3368 = vmatprep.subr.bf16.mxu0 %v2169
    %3369 = vmatpush2.bf16.msra.mxu0 %v2168
    %3370 = vmatprep.subr.bf16.mxu0 %v2161
    %3371 = vmatpush2.bf16.msra.mxu0 %v2160
    %3372 = vmatprep.subr.bf16.mxu0 %v2153
    %3373 = vmatpush2.bf16.msra.mxu0 %v2152
    %3374 = vmatprep.subr.bf16.mxu0 %v2145
    %3375 = vmatpush2.bf16.msra.mxu0 %v2144
    %3376 = vmatprep.subr.bf16.mxu0 %v2137
    %3377 = vmatpush2.bf16.msra.mxu0 %v2136
    %3378 = vmatprep.mubr.bf16.mxu0 %v148
    %3379 = vmatmul.mubr.bf16.gmra.mxu0 %v147
    %v3380 = vpop.f32.mrf.mxu0
    %v3381 = vadd.f32 %v886, %v3380
    %v3382 = vpop.f32.mrf.mxu0
    %v3383 = vadd.f32 %v888, %v3382
    %v3384 = vpop.f32.mrf.mxu0
    %v3385 = vpop.f32.mrf.mxu0
    %3386 = vdwg.mxu0
    %3387 = vmatprep.subr.bf16.mxu0 %v2257
    %3388 = vmatpush1.bf16.msra.mxu0 %v2256
    %3389 = vmatprep.subr.bf16.mxu0 %v2249
    %3390 = vmatpush1.bf16.msra.mxu0 %v2248
    %3391 = vmatprep.subr.bf16.mxu0 %v2241
    %3392 = vmatpush1.bf16.msra.mxu0 %v2240
    %3393 = vmatprep.subr.bf16.mxu0 %v2233
    %3394 = vmatpush1.bf16.msra.mxu0 %v2232
    %3395 = vmatprep.subr.bf16.mxu0 %v2225
    %3396 = vmatpush1.bf16.msra.mxu0 %v2224
    %3397 = vmatprep.subr.bf16.mxu0 %v2217
    %3398 = vmatpush1.bf16.msra.mxu0 %v2216
    %3399 = vmatprep.subr.bf16.mxu0 %v2209
    %3400 = vmatpush1.bf16.msra.mxu0 %v2208
    %3401 = vmatprep.subr.bf16.mxu0 %v2201
    %3402 = vmatpush1.bf16.msra.mxu0 %v2200
    %3403 = vmatprep.subr.bf16.mxu0 %v2321
    %3404 = vmatpush2.bf16.msra.mxu0 %v2320
    %3405 = vmatprep.subr.bf16.mxu0 %v2313
    %3406 = vmatpush2.bf16.msra.mxu0 %v2312
    %3407 = vmatprep.subr.bf16.mxu0 %v2305
    %3408 = vmatpush2.bf16.msra.mxu0 %v2304
    %3409 = vmatprep.subr.bf16.mxu0 %v2297
    %3410 = vmatpush2.bf16.msra.mxu0 %v2296
    %3411 = vmatprep.subr.bf16.mxu0 %v2289
    %3412 = vmatpush2.bf16.msra.mxu0 %v2288
    %3413 = vmatprep.subr.bf16.mxu0 %v2281
    %3414 = vmatpush2.bf16.msra.mxu0 %v2280
    %3415 = vmatprep.subr.bf16.mxu0 %v2273
    %3416 = vmatpush2.bf16.msra.mxu0 %v2272
    %3417 = vmatprep.subr.bf16.mxu0 %v2265
    %3418 = vmatpush2.bf16.msra.mxu0 %v2264
    %3419 = vmatprep.mubr.bf16.mxu0 %v150
    %3420 = vmatmul.mubr.bf16.gmra.mxu0 %v149
    %v3421 = vpop.f32.mrf.mxu0
    %v3422 = vadd.f32 %v3381, %v3421
    %v3423 = vpop.f32.mrf.mxu0
    %v3424 = vadd.f32 %v3383, %v3423
    %v3425 = vpop.f32.mrf.mxu0
    %v3426 = vpop.f32.mrf.mxu0
    %3427 = vdwg.mxu0
    %3428 = vmatprep.subr.bf16.mxu0 %v2385
    %3429 = vmatpush1.bf16.msra.mxu0 %v2384
    %3430 = vmatprep.subr.bf16.mxu0 %v2377
    %3431 = vmatpush1.bf16.msra.mxu0 %v2376
    %3432 = vmatprep.subr.bf16.mxu0 %v2369
    %3433 = vmatpush1.bf16.msra.mxu0 %v2368
    %3434 = vmatprep.subr.bf16.mxu0 %v2361
    %3435 = vmatpush1.bf16.msra.mxu0 %v2360
    %3436 = vmatprep.subr.bf16.mxu0 %v2353
    %3437 = vmatpush1.bf16.msra.mxu0 %v2352
    %3438 = vmatprep.subr.bf16.mxu0 %v2345
    %3439 = vmatpush1.bf16.msra.mxu0 %v2344
    %3440 = vmatprep.subr.bf16.mxu0 %v2337
    %3441 = vmatpush1.bf16.msra.mxu0 %v2336
    %3442 = vmatprep.subr.bf16.mxu0 %v2329
    %3443 = vmatpush1.bf16.msra.mxu0 %v2328
    %3444 = vmatprep.subr.bf16.mxu0 %v2449
    %3445 = vmatpush2.bf16.msra.mxu0 %v2448
    %3446 = vmatprep.subr.bf16.mxu0 %v2441
    %3447 = vmatpush2.bf16.msra.mxu0 %v2440
    %3448 = vmatprep.subr.bf16.mxu0 %v2433
    %3449 = vmatpush2.bf16.msra.mxu0 %v2432
    %3450 = vmatprep.subr.bf16.mxu0 %v2425
    %3451 = vmatpush2.bf16.msra.mxu0 %v2424
    %3452 = vmatprep.subr.bf16.mxu0 %v2417
    %3453 = vmatpush2.bf16.msra.mxu0 %v2416
    %3454 = vmatprep.subr.bf16.mxu0 %v2409
    %3455 = vmatpush2.bf16.msra.mxu0 %v2408
    %3456 = vmatprep.subr.bf16.mxu0 %v2401
    %3457 = vmatpush2.bf16.msra.mxu0 %v2400
    %3458 = vmatprep.subr.bf16.mxu0 %v2393
    %3459 = vmatpush2.bf16.msra.mxu0 %v2392
    %3460 = vmatprep.mubr.bf16.mxu0 %v152
    %3461 = vmatmul.mubr.bf16.gmra.mxu0 %v151
    %v3462 = vpop.f32.mrf.mxu0
    %v3463 = vadd.f32 %v3422, %v3462
    %v3464 = vpop.f32.mrf.mxu0
    %v3465 = vadd.f32 %v3424, %v3464
    %v3466 = vpop.f32.mrf.mxu0
    %v3467 = vpop.f32.mrf.mxu0
    %3468 = vdwg.mxu0
    %3469 = vmatprep.subr.bf16.mxu0 0
    %3470 = vmatpush1.bf16.msra.mxu0 0
    %3471 = vmatprep.subr.bf16.mxu0 0
    %3472 = vmatpush1.bf16.msra.mxu0 0
    %3473 = vmatprep.subr.bf16.mxu0 0
    %3474 = vmatpush1.bf16.msra.mxu0 0
    %3475 = vmatprep.subr.bf16.mxu0 0
    %3476 = vmatpush1.bf16.msra.mxu0 0
    %3477 = vmatprep.subr.bf16.mxu0 0
    %3478 = vmatpush1.bf16.msra.mxu0 0
    %3479 = vmatprep.subr.bf16.mxu0 0
    %3480 = vmatpush1.bf16.msra.mxu0 0
    %3481 = vmatprep.subr.bf16.mxu0 0
    %3482 = vmatpush1.bf16.msra.mxu0 0
    %3483 = vmatprep.subr.bf16.mxu0 %v2457
    %3484 = vmatpush1.bf16.msra.mxu0 %v2456
    %3485 = vmatprep.subr.bf16.mxu0 0
    %3486 = vmatpush2.bf16.msra.mxu0 0
    %3487 = vmatprep.subr.bf16.mxu0 0
    %3488 = vmatpush2.bf16.msra.mxu0 0
    %3489 = vmatprep.subr.bf16.mxu0 0
    %3490 = vmatpush2.bf16.msra.mxu0 0
    %3491 = vmatprep.subr.bf16.mxu0 0
    %3492 = vmatpush2.bf16.msra.mxu0 0
    %3493 = vmatprep.subr.bf16.mxu0 0
    %3494 = vmatpush2.bf16.msra.mxu0 0
    %3495 = vmatprep.subr.bf16.mxu0 0
    %3496 = vmatpush2.bf16.msra.mxu0 0
    %3497 = vmatprep.subr.bf16.mxu0 0
    %3498 = vmatpush2.bf16.msra.mxu0 0
    %3499 = vmatprep.subr.bf16.mxu0 0
    %3500 = vmatpush2.bf16.msra.mxu0 0
    %3501 = vmatprep.mubr.bf16.mxu0 0
    %3502 = vmatmul.mubr.bf16.gmra.mxu0 %v2852
    %v3503 = vpop.f32.mrf.mxu0
    %v3504 = vadd.f32 %v3463, %v3503
    %v3505 = vpop.f32.mrf.mxu0
    %v3506 = vadd.f32 %v3465, %v3505
    %v3507 = vpop.f32.mrf.mxu0
    %v3508 = vpop.f32.mrf.mxu0
    %3509 = vdwg.mxu0
    %v3510 = vld [vmem:[#allocation7] sm:$0xff]
    %v3512 = vlaneseq
    %v3513 = vshrl.u32 %v3512, 7
    %v3514 = vsub.s32 0, %v3513
    %v3515 = vrot.slane %v3510, %v3514
    %v3516 = vlaneseq
    %v3517 = vshrl.u32 %v3516, 7
    %v3518 = vsub.s32 1, %v3517
    %v3519 = vrot.slane %v3510, %v3518
    %v3520 = vlaneseq
    %v3521 = vshrl.u32 %v3520, 7
    %v3522 = vsub.s32 2, %v3521
    %v3523 = vrot.slane %v3510, %v3522
    %v3524 = vlaneseq
    %v3525 = vshrl.u32 %v3524, 7
    %v3526 = vsub.s32 3, %v3525
    %v3527 = vrot.slane %v3510, %v3526
    %v3528 = vlaneseq
    %v3529 = vshrl.u32 %v3528, 7
    %v3530 = vsub.s32 4, %v3529
    %v3531 = vrot.slane %v3510, %v3530
    %v3532 = vlaneseq
    %v3533 = vshrl.u32 %v3532, 7
    %v3534 = vsub.s32 5, %v3533
    %v3535 = vrot.slane %v3510, %v3534
    %v3536 = vlaneseq
    %v3537 = vshrl.u32 %v3536, 7
    %v3538 = vsub.s32 6, %v3537
    %v3539 = vrot.slane %v3510, %v3538
    %v3540 = vlaneseq
    %v3541 = vshrl.u32 %v3540, 7
    %v3542 = vsub.s32 7, %v3541
    %v3543 = vrot.slane %v3510, %v3542
    %v3552 = vadd.f32 %v3012, %v3515
    %v3553 = vadd.f32 %v3014, %v3519
    %v3554 = vadd.f32 %v3176, %v3523
    %v3555 = vadd.f32 %v3178, %v3527
    %v3556 = vadd.f32 %v3340, %v3531
    %v3557 = vadd.f32 %v3342, %v3535
    %v3558 = vadd.f32 %v3504, %v3539
    %v3559 = vadd.f32 %v3506, %v3543
    %v3560 = vmax.f32 %v3552, 0.0
    %v3561 = vmax.f32 %v3553, 0.0
    %v3562 = vmax.f32 %v3554, 0.0
    %v3563 = vmax.f32 %v3555, 0.0
    %v3564 = vmax.f32 %v3556, 0.0
    %v3565 = vmax.f32 %v3557, 0.0
    %v3566 = vmax.f32 %v3558, 0.0
    %v3567 = vmax.f32 %v3559, 0.0
    %v3568 = vpack.c.bf16 %v3560, %v3560
    %v3569 = vpack.c.bf16 %v3561, %v3561
    %v3570 = vpack.c.bf16 %v3562, %v3562
    %v3571 = vpack.c.bf16 %v3563, %v3563
    %v3572 = vpack.c.bf16 %v3564, %v3564
    %v3573 = vpack.c.bf16 %v3565, %v3565
    %v3574 = vpack.c.bf16 %v3566, %v3566
    %v3575 = vpack.c.bf16 %v3567, %v3567
    %v3576 = vld [vmem:[#allocation8] sm:$0xff]
    %v3577 = vld [vmem:[#allocation8 + $0x8] sm:$0xff]
    %v3578 = vld [vmem:[#allocation8 + $0x10] sm:$0xff]
    %v3579 = vld [vmem:[#allocation8 + $0x18] sm:$0xff]
    %v3580 = vld [vmem:[#allocation8 + $0x20] sm:$0xff]
    %v3581 = vld [vmem:[#allocation8 + $0x28] sm:$0xff]
    %v3582 = vld [vmem:[#allocation8 + $0x30] sm:$0xff]
    %v3583 = vld [vmem:[#allocation8 + $0x38] sm:$0xff]
    %v3584 = vld [vmem:[#allocation8 + $0x40] sm:$0xff]
    %v3585 = vld [vmem:[#allocation8 + $0x48] sm:$0xff]
    %v3586 = vld [vmem:[#allocation8 + $0x50] sm:$0xff]
    %v3587 = vld [vmem:[#allocation8 + $0x58] sm:$0xff]
    %v3588 = vld [vmem:[#allocation8 + $0x60] sm:$0xff]
    %v3589 = vld [vmem:[#allocation8 + $0x68] sm:$0xff]
    %v3590 = vld [vmem:[#allocation8 + $0x70] sm:$0xff]
    %v3591 = vld [vmem:[#allocation8 + $0x78] sm:$0xff]
    %v3592 = vld [vmem:[#allocation8 + $0x80] sm:$0xff]
    %v3593 = vld [vmem:[#allocation8 + $0x88] sm:$0xff]
    %v3594 = vld [vmem:[#allocation8 + $0x90] sm:$0xff]
    %v3595 = vld [vmem:[#allocation8 + $0x98] sm:$0xff]
    %v3596 = vld [vmem:[#allocation8 + $0xa0] sm:$0xff]
    %v3597 = vld [vmem:[#allocation8 + $0xa8] sm:$0xff]
    %v3598 = vld [vmem:[#allocation8 + $0xb0] sm:$0xff]
    %v3599 = vld [vmem:[#allocation8 + $0xb8] sm:$0xff]
    %v3600 = vld [vmem:[#allocation8 + $0xc0] sm:$0xff]
    %v3601 = vld [vmem:[#allocation8 + $0xc8] sm:$0xff]
    %v3602 = vld [vmem:[#allocation8 + $0xd0] sm:$0xff]
    %v3603 = vld [vmem:[#allocation8 + $0xd8] sm:$0xff]
    %v3604 = vld [vmem:[#allocation8 + $0xe0] sm:$0xff]
    %v3605 = vld [vmem:[#allocation8 + $0xe8] sm:$0xff]
    %v3606 = vld [vmem:[#allocation8 + $0xf0] sm:$0xff]
    %v3607 = vld [vmem:[#allocation8 + $0xf8] sm:$0xff]
    %v3608 = vld [vmem:[#allocation8 + $0x100] sm:$0xff]
    %v3609 = vld [vmem:[#allocation8 + $0x108] sm:$0xff]
    %v3610 = vld [vmem:[#allocation8 + $0x110] sm:$0xff]
    %v3611 = vld [vmem:[#allocation8 + $0x118] sm:$0xff]
    %v3612 = vld [vmem:[#allocation8 + $0x120] sm:$0xff]
    %v3613 = vld [vmem:[#allocation8 + $0x128] sm:$0xff]
    %v3614 = vld [vmem:[#allocation8 + $0x130] sm:$0xff]
    %v3615 = vld [vmem:[#allocation8 + $0x138] sm:$0xff]
    %v3616 = vld [vmem:[#allocation8 + $0x140] sm:$0xff]
    %v3617 = vld [vmem:[#allocation8 + $0x148] sm:$0xff]
    %v3618 = vld [vmem:[#allocation8 + $0x150] sm:$0xff]
    %v3619 = vld [vmem:[#allocation8 + $0x158] sm:$0xff]
    %v3620 = vld [vmem:[#allocation8 + $0x160] sm:$0xff]
    %v3621 = vld [vmem:[#allocation8 + $0x168] sm:$0xff]
    %v3622 = vld [vmem:[#allocation8 + $0x170] sm:$0xff]
    %v3623 = vld [vmem:[#allocation8 + $0x178] sm:$0xff]
    %v3624 = vld [vmem:[#allocation8 + $0x180] sm:$0xff]
    %v3625 = vld [vmem:[#allocation8 + $0x188] sm:$0xff]
    %v3626 = vld [vmem:[#allocation8 + $0x190] sm:$0xff]
    %v3627 = vld [vmem:[#allocation8 + $0x198] sm:$0xff]
    %v3628 = vld [vmem:[#allocation8 + $0x1a0] sm:$0xff]
    %v3629 = vld [vmem:[#allocation8 + $0x1a8] sm:$0xff]
    %v3630 = vld [vmem:[#allocation8 + $0x1b0] sm:$0xff]
    %v3631 = vld [vmem:[#allocation8 + $0x1b8] sm:$0xff]
    %v3632 = vld [vmem:[#allocation8 + $0x1c0] sm:$0xff]
    %v3633 = vld [vmem:[#allocation8 + $0x1c8] sm:$0xff]
    %v3634 = vld [vmem:[#allocation8 + $0x1d0] sm:$0xff]
    %v3635 = vld [vmem:[#allocation8 + $0x1d8] sm:$0xff]
    %v3636 = vld [vmem:[#allocation8 + $0x1e0] sm:$0xff]
    %v3637 = vld [vmem:[#allocation8 + $0x1e8] sm:$0xff]
    %v3638 = vld [vmem:[#allocation8 + $0x1f0] sm:$0xff]
    %v3639 = vld [vmem:[#allocation8 + $0x1f8] sm:$0xff]
    %v3640 = vld [vmem:[#allocation8 + $0x200] sm:$0xff]
    %v3641 = vld [vmem:[#allocation8 + $0x208] sm:$0xff]
    %v3642 = vld [vmem:[#allocation8 + $0x210] sm:$0xff]
    %v3643 = vld [vmem:[#allocation8 + $0x218] sm:$0xff]
    %v3644 = vld [vmem:[#allocation8 + $0x220] sm:$0xff]
    %v3645 = vld [vmem:[#allocation8 + $0x228] sm:$0xff]
    %v3646 = vld [vmem:[#allocation8 + $0x230] sm:$0xff]
    %v3647 = vld [vmem:[#allocation8 + $0x238] sm:$0xff]
    %v3648 = vld [vmem:[#allocation8 + $0x240] sm:$0xff]
    %v3649 = vld [vmem:[#allocation8 + $0x248] sm:$0xff]
    %v3650 = vld [vmem:[#allocation8 + $0x250] sm:$0xff]
    %v3651 = vld [vmem:[#allocation8 + $0x258] sm:$0xff]
    %v3652 = vld [vmem:[#allocation8 + $0x260] sm:$0xff]
    %v3653 = vld [vmem:[#allocation8 + $0x268] sm:$0xff]
    %v3654 = vld [vmem:[#allocation8 + $0x270] sm:$0xff]
    %v3655 = vld [vmem:[#allocation8 + $0x278] sm:$0xff]
    %v3656 = vld [vmem:[#allocation8 + $0x280] sm:$0xff]
    %v3657 = vld [vmem:[#allocation8 + $0x288] sm:$0xff]
    %v3658 = vld [vmem:[#allocation8 + $0x290] sm:$0xff]
    %v3659 = vld [vmem:[#allocation8 + $0x298] sm:$0xff]
    %v3660 = vld [vmem:[#allocation8 + $0x2a0] sm:$0xff]
    %v3661 = vld [vmem:[#allocation8 + $0x2a8] sm:$0xff]
    %v3662 = vld [vmem:[#allocation8 + $0x2b0] sm:$0xff]
    %v3663 = vld [vmem:[#allocation8 + $0x2b8] sm:$0xff]
    %v3664 = vld [vmem:[#allocation8 + $0x2c0] sm:$0xff]
    %v3665 = vld [vmem:[#allocation8 + $0x2c8] sm:$0xff]
    %v3666 = vld [vmem:[#allocation8 + $0x2d0] sm:$0xff]
    %v3667 = vld [vmem:[#allocation8 + $0x2d8] sm:$0xff]
    %v3668 = vld [vmem:[#allocation8 + $0x2e0] sm:$0xff]
    %v3669 = vld [vmem:[#allocation8 + $0x2e8] sm:$0xff]
    %v3670 = vld [vmem:[#allocation8 + $0x2f0] sm:$0xff]
    %v3671 = vld [vmem:[#allocation8 + $0x2f8] sm:$0xff]
    %v3672 = vld [vmem:[#allocation8 + $0x300] sm:$0xff]
    %v3673 = vld [vmem:[#allocation8 + $0x308] sm:$0xff]
    %v3674 = vld [vmem:[#allocation8 + $0x310] sm:$0xff]
    %v3675 = vld [vmem:[#allocation8 + $0x318] sm:$0xff]
    %v3676 = vld [vmem:[#allocation8 + $0x320] sm:$0xff]
    %v3677 = vld [vmem:[#allocation8 + $0x328] sm:$0xff]
    %v3678 = vld [vmem:[#allocation8 + $0x330] sm:$0xff]
    %v3679 = vld [vmem:[#allocation8 + $0x338] sm:$0xff]
    %v3680 = vld [vmem:[#allocation8 + $0x340] sm:$0xff]
    %v3681 = vld [vmem:[#allocation8 + $0x348] sm:$0xff]
    %v3682 = vld [vmem:[#allocation8 + $0x350] sm:$0xff]
    %v3683 = vld [vmem:[#allocation8 + $0x358] sm:$0xff]
    %v3684 = vld [vmem:[#allocation8 + $0x360] sm:$0xff]
    %v3685 = vld [vmem:[#allocation8 + $0x368] sm:$0xff]
    %v3686 = vld [vmem:[#allocation8 + $0x370] sm:$0xff]
    %v3687 = vld [vmem:[#allocation8 + $0x378] sm:$0xff]
    %v3688 = vld [vmem:[#allocation8 + $0x380] sm:$0xff]
    %v3689 = vld [vmem:[#allocation8 + $0x388] sm:$0xff]
    %v3690 = vld [vmem:[#allocation8 + $0x390] sm:$0xff]
    %v3691 = vld [vmem:[#allocation8 + $0x398] sm:$0xff]
    %v3692 = vld [vmem:[#allocation8 + $0x3a0] sm:$0xff]
    %v3693 = vld [vmem:[#allocation8 + $0x3a8] sm:$0xff]
    %v3694 = vld [vmem:[#allocation8 + $0x3b0] sm:$0xff]
    %v3695 = vld [vmem:[#allocation8 + $0x3b8] sm:$0xff]
    %v3696 = vld [vmem:[#allocation8 + $0x3c0] sm:$0xff]
    %v3697 = vld [vmem:[#allocation8 + $0x3c8] sm:$0xff]
    %v3698 = vld [vmem:[#allocation8 + $0x3d0] sm:$0xff]
    %v3699 = vld [vmem:[#allocation8 + $0x3d8] sm:$0xff]
    %v3700 = vld [vmem:[#allocation8 + $0x3e0] sm:$0xff]
    %v3701 = vld [vmem:[#allocation8 + $0x3e8] sm:$0xff]
    %v3702 = vld [vmem:[#allocation8 + $0x3f0] sm:$0xff]
    %v3703 = vld [vmem:[#allocation8 + $0x3f8] sm:$0xff]
    %v3704 = vld [vmem:[#allocation8 + $0x400] sm:$0xff]
    %v3705 = vld [vmem:[#allocation8 + $0x408] sm:$0xff]
    %v3706 = vld [vmem:[#allocation8 + $0x410] sm:$0xff]
    %v3707 = vld [vmem:[#allocation8 + $0x418] sm:$0xff]
    %v3708 = vld [vmem:[#allocation8 + $0x420] sm:$0xff]
    %v3709 = vld [vmem:[#allocation8 + $0x428] sm:$0xff]
    %v3710 = vld [vmem:[#allocation8 + $0x430] sm:$0xff]
    %v3711 = vld [vmem:[#allocation8 + $0x438] sm:$0xff]
    %v3712 = vld [vmem:[#allocation8 + $0x440] sm:$0xff]
    %v3713 = vld [vmem:[#allocation8 + $0x448] sm:$0xff]
    %v3714 = vld [vmem:[#allocation8 + $0x450] sm:$0xff]
    %v3715 = vld [vmem:[#allocation8 + $0x458] sm:$0xff]
    %v3716 = vld [vmem:[#allocation8 + $0x460] sm:$0xff]
    %v3717 = vld [vmem:[#allocation8 + $0x468] sm:$0xff]
    %v3718 = vld [vmem:[#allocation8 + $0x470] sm:$0xff]
    %v3719 = vld [vmem:[#allocation8 + $0x478] sm:$0xff]
    %v3720 = vld [vmem:[#allocation8 + $0x480] sm:$0xff]
    %v3721 = vld [vmem:[#allocation8 + $0x488] sm:$0xff]
    %v3722 = vld [vmem:[#allocation8 + $0x490] sm:$0xff]
    %v3723 = vld [vmem:[#allocation8 + $0x498] sm:$0xff]
    %v3724 = vld [vmem:[#allocation8 + $0x4a0] sm:$0xff]
    %v3725 = vld [vmem:[#allocation8 + $0x4a8] sm:$0xff]
    %v3726 = vld [vmem:[#allocation8 + $0x4b0] sm:$0xff]
    %v3727 = vld [vmem:[#allocation8 + $0x4b8] sm:$0xff]
    %v3728 = vld [vmem:[#allocation8 + $0x4c0] sm:$0xff]
    %v3729 = vld [vmem:[#allocation8 + $0x4c8] sm:$0xff]
    %v3730 = vld [vmem:[#allocation8 + $0x4d0] sm:$0xff]
    %v3731 = vld [vmem:[#allocation8 + $0x4d8] sm:$0xff]
    %v3732 = vld [vmem:[#allocation8 + $0x4e0] sm:$0xff]
    %v3733 = vld [vmem:[#allocation8 + $0x4e8] sm:$0xff]
    %v3734 = vld [vmem:[#allocation8 + $0x4f0] sm:$0xff]
    %v3735 = vld [vmem:[#allocation8 + $0x4f8] sm:$0xff]
    %v3736 = vld [vmem:[#allocation8 + $0x500] sm:$0xff]
    %v3737 = vld [vmem:[#allocation8 + $0x508] sm:$0xff]
    %v3738 = vld [vmem:[#allocation8 + $0x510] sm:$0xff]
    %v3739 = vld [vmem:[#allocation8 + $0x518] sm:$0xff]
    %v3740 = vld [vmem:[#allocation8 + $0x520] sm:$0xff]
    %v3741 = vld [vmem:[#allocation8 + $0x528] sm:$0xff]
    %v3742 = vld [vmem:[#allocation8 + $0x530] sm:$0xff]
    %v3743 = vld [vmem:[#allocation8 + $0x538] sm:$0xff]
    %v3744 = vld [vmem:[#allocation8 + $0x540] sm:$0xff]
    %v3745 = vld [vmem:[#allocation8 + $0x548] sm:$0xff]
    %v3746 = vld [vmem:[#allocation8 + $0x550] sm:$0xff]
    %v3747 = vld [vmem:[#allocation8 + $0x558] sm:$0xff]
    %v3748 = vld [vmem:[#allocation8 + $0x560] sm:$0xff]
    %v3749 = vld [vmem:[#allocation8 + $0x568] sm:$0xff]
    %v3750 = vld [vmem:[#allocation8 + $0x570] sm:$0xff]
    %v3751 = vld [vmem:[#allocation8 + $0x578] sm:$0xff]
    %v3752 = vld [vmem:[#allocation8 + $0x580] sm:$0xff]
    %v3753 = vld [vmem:[#allocation8 + $0x588] sm:$0xff]
    %v3754 = vld [vmem:[#allocation8 + $0x590] sm:$0xff]
    %v3755 = vld [vmem:[#allocation8 + $0x598] sm:$0xff]
    %v3756 = vld [vmem:[#allocation8 + $0x5a0] sm:$0xff]
    %v3757 = vld [vmem:[#allocation8 + $0x5a8] sm:$0xff]
    %v3758 = vld [vmem:[#allocation8 + $0x5b0] sm:$0xff]
    %v3759 = vld [vmem:[#allocation8 + $0x5b8] sm:$0xff]
    %v3760 = vld [vmem:[#allocation8 + $0x5c0] sm:$0xff]
    %v3761 = vld [vmem:[#allocation8 + $0x5c8] sm:$0xff]
    %v3762 = vld [vmem:[#allocation8 + $0x5d0] sm:$0xff]
    %v3763 = vld [vmem:[#allocation8 + $0x5d8] sm:$0xff]
    %v3764 = vld [vmem:[#allocation8 + $0x5e0] sm:$0xff]
    %v3765 = vld [vmem:[#allocation8 + $0x5e8] sm:$0xff]
    %v3766 = vld [vmem:[#allocation8 + $0x5f0] sm:$0xff]
    %v3767 = vld [vmem:[#allocation8 + $0x5f8] sm:$0xff]
    %v3768 = vld [vmem:[#allocation8 + $0x600] sm:$0xff]
    %v3769 = vld [vmem:[#allocation8 + $0x608] sm:$0xff]
    %v3770 = vld [vmem:[#allocation8 + $0x610] sm:$0xff]
    %v3771 = vld [vmem:[#allocation8 + $0x618] sm:$0xff]
    %v3772 = vld [vmem:[#allocation8 + $0x620] sm:$0xff]
    %v3773 = vld [vmem:[#allocation8 + $0x628] sm:$0xff]
    %v3774 = vld [vmem:[#allocation8 + $0x630] sm:$0xff]
    %v3775 = vld [vmem:[#allocation8 + $0x638] sm:$0xff]
    %v3776 = vld [vmem:[#allocation8 + $0x640] sm:$0xff]
    %v3777 = vld [vmem:[#allocation8 + $0x648] sm:$0xff]
    %v3778 = vld [vmem:[#allocation8 + $0x650] sm:$0xff]
    %v3779 = vld [vmem:[#allocation8 + $0x658] sm:$0xff]
    %v3780 = vld [vmem:[#allocation8 + $0x660] sm:$0xff]
    %v3781 = vld [vmem:[#allocation8 + $0x668] sm:$0xff]
    %v3782 = vld [vmem:[#allocation8 + $0x670] sm:$0xff]
    %v3783 = vld [vmem:[#allocation8 + $0x678] sm:$0xff]
    %v3784 = vld [vmem:[#allocation8 + $0x680] sm:$0xff]
    %v3785 = vld [vmem:[#allocation8 + $0x688] sm:$0xff]
    %v3786 = vld [vmem:[#allocation8 + $0x690] sm:$0xff]
    %v3787 = vld [vmem:[#allocation8 + $0x698] sm:$0xff]
    %v3788 = vld [vmem:[#allocation8 + $0x6a0] sm:$0xff]
    %v3789 = vld [vmem:[#allocation8 + $0x6a8] sm:$0xff]
    %v3790 = vld [vmem:[#allocation8 + $0x6b0] sm:$0xff]
    %v3791 = vld [vmem:[#allocation8 + $0x6b8] sm:$0xff]
    %v3792 = vld [vmem:[#allocation8 + $0x6c0] sm:$0xff]
    %v3793 = vld [vmem:[#allocation8 + $0x6c8] sm:$0xff]
    %v3794 = vld [vmem:[#allocation8 + $0x6d0] sm:$0xff]
    %v3795 = vld [vmem:[#allocation8 + $0x6d8] sm:$0xff]
    %v3796 = vld [vmem:[#allocation8 + $0x6e0] sm:$0xff]
    %v3797 = vld [vmem:[#allocation8 + $0x6e8] sm:$0xff]
    %v3798 = vld [vmem:[#allocation8 + $0x6f0] sm:$0xff]
    %v3799 = vld [vmem:[#allocation8 + $0x6f8] sm:$0xff]
    %v3800 = vld [vmem:[#allocation8 + $0x700] sm:$0xff]
    %v3801 = vld [vmem:[#allocation8 + $0x708] sm:$0xff]
    %v3802 = vld [vmem:[#allocation8 + $0x710] sm:$0xff]
    %v3803 = vld [vmem:[#allocation8 + $0x718] sm:$0xff]
    %v3804 = vld [vmem:[#allocation8 + $0x720] sm:$0xff]
    %v3805 = vld [vmem:[#allocation8 + $0x728] sm:$0xff]
    %v3806 = vld [vmem:[#allocation8 + $0x730] sm:$0xff]
    %v3807 = vld [vmem:[#allocation8 + $0x738] sm:$0xff]
    %v3808 = vld [vmem:[#allocation8 + $0x740] sm:$0xff]
    %v3809 = vld [vmem:[#allocation8 + $0x748] sm:$0xff]
    %v3810 = vld [vmem:[#allocation8 + $0x750] sm:$0xff]
    %v3811 = vld [vmem:[#allocation8 + $0x758] sm:$0xff]
    %v3812 = vld [vmem:[#allocation8 + $0x760] sm:$0xff]
    %v3813 = vld [vmem:[#allocation8 + $0x768] sm:$0xff]
    %v3814 = vld [vmem:[#allocation8 + $0x770] sm:$0xff]
    %v3815 = vld [vmem:[#allocation8 + $0x778] sm:$0xff]
    %v3816 = vld [vmem:[#allocation8 + $0x780] sm:$0xff]
    %v3817 = vld [vmem:[#allocation8 + $0x788] sm:$0xff]
    %v3818 = vld [vmem:[#allocation8 + $0x790] sm:$0xff]
    %v3819 = vld [vmem:[#allocation8 + $0x798] sm:$0xff]
    %v3820 = vld [vmem:[#allocation8 + $0x7a0] sm:$0xff]
    %v3821 = vld [vmem:[#allocation8 + $0x7a8] sm:$0xff]
    %v3822 = vld [vmem:[#allocation8 + $0x7b0] sm:$0xff]
    %v3823 = vld [vmem:[#allocation8 + $0x7b8] sm:$0xff]
    %v3824 = vld [vmem:[#allocation8 + $0x7c0] sm:$0xff]
    %v3825 = vld [vmem:[#allocation8 + $0x7c8] sm:$0xff]
    %v3826 = vld [vmem:[#allocation8 + $0x7d0] sm:$0xff]
    %v3827 = vld [vmem:[#allocation8 + $0x7d8] sm:$0xff]
    %v3828 = vld [vmem:[#allocation8 + $0x7e0] sm:$0xff]
    %v3829 = vld [vmem:[#allocation8 + $0x7e8] sm:$0xff]
    %v3830 = vld [vmem:[#allocation8 + $0x7f0] sm:$0xff]
    %v3831 = vld [vmem:[#allocation8 + $0x7f8] sm:$0xff]
    %v3832 = vld [vmem:[#allocation10] sm:$0xf]
    %v3834 = vlaneseq
    %v3835 = vshrl.u32 %v3834, 7
    %v3836 = vsub.s32 0, %v3835
    %v3837 = vrot.slane %v3832, %v3836
    %v3838 = vlaneseq
    %v3839 = vshrl.u32 %v3838, 7
    %v3840 = vsub.s32 1, %v3839
    %v3841 = vrot.slane %v3832, %v3840
    %v3842 = vlaneseq
    %v3843 = vshrl.u32 %v3842, 7
    %v3844 = vsub.s32 2, %v3843
    %v3845 = vrot.slane %v3832, %v3844
    %v3846 = vlaneseq
    %v3847 = vshrl.u32 %v3846, 7
    %v3848 = vsub.s32 3, %v3847
    %v3849 = vrot.slane %v3832, %v3848
    %v4110 = vunpack.c.l.b16 %v3576
    %v4111 = vunpack.c.h.b16 %v3576
    %v4112 = vunpack.c.l.b16 %v3577
    %v4113 = vunpack.c.h.b16 %v3577
    %v4114 = vunpack.c.l.b16 %v3578
    %v4115 = vunpack.c.h.b16 %v3578
    %v4116 = vunpack.c.l.b16 %v3579
    %v4117 = vunpack.c.h.b16 %v3579
    %v4118 = vunpack.c.l.b16 %v3580
    %v4119 = vunpack.c.h.b16 %v3580
    %v4120 = vunpack.c.l.b16 %v3581
    %v4121 = vunpack.c.h.b16 %v3581
    %v4122 = vunpack.c.l.b16 %v3582
    %v4123 = vunpack.c.h.b16 %v3582
    %v4124 = vunpack.c.l.b16 %v3583
    %v4125 = vunpack.c.h.b16 %v3583
    %v4126 = vunpack.c.l.b16 %v3584
    %v4127 = vunpack.c.h.b16 %v3584
    %v4128 = vunpack.c.l.b16 %v3585
    %v4129 = vunpack.c.h.b16 %v3585
    %v4130 = vunpack.c.l.b16 %v3586
    %v4131 = vunpack.c.h.b16 %v3586
    %v4132 = vunpack.c.l.b16 %v3587
    %v4133 = vunpack.c.h.b16 %v3587
    %v4134 = vunpack.c.l.b16 %v3588
    %v4135 = vunpack.c.h.b16 %v3588
    %v4136 = vunpack.c.l.b16 %v3589
    %v4137 = vunpack.c.h.b16 %v3589
    %v4138 = vunpack.c.l.b16 %v3590
    %v4139 = vunpack.c.h.b16 %v3590
    %v4140 = vunpack.c.l.b16 %v3591
    %v4141 = vunpack.c.h.b16 %v3591
    %v4142 = vunpack.c.l.b16 %v3592
    %v4143 = vunpack.c.h.b16 %v3592
    %v4144 = vunpack.c.l.b16 %v3593
    %v4145 = vunpack.c.h.b16 %v3593
    %v4146 = vunpack.c.l.b16 %v3594
    %v4147 = vunpack.c.h.b16 %v3594
    %v4148 = vunpack.c.l.b16 %v3595
    %v4149 = vunpack.c.h.b16 %v3595
    %v4150 = vunpack.c.l.b16 %v3596
    %v4151 = vunpack.c.h.b16 %v3596
    %v4152 = vunpack.c.l.b16 %v3597
    %v4153 = vunpack.c.h.b16 %v3597
    %v4154 = vunpack.c.l.b16 %v3598
    %v4155 = vunpack.c.h.b16 %v3598
    %v4156 = vunpack.c.l.b16 %v3599
    %v4157 = vunpack.c.h.b16 %v3599
    %v4158 = vunpack.c.l.b16 %v3600
    %v4159 = vunpack.c.h.b16 %v3600
    %v4160 = vunpack.c.l.b16 %v3601
    %v4161 = vunpack.c.h.b16 %v3601
    %v4162 = vunpack.c.l.b16 %v3602
    %v4163 = vunpack.c.h.b16 %v3602
    %v4164 = vunpack.c.l.b16 %v3603
    %v4165 = vunpack.c.h.b16 %v3603
    %v4166 = vunpack.c.l.b16 %v3604
    %v4167 = vunpack.c.h.b16 %v3604
    %v4168 = vunpack.c.l.b16 %v3605
    %v4169 = vunpack.c.h.b16 %v3605
    %v4170 = vunpack.c.l.b16 %v3606
    %v4171 = vunpack.c.h.b16 %v3606
    %v4172 = vunpack.c.l.b16 %v3607
    %v4173 = vunpack.c.h.b16 %v3607
    %v4174 = vunpack.c.l.b16 %v3608
    %v4175 = vunpack.c.h.b16 %v3608
    %v4176 = vunpack.c.l.b16 %v3609
    %v4177 = vunpack.c.h.b16 %v3609
    %v4178 = vunpack.c.l.b16 %v3610
    %v4179 = vunpack.c.h.b16 %v3610
    %v4180 = vunpack.c.l.b16 %v3611
    %v4181 = vunpack.c.h.b16 %v3611
    %v4182 = vunpack.c.l.b16 %v3612
    %v4183 = vunpack.c.h.b16 %v3612
    %v4184 = vunpack.c.l.b16 %v3613
    %v4185 = vunpack.c.h.b16 %v3613
    %v4186 = vunpack.c.l.b16 %v3614
    %v4187 = vunpack.c.h.b16 %v3614
    %v4188 = vunpack.c.l.b16 %v3615
    %v4189 = vunpack.c.h.b16 %v3615
    %v4190 = vunpack.c.l.b16 %v3616
    %v4191 = vunpack.c.h.b16 %v3616
    %v4192 = vunpack.c.l.b16 %v3617
    %v4193 = vunpack.c.h.b16 %v3617
    %v4194 = vunpack.c.l.b16 %v3618
    %v4195 = vunpack.c.h.b16 %v3618
    %v4196 = vunpack.c.l.b16 %v3619
    %v4197 = vunpack.c.h.b16 %v3619
    %v4198 = vunpack.c.l.b16 %v3620
    %v4199 = vunpack.c.h.b16 %v3620
    %v4200 = vunpack.c.l.b16 %v3621
    %v4201 = vunpack.c.h.b16 %v3621
    %v4202 = vunpack.c.l.b16 %v3622
    %v4203 = vunpack.c.h.b16 %v3622
    %v4204 = vunpack.c.l.b16 %v3623
    %v4205 = vunpack.c.h.b16 %v3623
    %v4206 = vunpack.c.l.b16 %v3624
    %v4207 = vunpack.c.h.b16 %v3624
    %v4208 = vunpack.c.l.b16 %v3625
    %v4209 = vunpack.c.h.b16 %v3625
    %v4210 = vunpack.c.l.b16 %v3626
    %v4211 = vunpack.c.h.b16 %v3626
    %v4212 = vunpack.c.l.b16 %v3627
    %v4213 = vunpack.c.h.b16 %v3627
    %v4214 = vunpack.c.l.b16 %v3628
    %v4215 = vunpack.c.h.b16 %v3628
    %v4216 = vunpack.c.l.b16 %v3629
    %v4217 = vunpack.c.h.b16 %v3629
    %v4218 = vunpack.c.l.b16 %v3630
    %v4219 = vunpack.c.h.b16 %v3630
    %v4220 = vunpack.c.l.b16 %v3631
    %v4221 = vunpack.c.h.b16 %v3631
    %v4222 = vunpack.c.l.b16 %v3632
    %v4223 = vunpack.c.h.b16 %v3632
    %v4224 = vunpack.c.l.b16 %v3633
    %v4225 = vunpack.c.h.b16 %v3633
    %v4226 = vunpack.c.l.b16 %v3634
    %v4227 = vunpack.c.h.b16 %v3634
    %v4228 = vunpack.c.l.b16 %v3635
    %v4229 = vunpack.c.h.b16 %v3635
    %v4230 = vunpack.c.l.b16 %v3636
    %v4231 = vunpack.c.h.b16 %v3636
    %v4232 = vunpack.c.l.b16 %v3637
    %v4233 = vunpack.c.h.b16 %v3637
    %v4234 = vunpack.c.l.b16 %v3638
    %v4235 = vunpack.c.h.b16 %v3638
    %v4236 = vunpack.c.l.b16 %v3639
    %v4237 = vunpack.c.h.b16 %v3639
    %v4238 = vunpack.c.l.b16 %v3640
    %v4239 = vunpack.c.h.b16 %v3640
    %v4240 = vunpack.c.l.b16 %v3641
    %v4241 = vunpack.c.h.b16 %v3641
    %v4242 = vunpack.c.l.b16 %v3642
    %v4243 = vunpack.c.h.b16 %v3642
    %v4244 = vunpack.c.l.b16 %v3643
    %v4245 = vunpack.c.h.b16 %v3643
    %v4246 = vunpack.c.l.b16 %v3644
    %v4247 = vunpack.c.h.b16 %v3644
    %v4248 = vunpack.c.l.b16 %v3645
    %v4249 = vunpack.c.h.b16 %v3645
    %v4250 = vunpack.c.l.b16 %v3646
    %v4251 = vunpack.c.h.b16 %v3646
    %v4252 = vunpack.c.l.b16 %v3647
    %v4253 = vunpack.c.h.b16 %v3647
    %v4254 = vunpack.c.l.b16 %v3648
    %v4255 = vunpack.c.h.b16 %v3648
    %v4256 = vunpack.c.l.b16 %v3649
    %v4257 = vunpack.c.h.b16 %v3649
    %v4258 = vunpack.c.l.b16 %v3650
    %v4259 = vunpack.c.h.b16 %v3650
    %v4260 = vunpack.c.l.b16 %v3651
    %v4261 = vunpack.c.h.b16 %v3651
    %v4262 = vunpack.c.l.b16 %v3652
    %v4263 = vunpack.c.h.b16 %v3652
    %v4264 = vunpack.c.l.b16 %v3653
    %v4265 = vunpack.c.h.b16 %v3653
    %v4266 = vunpack.c.l.b16 %v3654
    %v4267 = vunpack.c.h.b16 %v3654
    %v4268 = vunpack.c.l.b16 %v3655
    %v4269 = vunpack.c.h.b16 %v3655
    %v4270 = vunpack.c.l.b16 %v3656
    %v4271 = vunpack.c.h.b16 %v3656
    %v4272 = vunpack.c.l.b16 %v3657
    %v4273 = vunpack.c.h.b16 %v3657
    %v4274 = vunpack.c.l.b16 %v3658
    %v4275 = vunpack.c.h.b16 %v3658
    %v4276 = vunpack.c.l.b16 %v3659
    %v4277 = vunpack.c.h.b16 %v3659
    %v4278 = vunpack.c.l.b16 %v3660
    %v4279 = vunpack.c.h.b16 %v3660
    %v4280 = vunpack.c.l.b16 %v3661
    %v4281 = vunpack.c.h.b16 %v3661
    %v4282 = vunpack.c.l.b16 %v3662
    %v4283 = vunpack.c.h.b16 %v3662
    %v4284 = vunpack.c.l.b16 %v3663
    %v4285 = vunpack.c.h.b16 %v3663
    %v4286 = vunpack.c.l.b16 %v3664
    %v4287 = vunpack.c.h.b16 %v3664
    %v4288 = vunpack.c.l.b16 %v3665
    %v4289 = vunpack.c.h.b16 %v3665
    %v4290 = vunpack.c.l.b16 %v3666
    %v4291 = vunpack.c.h.b16 %v3666
    %v4292 = vunpack.c.l.b16 %v3667
    %v4293 = vunpack.c.h.b16 %v3667
    %v4294 = vunpack.c.l.b16 %v3668
    %v4295 = vunpack.c.h.b16 %v3668
    %v4296 = vunpack.c.l.b16 %v3669
    %v4297 = vunpack.c.h.b16 %v3669
    %v4298 = vunpack.c.l.b16 %v3670
    %v4299 = vunpack.c.h.b16 %v3670
    %v4300 = vunpack.c.l.b16 %v3671
    %v4301 = vunpack.c.h.b16 %v3671
    %v4302 = vunpack.c.l.b16 %v3672
    %v4303 = vunpack.c.h.b16 %v3672
    %v4304 = vunpack.c.l.b16 %v3673
    %v4305 = vunpack.c.h.b16 %v3673
    %v4306 = vunpack.c.l.b16 %v3674
    %v4307 = vunpack.c.h.b16 %v3674
    %v4308 = vunpack.c.l.b16 %v3675
    %v4309 = vunpack.c.h.b16 %v3675
    %v4310 = vunpack.c.l.b16 %v3676
    %v4311 = vunpack.c.h.b16 %v3676
    %v4312 = vunpack.c.l.b16 %v3677
    %v4313 = vunpack.c.h.b16 %v3677
    %v4314 = vunpack.c.l.b16 %v3678
    %v4315 = vunpack.c.h.b16 %v3678
    %v4316 = vunpack.c.l.b16 %v3679
    %v4317 = vunpack.c.h.b16 %v3679
    %v4318 = vunpack.c.l.b16 %v3680
    %v4319 = vunpack.c.h.b16 %v3680
    %v4320 = vunpack.c.l.b16 %v3681
    %v4321 = vunpack.c.h.b16 %v3681
    %v4322 = vunpack.c.l.b16 %v3682
    %v4323 = vunpack.c.h.b16 %v3682
    %v4324 = vunpack.c.l.b16 %v3683
    %v4325 = vunpack.c.h.b16 %v3683
    %v4326 = vunpack.c.l.b16 %v3684
    %v4327 = vunpack.c.h.b16 %v3684
    %v4328 = vunpack.c.l.b16 %v3685
    %v4329 = vunpack.c.h.b16 %v3685
    %v4330 = vunpack.c.l.b16 %v3686
    %v4331 = vunpack.c.h.b16 %v3686
    %v4332 = vunpack.c.l.b16 %v3687
    %v4333 = vunpack.c.h.b16 %v3687
    %v4334 = vunpack.c.l.b16 %v3688
    %v4335 = vunpack.c.h.b16 %v3688
    %v4336 = vunpack.c.l.b16 %v3689
    %v4337 = vunpack.c.h.b16 %v3689
    %v4338 = vunpack.c.l.b16 %v3690
    %v4339 = vunpack.c.h.b16 %v3690
    %v4340 = vunpack.c.l.b16 %v3691
    %v4341 = vunpack.c.h.b16 %v3691
    %v4342 = vunpack.c.l.b16 %v3692
    %v4343 = vunpack.c.h.b16 %v3692
    %v4344 = vunpack.c.l.b16 %v3693
    %v4345 = vunpack.c.h.b16 %v3693
    %v4346 = vunpack.c.l.b16 %v3694
    %v4347 = vunpack.c.h.b16 %v3694
    %v4348 = vunpack.c.l.b16 %v3695
    %v4349 = vunpack.c.h.b16 %v3695
    %v4350 = vunpack.c.l.b16 %v3696
    %v4351 = vunpack.c.h.b16 %v3696
    %v4352 = vunpack.c.l.b16 %v3697
    %v4353 = vunpack.c.h.b16 %v3697
    %v4354 = vunpack.c.l.b16 %v3698
    %v4355 = vunpack.c.h.b16 %v3698
    %v4356 = vunpack.c.l.b16 %v3699
    %v4357 = vunpack.c.h.b16 %v3699
    %v4358 = vunpack.c.l.b16 %v3700
    %v4359 = vunpack.c.h.b16 %v3700
    %v4360 = vunpack.c.l.b16 %v3701
    %v4361 = vunpack.c.h.b16 %v3701
    %v4362 = vunpack.c.l.b16 %v3702
    %v4363 = vunpack.c.h.b16 %v3702
    %v4364 = vunpack.c.l.b16 %v3703
    %v4365 = vunpack.c.h.b16 %v3703
    %v4366 = vunpack.c.l.b16 %v3704
    %v4367 = vunpack.c.h.b16 %v3704
    %v4368 = vunpack.c.l.b16 %v3705
    %v4369 = vunpack.c.h.b16 %v3705
    %v4370 = vunpack.c.l.b16 %v3706
    %v4371 = vunpack.c.h.b16 %v3706
    %v4372 = vunpack.c.l.b16 %v3707
    %v4373 = vunpack.c.h.b16 %v3707
    %v4374 = vunpack.c.l.b16 %v3708
    %v4375 = vunpack.c.h.b16 %v3708
    %v4376 = vunpack.c.l.b16 %v3709
    %v4377 = vunpack.c.h.b16 %v3709
    %v4378 = vunpack.c.l.b16 %v3710
    %v4379 = vunpack.c.h.b16 %v3710
    %v4380 = vunpack.c.l.b16 %v3711
    %v4381 = vunpack.c.h.b16 %v3711
    %v4382 = vunpack.c.l.b16 %v3712
    %v4383 = vunpack.c.h.b16 %v3712
    %v4384 = vunpack.c.l.b16 %v3713
    %v4385 = vunpack.c.h.b16 %v3713
    %v4386 = vunpack.c.l.b16 %v3714
    %v4387 = vunpack.c.h.b16 %v3714
    %v4388 = vunpack.c.l.b16 %v3715
    %v4389 = vunpack.c.h.b16 %v3715
    %v4390 = vunpack.c.l.b16 %v3716
    %v4391 = vunpack.c.h.b16 %v3716
    %v4392 = vunpack.c.l.b16 %v3717
    %v4393 = vunpack.c.h.b16 %v3717
    %v4394 = vunpack.c.l.b16 %v3718
    %v4395 = vunpack.c.h.b16 %v3718
    %v4396 = vunpack.c.l.b16 %v3719
    %v4397 = vunpack.c.h.b16 %v3719
    %v4398 = vunpack.c.l.b16 %v3720
    %v4399 = vunpack.c.h.b16 %v3720
    %v4400 = vunpack.c.l.b16 %v3721
    %v4401 = vunpack.c.h.b16 %v3721
    %v4402 = vunpack.c.l.b16 %v3722
    %v4403 = vunpack.c.h.b16 %v3722
    %v4404 = vunpack.c.l.b16 %v3723
    %v4405 = vunpack.c.h.b16 %v3723
    %v4406 = vunpack.c.l.b16 %v3724
    %v4407 = vunpack.c.h.b16 %v3724
    %v4408 = vunpack.c.l.b16 %v3725
    %v4409 = vunpack.c.h.b16 %v3725
    %v4410 = vunpack.c.l.b16 %v3726
    %v4411 = vunpack.c.h.b16 %v3726
    %v4412 = vunpack.c.l.b16 %v3727
    %v4413 = vunpack.c.h.b16 %v3727
    %v4414 = vunpack.c.l.b16 %v3728
    %v4415 = vunpack.c.h.b16 %v3728
    %v4416 = vunpack.c.l.b16 %v3729
    %v4417 = vunpack.c.h.b16 %v3729
    %v4418 = vunpack.c.l.b16 %v3730
    %v4419 = vunpack.c.h.b16 %v3730
    %v4420 = vunpack.c.l.b16 %v3731
    %v4421 = vunpack.c.h.b16 %v3731
    %v4422 = vunpack.c.l.b16 %v3732
    %v4423 = vunpack.c.h.b16 %v3732
    %v4424 = vunpack.c.l.b16 %v3733
    %v4425 = vunpack.c.h.b16 %v3733
    %v4426 = vunpack.c.l.b16 %v3734
    %v4427 = vunpack.c.h.b16 %v3734
    %v4428 = vunpack.c.l.b16 %v3735
    %v4429 = vunpack.c.h.b16 %v3735
    %v4430 = vunpack.c.l.b16 %v3736
    %v4431 = vunpack.c.h.b16 %v3736
    %v4432 = vunpack.c.l.b16 %v3737
    %v4433 = vunpack.c.h.b16 %v3737
    %v4434 = vunpack.c.l.b16 %v3738
    %v4435 = vunpack.c.h.b16 %v3738
    %v4436 = vunpack.c.l.b16 %v3739
    %v4437 = vunpack.c.h.b16 %v3739
    %v4438 = vunpack.c.l.b16 %v3740
    %v4439 = vunpack.c.h.b16 %v3740
    %v4440 = vunpack.c.l.b16 %v3741
    %v4441 = vunpack.c.h.b16 %v3741
    %v4442 = vunpack.c.l.b16 %v3742
    %v4443 = vunpack.c.h.b16 %v3742
    %v4444 = vunpack.c.l.b16 %v3743
    %v4445 = vunpack.c.h.b16 %v3743
    %v4446 = vunpack.c.l.b16 %v3744
    %v4447 = vunpack.c.h.b16 %v3744
    %v4448 = vunpack.c.l.b16 %v3745
    %v4449 = vunpack.c.h.b16 %v3745
    %v4450 = vunpack.c.l.b16 %v3746
    %v4451 = vunpack.c.h.b16 %v3746
    %v4452 = vunpack.c.l.b16 %v3747
    %v4453 = vunpack.c.h.b16 %v3747
    %v4454 = vunpack.c.l.b16 %v3748
    %v4455 = vunpack.c.h.b16 %v3748
    %v4456 = vunpack.c.l.b16 %v3749
    %v4457 = vunpack.c.h.b16 %v3749
    %v4458 = vunpack.c.l.b16 %v3750
    %v4459 = vunpack.c.h.b16 %v3750
    %v4460 = vunpack.c.l.b16 %v3751
    %v4461 = vunpack.c.h.b16 %v3751
    %v4462 = vunpack.c.l.b16 %v3752
    %v4463 = vunpack.c.h.b16 %v3752
    %v4464 = vunpack.c.l.b16 %v3753
    %v4465 = vunpack.c.h.b16 %v3753
    %v4466 = vunpack.c.l.b16 %v3754
    %v4467 = vunpack.c.h.b16 %v3754
    %v4468 = vunpack.c.l.b16 %v3755
    %v4469 = vunpack.c.h.b16 %v3755
    %v4470 = vunpack.c.l.b16 %v3756
    %v4471 = vunpack.c.h.b16 %v3756
    %v4472 = vunpack.c.l.b16 %v3757
    %v4473 = vunpack.c.h.b16 %v3757
    %v4474 = vunpack.c.l.b16 %v3758
    %v4475 = vunpack.c.h.b16 %v3758
    %v4476 = vunpack.c.l.b16 %v3759
    %v4477 = vunpack.c.h.b16 %v3759
    %v4478 = vunpack.c.l.b16 %v3760
    %v4479 = vunpack.c.h.b16 %v3760
    %v4480 = vunpack.c.l.b16 %v3761
    %v4481 = vunpack.c.h.b16 %v3761
    %v4482 = vunpack.c.l.b16 %v3762
    %v4483 = vunpack.c.h.b16 %v3762
    %v4484 = vunpack.c.l.b16 %v3763
    %v4485 = vunpack.c.h.b16 %v3763
    %v4486 = vunpack.c.l.b16 %v3764
    %v4487 = vunpack.c.h.b16 %v3764
    %v4488 = vunpack.c.l.b16 %v3765
    %v4489 = vunpack.c.h.b16 %v3765
    %v4490 = vunpack.c.l.b16 %v3766
    %v4491 = vunpack.c.h.b16 %v3766
    %v4492 = vunpack.c.l.b16 %v3767
    %v4493 = vunpack.c.h.b16 %v3767
    %v4494 = vunpack.c.l.b16 %v3768
    %v4495 = vunpack.c.h.b16 %v3768
    %v4496 = vunpack.c.l.b16 %v3769
    %v4497 = vunpack.c.h.b16 %v3769
    %v4498 = vunpack.c.l.b16 %v3770
    %v4499 = vunpack.c.h.b16 %v3770
    %v4500 = vunpack.c.l.b16 %v3771
    %v4501 = vunpack.c.h.b16 %v3771
    %v4502 = vunpack.c.l.b16 %v3772
    %v4503 = vunpack.c.h.b16 %v3772
    %v4504 = vunpack.c.l.b16 %v3773
    %v4505 = vunpack.c.h.b16 %v3773
    %v4506 = vunpack.c.l.b16 %v3774
    %v4507 = vunpack.c.h.b16 %v3774
    %v4508 = vunpack.c.l.b16 %v3775
    %v4509 = vunpack.c.h.b16 %v3775
    %v4510 = vunpack.c.l.b16 %v3776
    %v4511 = vunpack.c.h.b16 %v3776
    %v4512 = vunpack.c.l.b16 %v3777
    %v4513 = vunpack.c.h.b16 %v3777
    %v4514 = vunpack.c.l.b16 %v3778
    %v4515 = vunpack.c.h.b16 %v3778
    %v4516 = vunpack.c.l.b16 %v3779
    %v4517 = vunpack.c.h.b16 %v3779
    %v4518 = vunpack.c.l.b16 %v3780
    %v4519 = vunpack.c.h.b16 %v3780
    %v4520 = vunpack.c.l.b16 %v3781
    %v4521 = vunpack.c.h.b16 %v3781
    %v4522 = vunpack.c.l.b16 %v3782
    %v4523 = vunpack.c.h.b16 %v3782
    %v4524 = vunpack.c.l.b16 %v3783
    %v4525 = vunpack.c.h.b16 %v3783
    %v4526 = vunpack.c.l.b16 %v3784
    %v4527 = vunpack.c.h.b16 %v3784
    %v4528 = vunpack.c.l.b16 %v3785
    %v4529 = vunpack.c.h.b16 %v3785
    %v4530 = vunpack.c.l.b16 %v3786
    %v4531 = vunpack.c.h.b16 %v3786
    %v4532 = vunpack.c.l.b16 %v3787
    %v4533 = vunpack.c.h.b16 %v3787
    %v4534 = vunpack.c.l.b16 %v3788
    %v4535 = vunpack.c.h.b16 %v3788
    %v4536 = vunpack.c.l.b16 %v3789
    %v4537 = vunpack.c.h.b16 %v3789
    %v4538 = vunpack.c.l.b16 %v3790
    %v4539 = vunpack.c.h.b16 %v3790
    %v4540 = vunpack.c.l.b16 %v3791
    %v4541 = vunpack.c.h.b16 %v3791
    %v4542 = vunpack.c.l.b16 %v3792
    %v4543 = vunpack.c.h.b16 %v3792
    %v4544 = vunpack.c.l.b16 %v3793
    %v4545 = vunpack.c.h.b16 %v3793
    %v4546 = vunpack.c.l.b16 %v3794
    %v4547 = vunpack.c.h.b16 %v3794
    %v4548 = vunpack.c.l.b16 %v3795
    %v4549 = vunpack.c.h.b16 %v3795
    %v4550 = vunpack.c.l.b16 %v3796
    %v4551 = vunpack.c.h.b16 %v3796
    %v4552 = vunpack.c.l.b16 %v3797
    %v4553 = vunpack.c.h.b16 %v3797
    %v4554 = vunpack.c.l.b16 %v3798
    %v4555 = vunpack.c.h.b16 %v3798
    %v4556 = vunpack.c.l.b16 %v3799
    %v4557 = vunpack.c.h.b16 %v3799
    %v4558 = vunpack.c.l.b16 %v3800
    %v4559 = vunpack.c.h.b16 %v3800
    %v4560 = vunpack.c.l.b16 %v3801
    %v4561 = vunpack.c.h.b16 %v3801
    %v4562 = vunpack.c.l.b16 %v3802
    %v4563 = vunpack.c.h.b16 %v3802
    %v4564 = vunpack.c.l.b16 %v3803
    %v4565 = vunpack.c.h.b16 %v3803
    %v4566 = vunpack.c.l.b16 %v3804
    %v4567 = vunpack.c.h.b16 %v3804
    %v4568 = vunpack.c.l.b16 %v3805
    %v4569 = vunpack.c.h.b16 %v3805
    %v4570 = vunpack.c.l.b16 %v3806
    %v4571 = vunpack.c.h.b16 %v3806
    %v4572 = vunpack.c.l.b16 %v3807
    %v4573 = vunpack.c.h.b16 %v3807
    %v4574 = vunpack.c.l.b16 %v3808
    %v4575 = vunpack.c.h.b16 %v3808
    %v4576 = vunpack.c.l.b16 %v3809
    %v4577 = vunpack.c.h.b16 %v3809
    %v4578 = vunpack.c.l.b16 %v3810
    %v4579 = vunpack.c.h.b16 %v3810
    %v4580 = vunpack.c.l.b16 %v3811
    %v4581 = vunpack.c.h.b16 %v3811
    %v4582 = vunpack.c.l.b16 %v3812
    %v4583 = vunpack.c.h.b16 %v3812
    %v4584 = vunpack.c.l.b16 %v3813
    %v4585 = vunpack.c.h.b16 %v3813
    %v4586 = vunpack.c.l.b16 %v3814
    %v4587 = vunpack.c.h.b16 %v3814
    %v4588 = vunpack.c.l.b16 %v3815
    %v4589 = vunpack.c.h.b16 %v3815
    %v4590 = vunpack.c.l.b16 %v3816
    %v4591 = vunpack.c.h.b16 %v3816
    %v4592 = vunpack.c.l.b16 %v3817
    %v4593 = vunpack.c.h.b16 %v3817
    %v4594 = vunpack.c.l.b16 %v3818
    %v4595 = vunpack.c.h.b16 %v3818
    %v4596 = vunpack.c.l.b16 %v3819
    %v4597 = vunpack.c.h.b16 %v3819
    %v4598 = vunpack.c.l.b16 %v3820
    %v4599 = vunpack.c.h.b16 %v3820
    %v4600 = vunpack.c.l.b16 %v3821
    %v4601 = vunpack.c.h.b16 %v3821
    %v4602 = vunpack.c.l.b16 %v3822
    %v4603 = vunpack.c.h.b16 %v3822
    %v4604 = vunpack.c.l.b16 %v3823
    %v4605 = vunpack.c.h.b16 %v3823
    %v4606 = vunpack.c.l.b16 %v3824
    %v4607 = vunpack.c.h.b16 %v3824
    %v4608 = vunpack.c.l.b16 %v3825
    %v4609 = vunpack.c.h.b16 %v3825
    %v4610 = vunpack.c.l.b16 %v3826
    %v4611 = vunpack.c.h.b16 %v3826
    %v4612 = vunpack.c.l.b16 %v3827
    %v4613 = vunpack.c.h.b16 %v3827
    %v4614 = vunpack.c.l.b16 %v3828
    %v4615 = vunpack.c.h.b16 %v3828
    %v4616 = vunpack.c.l.b16 %v3829
    %v4617 = vunpack.c.h.b16 %v3829
    %v4618 = vunpack.c.l.b16 %v3830
    %v4619 = vunpack.c.h.b16 %v3830
    %v4620 = vunpack.c.l.b16 %v3831
    %v4621 = vunpack.c.h.b16 %v3831
    %v4622 = vpack.c.b16 %v4114, %v4110
    %v4623 = vpack.c.b16 %v4115, %v4111
    %v4624 = vpack.c.b16 %v4116, %v4112
    %v4625 = vpack.c.b16 %v4117, %v4113
    %v4626 = vpack.c.b16 %v4122, %v4118
    %v4627 = vpack.c.b16 %v4123, %v4119
    %v4628 = vpack.c.b16 %v4124, %v4120
    %v4629 = vpack.c.b16 %v4125, %v4121
    %v4630 = vpack.c.b16 %v4130, %v4126
    %v4631 = vpack.c.b16 %v4131, %v4127
    %v4632 = vpack.c.b16 %v4132, %v4128
    %v4633 = vpack.c.b16 %v4133, %v4129
    %v4634 = vpack.c.b16 %v4138, %v4134
    %v4635 = vpack.c.b16 %v4139, %v4135
    %v4636 = vpack.c.b16 %v4140, %v4136
    %v4637 = vpack.c.b16 %v4141, %v4137
    %v4638 = vpack.c.b16 %v4146, %v4142
    %v4639 = vpack.c.b16 %v4147, %v4143
    %v4640 = vpack.c.b16 %v4148, %v4144
    %v4641 = vpack.c.b16 %v4149, %v4145
    %v4642 = vpack.c.b16 %v4154, %v4150
    %v4643 = vpack.c.b16 %v4155, %v4151
    %v4644 = vpack.c.b16 %v4156, %v4152
    %v4645 = vpack.c.b16 %v4157, %v4153
    %v4646 = vpack.c.b16 %v4162, %v4158
    %v4647 = vpack.c.b16 %v4163, %v4159
    %v4648 = vpack.c.b16 %v4164, %v4160
    %v4649 = vpack.c.b16 %v4165, %v4161
    %v4650 = vpack.c.b16 %v4170, %v4166
    %v4651 = vpack.c.b16 %v4171, %v4167
    %v4652 = vpack.c.b16 %v4172, %v4168
    %v4653 = vpack.c.b16 %v4173, %v4169
    %v4654 = vpack.c.b16 %v4178, %v4174
    %v4655 = vpack.c.b16 %v4179, %v4175
    %v4656 = vpack.c.b16 %v4180, %v4176
    %v4657 = vpack.c.b16 %v4181, %v4177
    %v4658 = vpack.c.b16 %v4186, %v4182
    %v4659 = vpack.c.b16 %v4187, %v4183
    %v4660 = vpack.c.b16 %v4188, %v4184
    %v4661 = vpack.c.b16 %v4189, %v4185
    %v4662 = vpack.c.b16 %v4194, %v4190
    %v4663 = vpack.c.b16 %v4195, %v4191
    %v4664 = vpack.c.b16 %v4196, %v4192
    %v4665 = vpack.c.b16 %v4197, %v4193
    %v4666 = vpack.c.b16 %v4202, %v4198
    %v4667 = vpack.c.b16 %v4203, %v4199
    %v4668 = vpack.c.b16 %v4204, %v4200
    %v4669 = vpack.c.b16 %v4205, %v4201
    %v4670 = vpack.c.b16 %v4210, %v4206
    %v4671 = vpack.c.b16 %v4211, %v4207
    %v4672 = vpack.c.b16 %v4212, %v4208
    %v4673 = vpack.c.b16 %v4213, %v4209
    %v4674 = vpack.c.b16 %v4218, %v4214
    %v4675 = vpack.c.b16 %v4219, %v4215
    %v4676 = vpack.c.b16 %v4220, %v4216
    %v4677 = vpack.c.b16 %v4221, %v4217
    %v4678 = vpack.c.b16 %v4226, %v4222
    %v4679 = vpack.c.b16 %v4227, %v4223
    %v4680 = vpack.c.b16 %v4228, %v4224
    %v4681 = vpack.c.b16 %v4229, %v4225
    %v4682 = vpack.c.b16 %v4234, %v4230
    %v4683 = vpack.c.b16 %v4235, %v4231
    %v4684 = vpack.c.b16 %v4236, %v4232
    %v4685 = vpack.c.b16 %v4237, %v4233
    %v4686 = vpack.c.b16 %v4242, %v4238
    %v4687 = vpack.c.b16 %v4243, %v4239
    %v4688 = vpack.c.b16 %v4244, %v4240
    %v4689 = vpack.c.b16 %v4245, %v4241
    %v4690 = vpack.c.b16 %v4250, %v4246
    %v4691 = vpack.c.b16 %v4251, %v4247
    %v4692 = vpack.c.b16 %v4252, %v4248
    %v4693 = vpack.c.b16 %v4253, %v4249
    %v4694 = vpack.c.b16 %v4258, %v4254
    %v4695 = vpack.c.b16 %v4259, %v4255
    %v4696 = vpack.c.b16 %v4260, %v4256
    %v4697 = vpack.c.b16 %v4261, %v4257
    %v4698 = vpack.c.b16 %v4266, %v4262
    %v4699 = vpack.c.b16 %v4267, %v4263
    %v4700 = vpack.c.b16 %v4268, %v4264
    %v4701 = vpack.c.b16 %v4269, %v4265
    %v4702 = vpack.c.b16 %v4274, %v4270
    %v4703 = vpack.c.b16 %v4275, %v4271
    %v4704 = vpack.c.b16 %v4276, %v4272
    %v4705 = vpack.c.b16 %v4277, %v4273
    %v4706 = vpack.c.b16 %v4282, %v4278
    %v4707 = vpack.c.b16 %v4283, %v4279
    %v4708 = vpack.c.b16 %v4284, %v4280
    %v4709 = vpack.c.b16 %v4285, %v4281
    %v4710 = vpack.c.b16 %v4290, %v4286
    %v4711 = vpack.c.b16 %v4291, %v4287
    %v4712 = vpack.c.b16 %v4292, %v4288
    %v4713 = vpack.c.b16 %v4293, %v4289
    %v4714 = vpack.c.b16 %v4298, %v4294
    %v4715 = vpack.c.b16 %v4299, %v4295
    %v4716 = vpack.c.b16 %v4300, %v4296
    %v4717 = vpack.c.b16 %v4301, %v4297
    %v4718 = vpack.c.b16 %v4306, %v4302
    %v4719 = vpack.c.b16 %v4307, %v4303
    %v4720 = vpack.c.b16 %v4308, %v4304
    %v4721 = vpack.c.b16 %v4309, %v4305
    %v4722 = vpack.c.b16 %v4314, %v4310
    %v4723 = vpack.c.b16 %v4315, %v4311
    %v4724 = vpack.c.b16 %v4316, %v4312
    %v4725 = vpack.c.b16 %v4317, %v4313
    %v4726 = vpack.c.b16 %v4322, %v4318
    %v4727 = vpack.c.b16 %v4323, %v4319
    %v4728 = vpack.c.b16 %v4324, %v4320
    %v4729 = vpack.c.b16 %v4325, %v4321
    %v4730 = vpack.c.b16 %v4330, %v4326
    %v4731 = vpack.c.b16 %v4331, %v4327
    %v4732 = vpack.c.b16 %v4332, %v4328
    %v4733 = vpack.c.b16 %v4333, %v4329
    %v4734 = vpack.c.b16 %v4338, %v4334
    %v4735 = vpack.c.b16 %v4339, %v4335
    %v4736 = vpack.c.b16 %v4340, %v4336
    %v4737 = vpack.c.b16 %v4341, %v4337
    %v4738 = vpack.c.b16 %v4346, %v4342
    %v4739 = vpack.c.b16 %v4347, %v4343
    %v4740 = vpack.c.b16 %v4348, %v4344
    %v4741 = vpack.c.b16 %v4349, %v4345
    %v4742 = vpack.c.b16 %v4354, %v4350
    %v4743 = vpack.c.b16 %v4355, %v4351
    %v4744 = vpack.c.b16 %v4356, %v4352
    %v4745 = vpack.c.b16 %v4357, %v4353
    %v4746 = vpack.c.b16 %v4362, %v4358
    %v4747 = vpack.c.b16 %v4363, %v4359
    %v4748 = vpack.c.b16 %v4364, %v4360
    %v4749 = vpack.c.b16 %v4365, %v4361
    %v4750 = vpack.c.b16 %v4370, %v4366
    %v4751 = vpack.c.b16 %v4371, %v4367
    %v4752 = vpack.c.b16 %v4372, %v4368
    %v4753 = vpack.c.b16 %v4373, %v4369
    %v4754 = vpack.c.b16 %v4378, %v4374
    %v4755 = vpack.c.b16 %v4379, %v4375
    %v4756 = vpack.c.b16 %v4380, %v4376
    %v4757 = vpack.c.b16 %v4381, %v4377
    %v4758 = vpack.c.b16 %v4386, %v4382
    %v4759 = vpack.c.b16 %v4387, %v4383
    %v4760 = vpack.c.b16 %v4388, %v4384
    %v4761 = vpack.c.b16 %v4389, %v4385
    %v4762 = vpack.c.b16 %v4394, %v4390
    %v4763 = vpack.c.b16 %v4395, %v4391
    %v4764 = vpack.c.b16 %v4396, %v4392
    %v4765 = vpack.c.b16 %v4397, %v4393
    %v4766 = vpack.c.b16 %v4402, %v4398
    %v4767 = vpack.c.b16 %v4403, %v4399
    %v4768 = vpack.c.b16 %v4404, %v4400
    %v4769 = vpack.c.b16 %v4405, %v4401
    %v4770 = vpack.c.b16 %v4410, %v4406
    %v4771 = vpack.c.b16 %v4411, %v4407
    %v4772 = vpack.c.b16 %v4412, %v4408
    %v4773 = vpack.c.b16 %v4413, %v4409
    %v4774 = vpack.c.b16 %v4418, %v4414
    %v4775 = vpack.c.b16 %v4419, %v4415
    %v4776 = vpack.c.b16 %v4420, %v4416
    %v4777 = vpack.c.b16 %v4421, %v4417
    %v4778 = vpack.c.b16 %v4426, %v4422
    %v4779 = vpack.c.b16 %v4427, %v4423
    %v4780 = vpack.c.b16 %v4428, %v4424
    %v4781 = vpack.c.b16 %v4429, %v4425
    %v4782 = vpack.c.b16 %v4434, %v4430
    %v4783 = vpack.c.b16 %v4435, %v4431
    %v4784 = vpack.c.b16 %v4436, %v4432
    %v4785 = vpack.c.b16 %v4437, %v4433
    %v4786 = vpack.c.b16 %v4442, %v4438
    %v4787 = vpack.c.b16 %v4443, %v4439
    %v4788 = vpack.c.b16 %v4444, %v4440
    %v4789 = vpack.c.b16 %v4445, %v4441
    %v4790 = vpack.c.b16 %v4450, %v4446
    %v4791 = vpack.c.b16 %v4451, %v4447
    %v4792 = vpack.c.b16 %v4452, %v4448
    %v4793 = vpack.c.b16 %v4453, %v4449
    %v4794 = vpack.c.b16 %v4458, %v4454
    %v4795 = vpack.c.b16 %v4459, %v4455
    %v4796 = vpack.c.b16 %v4460, %v4456
    %v4797 = vpack.c.b16 %v4461, %v4457
    %v4798 = vpack.c.b16 %v4466, %v4462
    %v4799 = vpack.c.b16 %v4467, %v4463
    %v4800 = vpack.c.b16 %v4468, %v4464
    %v4801 = vpack.c.b16 %v4469, %v4465
    %v4802 = vpack.c.b16 %v4474, %v4470
    %v4803 = vpack.c.b16 %v4475, %v4471
    %v4804 = vpack.c.b16 %v4476, %v4472
    %v4805 = vpack.c.b16 %v4477, %v4473
    %v4806 = vpack.c.b16 %v4482, %v4478
    %v4807 = vpack.c.b16 %v4483, %v4479
    %v4808 = vpack.c.b16 %v4484, %v4480
    %v4809 = vpack.c.b16 %v4485, %v4481
    %v4810 = vpack.c.b16 %v4490, %v4486
    %v4811 = vpack.c.b16 %v4491, %v4487
    %v4812 = vpack.c.b16 %v4492, %v4488
    %v4813 = vpack.c.b16 %v4493, %v4489
    %v4814 = vpack.c.b16 %v4498, %v4494
    %v4815 = vpack.c.b16 %v4499, %v4495
    %v4816 = vpack.c.b16 %v4500, %v4496
    %v4817 = vpack.c.b16 %v4501, %v4497
    %v4818 = vpack.c.b16 %v4506, %v4502
    %v4819 = vpack.c.b16 %v4507, %v4503
    %v4820 = vpack.c.b16 %v4508, %v4504
    %v4821 = vpack.c.b16 %v4509, %v4505
    %v4822 = vpack.c.b16 %v4514, %v4510
    %v4823 = vpack.c.b16 %v4515, %v4511
    %v4824 = vpack.c.b16 %v4516, %v4512
    %v4825 = vpack.c.b16 %v4517, %v4513
    %v4826 = vpack.c.b16 %v4522, %v4518
    %v4827 = vpack.c.b16 %v4523, %v4519
    %v4828 = vpack.c.b16 %v4524, %v4520
    %v4829 = vpack.c.b16 %v4525, %v4521
    %v4830 = vpack.c.b16 %v4530, %v4526
    %v4831 = vpack.c.b16 %v4531, %v4527
    %v4832 = vpack.c.b16 %v4532, %v4528
    %v4833 = vpack.c.b16 %v4533, %v4529
    %v4834 = vpack.c.b16 %v4538, %v4534
    %v4835 = vpack.c.b16 %v4539, %v4535
    %v4836 = vpack.c.b16 %v4540, %v4536
    %v4837 = vpack.c.b16 %v4541, %v4537
    %v4838 = vpack.c.b16 %v4546, %v4542
    %v4839 = vpack.c.b16 %v4547, %v4543
    %v4840 = vpack.c.b16 %v4548, %v4544
    %v4841 = vpack.c.b16 %v4549, %v4545
    %v4842 = vpack.c.b16 %v4554, %v4550
    %v4843 = vpack.c.b16 %v4555, %v4551
    %v4844 = vpack.c.b16 %v4556, %v4552
    %v4845 = vpack.c.b16 %v4557, %v4553
    %v4846 = vpack.c.b16 %v4562, %v4558
    %v4847 = vpack.c.b16 %v4563, %v4559
    %v4848 = vpack.c.b16 %v4564, %v4560
    %v4849 = vpack.c.b16 %v4565, %v4561
    %v4850 = vpack.c.b16 %v4570, %v4566
    %v4851 = vpack.c.b16 %v4571, %v4567
    %v4852 = vpack.c.b16 %v4572, %v4568
    %v4853 = vpack.c.b16 %v4573, %v4569
    %v4854 = vpack.c.b16 %v4578, %v4574
    %v4855 = vpack.c.b16 %v4579, %v4575
    %v4856 = vpack.c.b16 %v4580, %v4576
    %v4857 = vpack.c.b16 %v4581, %v4577
    %v4858 = vpack.c.b16 %v4586, %v4582
    %v4859 = vpack.c.b16 %v4587, %v4583
    %v4860 = vpack.c.b16 %v4588, %v4584
    %v4861 = vpack.c.b16 %v4589, %v4585
    %v4862 = vpack.c.b16 %v4594, %v4590
    %v4863 = vpack.c.b16 %v4595, %v4591
    %v4864 = vpack.c.b16 %v4596, %v4592
    %v4865 = vpack.c.b16 %v4597, %v4593
    %v4866 = vpack.c.b16 %v4602, %v4598
    %v4867 = vpack.c.b16 %v4603, %v4599
    %v4868 = vpack.c.b16 %v4604, %v4600
    %v4869 = vpack.c.b16 %v4605, %v4601
    %v4870 = vpack.c.b16 %v4610, %v4606
    %v4871 = vpack.c.b16 %v4611, %v4607
    %v4872 = vpack.c.b16 %v4612, %v4608
    %v4873 = vpack.c.b16 %v4613, %v4609
    %v4874 = vpack.c.b16 %v4618, %v4614
    %v4875 = vpack.c.b16 %v4619, %v4615
    %v4876 = vpack.c.b16 %v4620, %v4616
    %v4877 = vpack.c.b16 %v4621, %v4617
    %5134 = vmatprep.subr.bf16.mxu0 %v4651
    %5135 = vmatpush1.bf16.msra.mxu0 %v4650
    %5136 = vmatprep.subr.bf16.mxu0 %v4647
    %5137 = vmatpush1.bf16.msra.mxu0 %v4646
    %5138 = vmatprep.subr.bf16.mxu0 %v4643
    %5139 = vmatpush1.bf16.msra.mxu0 %v4642
    %5140 = vmatprep.subr.bf16.mxu0 %v4639
    %5141 = vmatpush1.bf16.msra.mxu0 %v4638
    %5142 = vmatprep.subr.bf16.mxu0 %v4635
    %5143 = vmatpush1.bf16.msra.mxu0 %v4634
    %5144 = vmatprep.subr.bf16.mxu0 %v4631
    %5145 = vmatpush1.bf16.msra.mxu0 %v4630
    %5146 = vmatprep.subr.bf16.mxu0 %v4627
    %5147 = vmatpush1.bf16.msra.mxu0 %v4626
    %5148 = vmatprep.subr.bf16.mxu0 %v4623
    %5149 = vmatpush1.bf16.msra.mxu0 %v4622
    %5150 = vmatprep.subr.bf16.mxu0 %v4683
    %5151 = vmatpush2.bf16.msra.mxu0 %v4682
    %5152 = vmatprep.subr.bf16.mxu0 %v4679
    %5153 = vmatpush2.bf16.msra.mxu0 %v4678
    %5154 = vmatprep.subr.bf16.mxu0 %v4675
    %5155 = vmatpush2.bf16.msra.mxu0 %v4674
    %5156 = vmatprep.subr.bf16.mxu0 %v4671
    %5157 = vmatpush2.bf16.msra.mxu0 %v4670
    %5158 = vmatprep.subr.bf16.mxu0 %v4667
    %5159 = vmatpush2.bf16.msra.mxu0 %v4666
    %5160 = vmatprep.subr.bf16.mxu0 %v4663
    %5161 = vmatpush2.bf16.msra.mxu0 %v4662
    %5162 = vmatprep.subr.bf16.mxu0 %v4659
    %5163 = vmatpush2.bf16.msra.mxu0 %v4658
    %5164 = vmatprep.subr.bf16.mxu0 %v4655
    %5165 = vmatpush2.bf16.msra.mxu0 %v4654
    %5166 = vmatprep.mubr.bf16.mxu0 %v3569
    %5167 = vmatmul.mubr.bf16.gmra.mxu0 %v3568
    %v5168 = vpop.f32.mrf.mxu0
    %v5169 = vadd.f32 %v3837, %v5168
    %v5170 = vpop.f32.mrf.mxu0
    %v5171 = vadd.f32 %v3841, %v5170
    %v5172 = vpop.f32.mrf.mxu0
    %v5173 = vpop.f32.mrf.mxu0
    %5174 = vdwg.mxu0
    %5175 = vmatprep.subr.bf16.mxu0 %v4715
    %5176 = vmatpush1.bf16.msra.mxu0 %v4714
    %5177 = vmatprep.subr.bf16.mxu0 %v4711
    %5178 = vmatpush1.bf16.msra.mxu0 %v4710
    %5179 = vmatprep.subr.bf16.mxu0 %v4707
    %5180 = vmatpush1.bf16.msra.mxu0 %v4706
    %5181 = vmatprep.subr.bf16.mxu0 %v4703
    %5182 = vmatpush1.bf16.msra.mxu0 %v4702
    %5183 = vmatprep.subr.bf16.mxu0 %v4699
    %5184 = vmatpush1.bf16.msra.mxu0 %v4698
    %5185 = vmatprep.subr.bf16.mxu0 %v4695
    %5186 = vmatpush1.bf16.msra.mxu0 %v4694
    %5187 = vmatprep.subr.bf16.mxu0 %v4691
    %5188 = vmatpush1.bf16.msra.mxu0 %v4690
    %5189 = vmatprep.subr.bf16.mxu0 %v4687
    %5190 = vmatpush1.bf16.msra.mxu0 %v4686
    %5191 = vmatprep.subr.bf16.mxu0 %v4747
    %5192 = vmatpush2.bf16.msra.mxu0 %v4746
    %5193 = vmatprep.subr.bf16.mxu0 %v4743
    %5194 = vmatpush2.bf16.msra.mxu0 %v4742
    %5195 = vmatprep.subr.bf16.mxu0 %v4739
    %5196 = vmatpush2.bf16.msra.mxu0 %v4738
    %5197 = vmatprep.subr.bf16.mxu0 %v4735
    %5198 = vmatpush2.bf16.msra.mxu0 %v4734
    %5199 = vmatprep.subr.bf16.mxu0 %v4731
    %5200 = vmatpush2.bf16.msra.mxu0 %v4730
    %5201 = vmatprep.subr.bf16.mxu0 %v4727
    %5202 = vmatpush2.bf16.msra.mxu0 %v4726
    %5203 = vmatprep.subr.bf16.mxu0 %v4723
    %5204 = vmatpush2.bf16.msra.mxu0 %v4722
    %5205 = vmatprep.subr.bf16.mxu0 %v4719
    %5206 = vmatpush2.bf16.msra.mxu0 %v4718
    %5207 = vmatprep.mubr.bf16.mxu0 %v3571
    %5208 = vmatmul.mubr.bf16.gmra.mxu0 %v3570
    %v5209 = vpop.f32.mrf.mxu0
    %v5210 = vadd.f32 %v5169, %v5209
    %v5211 = vpop.f32.mrf.mxu0
    %v5212 = vadd.f32 %v5171, %v5211
    %v5213 = vpop.f32.mrf.mxu0
    %v5214 = vpop.f32.mrf.mxu0
    %5215 = vdwg.mxu0
    %5216 = vmatprep.subr.bf16.mxu0 %v4779
    %5217 = vmatpush1.bf16.msra.mxu0 %v4778
    %5218 = vmatprep.subr.bf16.mxu0 %v4775
    %5219 = vmatpush1.bf16.msra.mxu0 %v4774
    %5220 = vmatprep.subr.bf16.mxu0 %v4771
    %5221 = vmatpush1.bf16.msra.mxu0 %v4770
    %5222 = vmatprep.subr.bf16.mxu0 %v4767
    %5223 = vmatpush1.bf16.msra.mxu0 %v4766
    %5224 = vmatprep.subr.bf16.mxu0 %v4763
    %5225 = vmatpush1.bf16.msra.mxu0 %v4762
    %5226 = vmatprep.subr.bf16.mxu0 %v4759
    %5227 = vmatpush1.bf16.msra.mxu0 %v4758
    %5228 = vmatprep.subr.bf16.mxu0 %v4755
    %5229 = vmatpush1.bf16.msra.mxu0 %v4754
    %5230 = vmatprep.subr.bf16.mxu0 %v4751
    %5231 = vmatpush1.bf16.msra.mxu0 %v4750
    %5232 = vmatprep.subr.bf16.mxu0 %v4811
    %5233 = vmatpush2.bf16.msra.mxu0 %v4810
    %5234 = vmatprep.subr.bf16.mxu0 %v4807
    %5235 = vmatpush2.bf16.msra.mxu0 %v4806
    %5236 = vmatprep.subr.bf16.mxu0 %v4803
    %5237 = vmatpush2.bf16.msra.mxu0 %v4802
    %5238 = vmatprep.subr.bf16.mxu0 %v4799
    %5239 = vmatpush2.bf16.msra.mxu0 %v4798
    %5240 = vmatprep.subr.bf16.mxu0 %v4795
    %5241 = vmatpush2.bf16.msra.mxu0 %v4794
    %5242 = vmatprep.subr.bf16.mxu0 %v4791
    %5243 = vmatpush2.bf16.msra.mxu0 %v4790
    %5244 = vmatprep.subr.bf16.mxu0 %v4787
    %5245 = vmatpush2.bf16.msra.mxu0 %v4786
    %5246 = vmatprep.subr.bf16.mxu0 %v4783
    %5247 = vmatpush2.bf16.msra.mxu0 %v4782
    %5248 = vmatprep.mubr.bf16.mxu0 %v3573
    %5249 = vmatmul.mubr.bf16.gmra.mxu0 %v3572
    %v5250 = vpop.f32.mrf.mxu0
    %v5251 = vadd.f32 %v5210, %v5250
    %v5252 = vpop.f32.mrf.mxu0
    %v5253 = vadd.f32 %v5212, %v5252
    %v5254 = vpop.f32.mrf.mxu0
    %v5255 = vpop.f32.mrf.mxu0
    %5256 = vdwg.mxu0
    %5257 = vmatprep.subr.bf16.mxu0 %v4843
    %5258 = vmatpush1.bf16.msra.mxu0 %v4842
    %5259 = vmatprep.subr.bf16.mxu0 %v4839
    %5260 = vmatpush1.bf16.msra.mxu0 %v4838
    %5261 = vmatprep.subr.bf16.mxu0 %v4835
    %5262 = vmatpush1.bf16.msra.mxu0 %v4834
    %5263 = vmatprep.subr.bf16.mxu0 %v4831
    %5264 = vmatpush1.bf16.msra.mxu0 %v4830
    %5265 = vmatprep.subr.bf16.mxu0 %v4827
    %5266 = vmatpush1.bf16.msra.mxu0 %v4826
    %5267 = vmatprep.subr.bf16.mxu0 %v4823
    %5268 = vmatpush1.bf16.msra.mxu0 %v4822
    %5269 = vmatprep.subr.bf16.mxu0 %v4819
    %5270 = vmatpush1.bf16.msra.mxu0 %v4818
    %5271 = vmatprep.subr.bf16.mxu0 %v4815
    %5272 = vmatpush1.bf16.msra.mxu0 %v4814
    %5273 = vmatprep.subr.bf16.mxu0 %v4875
    %5274 = vmatpush2.bf16.msra.mxu0 %v4874
    %5275 = vmatprep.subr.bf16.mxu0 %v4871
    %5276 = vmatpush2.bf16.msra.mxu0 %v4870
    %5277 = vmatprep.subr.bf16.mxu0 %v4867
    %5278 = vmatpush2.bf16.msra.mxu0 %v4866
    %5279 = vmatprep.subr.bf16.mxu0 %v4863
    %5280 = vmatpush2.bf16.msra.mxu0 %v4862
    %5281 = vmatprep.subr.bf16.mxu0 %v4859
    %5282 = vmatpush2.bf16.msra.mxu0 %v4858
    %5283 = vmatprep.subr.bf16.mxu0 %v4855
    %5284 = vmatpush2.bf16.msra.mxu0 %v4854
    %5285 = vmatprep.subr.bf16.mxu0 %v4851
    %5286 = vmatpush2.bf16.msra.mxu0 %v4850
    %5287 = vmatprep.subr.bf16.mxu0 %v4847
    %5288 = vmatpush2.bf16.msra.mxu0 %v4846
    %5289 = vmatprep.mubr.bf16.mxu0 %v3575
    %5290 = vmatmul.mubr.bf16.gmra.mxu0 %v3574
    %v5291 = vpop.f32.mrf.mxu0
    %v5292 = vadd.f32 %v5251, %v5291
    %v5293 = vpop.f32.mrf.mxu0
    %v5294 = vadd.f32 %v5253, %v5293
    %v5295 = vpop.f32.mrf.mxu0
    %v5296 = vpop.f32.mrf.mxu0
    %5297 = vdwg.mxu0
    %5298 = vmatprep.subr.bf16.mxu0 %v4653
    %5299 = vmatpush1.bf16.msra.mxu0 %v4652
    %5300 = vmatprep.subr.bf16.mxu0 %v4649
    %5301 = vmatpush1.bf16.msra.mxu0 %v4648
    %5302 = vmatprep.subr.bf16.mxu0 %v4645
    %5303 = vmatpush1.bf16.msra.mxu0 %v4644
    %5304 = vmatprep.subr.bf16.mxu0 %v4641
    %5305 = vmatpush1.bf16.msra.mxu0 %v4640
    %5306 = vmatprep.subr.bf16.mxu0 %v4637
    %5307 = vmatpush1.bf16.msra.mxu0 %v4636
    %5308 = vmatprep.subr.bf16.mxu0 %v4633
    %5309 = vmatpush1.bf16.msra.mxu0 %v4632
    %5310 = vmatprep.subr.bf16.mxu0 %v4629
    %5311 = vmatpush1.bf16.msra.mxu0 %v4628
    %5312 = vmatprep.subr.bf16.mxu0 %v4625
    %5313 = vmatpush1.bf16.msra.mxu0 %v4624
    %5314 = vmatprep.subr.bf16.mxu0 %v4685
    %5315 = vmatpush2.bf16.msra.mxu0 %v4684
    %5316 = vmatprep.subr.bf16.mxu0 %v4681
    %5317 = vmatpush2.bf16.msra.mxu0 %v4680
    %5318 = vmatprep.subr.bf16.mxu0 %v4677
    %5319 = vmatpush2.bf16.msra.mxu0 %v4676
    %5320 = vmatprep.subr.bf16.mxu0 %v4673
    %5321 = vmatpush2.bf16.msra.mxu0 %v4672
    %5322 = vmatprep.subr.bf16.mxu0 %v4669
    %5323 = vmatpush2.bf16.msra.mxu0 %v4668
    %5324 = vmatprep.subr.bf16.mxu0 %v4665
    %5325 = vmatpush2.bf16.msra.mxu0 %v4664
    %5326 = vmatprep.subr.bf16.mxu0 %v4661
    %5327 = vmatpush2.bf16.msra.mxu0 %v4660
    %5328 = vmatprep.subr.bf16.mxu0 %v4657
    %5329 = vmatpush2.bf16.msra.mxu0 %v4656
    %5330 = vmatprep.mubr.bf16.mxu0 %v3569
    %5331 = vmatmul.mubr.bf16.gmra.mxu0 %v3568
    %v5332 = vpop.f32.mrf.mxu0
    %v5333 = vadd.f32 %v3845, %v5332
    %v5334 = vpop.f32.mrf.mxu0
    %v5335 = vadd.f32 %v3849, %v5334
    %v5336 = vpop.f32.mrf.mxu0
    %v5337 = vpop.f32.mrf.mxu0
    %5338 = vdwg.mxu0
    %5339 = vmatprep.subr.bf16.mxu0 %v4717
    %5340 = vmatpush1.bf16.msra.mxu0 %v4716
    %5341 = vmatprep.subr.bf16.mxu0 %v4713
    %5342 = vmatpush1.bf16.msra.mxu0 %v4712
    %5343 = vmatprep.subr.bf16.mxu0 %v4709
    %5344 = vmatpush1.bf16.msra.mxu0 %v4708
    %5345 = vmatprep.subr.bf16.mxu0 %v4705
    %5346 = vmatpush1.bf16.msra.mxu0 %v4704
    %5347 = vmatprep.subr.bf16.mxu0 %v4701
    %5348 = vmatpush1.bf16.msra.mxu0 %v4700
    %5349 = vmatprep.subr.bf16.mxu0 %v4697
    %5350 = vmatpush1.bf16.msra.mxu0 %v4696
    %5351 = vmatprep.subr.bf16.mxu0 %v4693
    %5352 = vmatpush1.bf16.msra.mxu0 %v4692
    %5353 = vmatprep.subr.bf16.mxu0 %v4689
    %5354 = vmatpush1.bf16.msra.mxu0 %v4688
    %5355 = vmatprep.subr.bf16.mxu0 %v4749
    %5356 = vmatpush2.bf16.msra.mxu0 %v4748
    %5357 = vmatprep.subr.bf16.mxu0 %v4745
    %5358 = vmatpush2.bf16.msra.mxu0 %v4744
    %5359 = vmatprep.subr.bf16.mxu0 %v4741
    %5360 = vmatpush2.bf16.msra.mxu0 %v4740
    %5361 = vmatprep.subr.bf16.mxu0 %v4737
    %5362 = vmatpush2.bf16.msra.mxu0 %v4736
    %5363 = vmatprep.subr.bf16.mxu0 %v4733
    %5364 = vmatpush2.bf16.msra.mxu0 %v4732
    %5365 = vmatprep.subr.bf16.mxu0 %v4729
    %5366 = vmatpush2.bf16.msra.mxu0 %v4728
    %5367 = vmatprep.subr.bf16.mxu0 %v4725
    %5368 = vmatpush2.bf16.msra.mxu0 %v4724
    %5369 = vmatprep.subr.bf16.mxu0 %v4721
    %5370 = vmatpush2.bf16.msra.mxu0 %v4720
    %5371 = vmatprep.mubr.bf16.mxu0 %v3571
    %5372 = vmatmul.mubr.bf16.gmra.mxu0 %v3570
    %v5373 = vpop.f32.mrf.mxu0
    %v5374 = vadd.f32 %v5333, %v5373
    %v5375 = vpop.f32.mrf.mxu0
    %v5376 = vadd.f32 %v5335, %v5375
    %v5377 = vpop.f32.mrf.mxu0
    %v5378 = vpop.f32.mrf.mxu0
    %5379 = vdwg.mxu0
    %5380 = vmatprep.subr.bf16.mxu0 %v4781
    %5381 = vmatpush1.bf16.msra.mxu0 %v4780
    %5382 = vmatprep.subr.bf16.mxu0 %v4777
    %5383 = vmatpush1.bf16.msra.mxu0 %v4776
    %5384 = vmatprep.subr.bf16.mxu0 %v4773
    %5385 = vmatpush1.bf16.msra.mxu0 %v4772
    %5386 = vmatprep.subr.bf16.mxu0 %v4769
    %5387 = vmatpush1.bf16.msra.mxu0 %v4768
    %5388 = vmatprep.subr.bf16.mxu0 %v4765
    %5389 = vmatpush1.bf16.msra.mxu0 %v4764
    %5390 = vmatprep.subr.bf16.mxu0 %v4761
    %5391 = vmatpush1.bf16.msra.mxu0 %v4760
    %5392 = vmatprep.subr.bf16.mxu0 %v4757
    %5393 = vmatpush1.bf16.msra.mxu0 %v4756
    %5394 = vmatprep.subr.bf16.mxu0 %v4753
    %5395 = vmatpush1.bf16.msra.mxu0 %v4752
    %5396 = vmatprep.subr.bf16.mxu0 %v4813
    %5397 = vmatpush2.bf16.msra.mxu0 %v4812
    %5398 = vmatprep.subr.bf16.mxu0 %v4809
    %5399 = vmatpush2.bf16.msra.mxu0 %v4808
    %5400 = vmatprep.subr.bf16.mxu0 %v4805
    %5401 = vmatpush2.bf16.msra.mxu0 %v4804
    %5402 = vmatprep.subr.bf16.mxu0 %v4801
    %5403 = vmatpush2.bf16.msra.mxu0 %v4800
    %5404 = vmatprep.subr.bf16.mxu0 %v4797
    %5405 = vmatpush2.bf16.msra.mxu0 %v4796
    %5406 = vmatprep.subr.bf16.mxu0 %v4793
    %5407 = vmatpush2.bf16.msra.mxu0 %v4792
    %5408 = vmatprep.subr.bf16.mxu0 %v4789
    %5409 = vmatpush2.bf16.msra.mxu0 %v4788
    %5410 = vmatprep.subr.bf16.mxu0 %v4785
    %5411 = vmatpush2.bf16.msra.mxu0 %v4784
    %5412 = vmatprep.mubr.bf16.mxu0 %v3573
    %5413 = vmatmul.mubr.bf16.gmra.mxu0 %v3572
    %v5414 = vpop.f32.mrf.mxu0
    %v5415 = vadd.f32 %v5374, %v5414
    %v5416 = vpop.f32.mrf.mxu0
    %v5417 = vadd.f32 %v5376, %v5416
    %v5418 = vpop.f32.mrf.mxu0
    %v5419 = vpop.f32.mrf.mxu0
    %5420 = vdwg.mxu0
    %5421 = vmatprep.subr.bf16.mxu0 %v4845
    %5422 = vmatpush1.bf16.msra.mxu0 %v4844
    %5423 = vmatprep.subr.bf16.mxu0 %v4841
    %5424 = vmatpush1.bf16.msra.mxu0 %v4840
    %5425 = vmatprep.subr.bf16.mxu0 %v4837
    %5426 = vmatpush1.bf16.msra.mxu0 %v4836
    %5427 = vmatprep.subr.bf16.mxu0 %v4833
    %5428 = vmatpush1.bf16.msra.mxu0 %v4832
    %5429 = vmatprep.subr.bf16.mxu0 %v4829
    %5430 = vmatpush1.bf16.msra.mxu0 %v4828
    %5431 = vmatprep.subr.bf16.mxu0 %v4825
    %5432 = vmatpush1.bf16.msra.mxu0 %v4824
    %5433 = vmatprep.subr.bf16.mxu0 %v4821
    %5434 = vmatpush1.bf16.msra.mxu0 %v4820
    %5435 = vmatprep.subr.bf16.mxu0 %v4817
    %5436 = vmatpush1.bf16.msra.mxu0 %v4816
    %5437 = vmatprep.subr.bf16.mxu0 %v4877
    %5438 = vmatpush2.bf16.msra.mxu0 %v4876
    %5439 = vmatprep.subr.bf16.mxu0 %v4873
    %5440 = vmatpush2.bf16.msra.mxu0 %v4872
    %5441 = vmatprep.subr.bf16.mxu0 %v4869
    %5442 = vmatpush2.bf16.msra.mxu0 %v4868
    %5443 = vmatprep.subr.bf16.mxu0 %v4865
    %5444 = vmatpush2.bf16.msra.mxu0 %v4864
    %5445 = vmatprep.subr.bf16.mxu0 %v4861
    %5446 = vmatpush2.bf16.msra.mxu0 %v4860
    %5447 = vmatprep.subr.bf16.mxu0 %v4857
    %5448 = vmatpush2.bf16.msra.mxu0 %v4856
    %5449 = vmatprep.subr.bf16.mxu0 %v4853
    %5450 = vmatpush2.bf16.msra.mxu0 %v4852
    %5451 = vmatprep.subr.bf16.mxu0 %v4849
    %5452 = vmatpush2.bf16.msra.mxu0 %v4848
    %5453 = vmatprep.mubr.bf16.mxu0 %v3575
    %5454 = vmatmul.mubr.bf16.gmra.mxu0 %v3574
    %v5455 = vpop.f32.mrf.mxu0
    %v5456 = vadd.f32 %v5415, %v5455
    %v5457 = vpop.f32.mrf.mxu0
    %v5458 = vadd.f32 %v5417, %v5457
    %v5459 = vpop.f32.mrf.mxu0
    %v5460 = vpop.f32.mrf.mxu0
    %5461 = vdwg.mxu0
    %v5462 = vmax.f32 %v5292, 0.0
    %v5463 = vmax.f32 %v5294, 0.0
    %v5464 = vmax.f32 %v5456, 0.0
    %v5465 = vmax.f32 %v5458, 0.0
    %v5466 = vpack.c.bf16 %v5462, %v5462
    %v5467 = vpack.c.bf16 %v5463, %v5463
    %v5468 = vpack.c.bf16 %v5464, %v5464
    %v5469 = vpack.c.bf16 %v5465, %v5465
    %v5470 = vld [vmem:[#allocation11] sm:$0xf]
    %v5471 = vld [vmem:[#allocation11 + $0x4] sm:$0xf]
    %v5472 = vld [vmem:[#allocation11 + $0x8] sm:$0xf]
    %v5473 = vld [vmem:[#allocation11 + $0xc] sm:$0xf]
    %v5474 = vld [vmem:[#allocation11 + $0x10] sm:$0xf]
    %v5475 = vld [vmem:[#allocation11 + $0x14] sm:$0xf]
    %v5476 = vld [vmem:[#allocation11 + $0x18] sm:$0xf]
    %v5477 = vld [vmem:[#allocation11 + $0x1c] sm:$0xf]
    %v5478 = vld [vmem:[#allocation11 + $0x20] sm:$0xf]
    %v5479 = vld [vmem:[#allocation11 + $0x24] sm:$0xf]
    %v5480 = vld [vmem:[#allocation11 + $0x28] sm:$0xf]
    %v5481 = vld [vmem:[#allocation11 + $0x2c] sm:$0xf]
    %v5482 = vld [vmem:[#allocation11 + $0x30] sm:$0xf]
    %v5483 = vld [vmem:[#allocation11 + $0x34] sm:$0xf]
    %v5484 = vld [vmem:[#allocation11 + $0x38] sm:$0xf]
    %v5485 = vld [vmem:[#allocation11 + $0x3c] sm:$0xf]
    %v5486 = vld [vmem:[#allocation11 + $0x40] sm:$0xf]
    %v5487 = vld [vmem:[#allocation11 + $0x44] sm:$0xf]
    %v5488 = vld [vmem:[#allocation11 + $0x48] sm:$0xf]
    %v5489 = vld [vmem:[#allocation11 + $0x4c] sm:$0xf]
    %v5490 = vld [vmem:[#allocation11 + $0x50] sm:$0xf]
    %v5491 = vld [vmem:[#allocation11 + $0x54] sm:$0xf]
    %v5492 = vld [vmem:[#allocation11 + $0x58] sm:$0xf]
    %v5493 = vld [vmem:[#allocation11 + $0x5c] sm:$0xf]
    %v5494 = vld [vmem:[#allocation11 + $0x60] sm:$0xf]
    %v5495 = vld [vmem:[#allocation11 + $0x64] sm:$0xf]
    %v5496 = vld [vmem:[#allocation11 + $0x68] sm:$0xf]
    %v5497 = vld [vmem:[#allocation11 + $0x6c] sm:$0xf]
    %v5498 = vld [vmem:[#allocation11 + $0x70] sm:$0xf]
    %v5499 = vld [vmem:[#allocation11 + $0x74] sm:$0xf]
    %v5500 = vld [vmem:[#allocation11 + $0x78] sm:$0xf]
    %v5501 = vld [vmem:[#allocation11 + $0x7c] sm:$0xf]
    %v5502 = vld [vmem:[#allocation11 + $0x80] sm:$0xf]
    %v5503 = vld [vmem:[#allocation11 + $0x84] sm:$0xf]
    %v5504 = vld [vmem:[#allocation11 + $0x88] sm:$0xf]
    %v5505 = vld [vmem:[#allocation11 + $0x8c] sm:$0xf]
    %v5506 = vld [vmem:[#allocation11 + $0x90] sm:$0xf]
    %v5507 = vld [vmem:[#allocation11 + $0x94] sm:$0xf]
    %v5508 = vld [vmem:[#allocation11 + $0x98] sm:$0xf]
    %v5509 = vld [vmem:[#allocation11 + $0x9c] sm:$0xf]
    %v5510 = vld [vmem:[#allocation11 + $0xa0] sm:$0xf]
    %v5511 = vld [vmem:[#allocation11 + $0xa4] sm:$0xf]
    %v5512 = vld [vmem:[#allocation11 + $0xa8] sm:$0xf]
    %v5513 = vld [vmem:[#allocation11 + $0xac] sm:$0xf]
    %v5514 = vld [vmem:[#allocation11 + $0xb0] sm:$0xf]
    %v5515 = vld [vmem:[#allocation11 + $0xb4] sm:$0xf]
    %v5516 = vld [vmem:[#allocation11 + $0xb8] sm:$0xf]
    %v5517 = vld [vmem:[#allocation11 + $0xbc] sm:$0xf]
    %v5518 = vld [vmem:[#allocation11 + $0xc0] sm:$0xf]
    %v5519 = vld [vmem:[#allocation11 + $0xc4] sm:$0xf]
    %v5520 = vld [vmem:[#allocation11 + $0xc8] sm:$0xf]
    %v5521 = vld [vmem:[#allocation11 + $0xcc] sm:$0xf]
    %v5522 = vld [vmem:[#allocation11 + $0xd0] sm:$0xf]
    %v5523 = vld [vmem:[#allocation11 + $0xd4] sm:$0xf]
    %v5524 = vld [vmem:[#allocation11 + $0xd8] sm:$0xf]
    %v5525 = vld [vmem:[#allocation11 + $0xdc] sm:$0xf]
    %v5526 = vld [vmem:[#allocation11 + $0xe0] sm:$0xf]
    %v5527 = vld [vmem:[#allocation11 + $0xe4] sm:$0xf]
    %v5528 = vld [vmem:[#allocation11 + $0xe8] sm:$0xf]
    %v5529 = vld [vmem:[#allocation11 + $0xec] sm:$0xf]
    %v5530 = vld [vmem:[#allocation11 + $0xf0] sm:$0xf]
    %v5531 = vld [vmem:[#allocation11 + $0xf4] sm:$0xf]
    %v5532 = vld [vmem:[#allocation11 + $0xf8] sm:$0xf]
    %v5533 = vld [vmem:[#allocation11 + $0xfc] sm:$0xf]
    %v5534 = vld [vmem:[#allocation13] sm:$0x1]
    %v5536 = vlaneseq
    %v5537 = vshrl.u32 %v5536, 7
    %v5538 = vsub.s32 0, %v5537
    %v5539 = vrot.slane %v5534, %v5538
    %v5605 = vunpack.c.l.b16 %v5470
    %v5606 = vunpack.c.l.b16 %v5471
    %v5607 = vunpack.c.l.b16 %v5472
    %v5608 = vunpack.c.l.b16 %v5473
    %v5609 = vunpack.c.l.b16 %v5474
    %v5610 = vunpack.c.l.b16 %v5475
    %v5611 = vunpack.c.l.b16 %v5476
    %v5612 = vunpack.c.l.b16 %v5477
    %v5613 = vunpack.c.l.b16 %v5478
    %v5614 = vunpack.c.l.b16 %v5479
    %v5615 = vunpack.c.l.b16 %v5480
    %v5616 = vunpack.c.l.b16 %v5481
    %v5617 = vunpack.c.l.b16 %v5482
    %v5618 = vunpack.c.l.b16 %v5483
    %v5619 = vunpack.c.l.b16 %v5484
    %v5620 = vunpack.c.l.b16 %v5485
    %v5621 = vunpack.c.l.b16 %v5486
    %v5622 = vunpack.c.l.b16 %v5487
    %v5623 = vunpack.c.l.b16 %v5488
    %v5624 = vunpack.c.l.b16 %v5489
    %v5625 = vunpack.c.l.b16 %v5490
    %v5626 = vunpack.c.l.b16 %v5491
    %v5627 = vunpack.c.l.b16 %v5492
    %v5628 = vunpack.c.l.b16 %v5493
    %v5629 = vunpack.c.l.b16 %v5494
    %v5630 = vunpack.c.l.b16 %v5495
    %v5631 = vunpack.c.l.b16 %v5496
    %v5632 = vunpack.c.l.b16 %v5497
    %v5633 = vunpack.c.l.b16 %v5498
    %v5634 = vunpack.c.l.b16 %v5499
    %v5635 = vunpack.c.l.b16 %v5500
    %v5636 = vunpack.c.l.b16 %v5501
    %v5637 = vunpack.c.l.b16 %v5502
    %v5638 = vunpack.c.l.b16 %v5503
    %v5639 = vunpack.c.l.b16 %v5504
    %v5640 = vunpack.c.l.b16 %v5505
    %v5641 = vunpack.c.l.b16 %v5506
    %v5642 = vunpack.c.l.b16 %v5507
    %v5643 = vunpack.c.l.b16 %v5508
    %v5644 = vunpack.c.l.b16 %v5509
    %v5645 = vunpack.c.l.b16 %v5510
    %v5646 = vunpack.c.l.b16 %v5511
    %v5647 = vunpack.c.l.b16 %v5512
    %v5648 = vunpack.c.l.b16 %v5513
    %v5649 = vunpack.c.l.b16 %v5514
    %v5650 = vunpack.c.l.b16 %v5515
    %v5651 = vunpack.c.l.b16 %v5516
    %v5652 = vunpack.c.l.b16 %v5517
    %v5653 = vunpack.c.l.b16 %v5518
    %v5654 = vunpack.c.l.b16 %v5519
    %v5655 = vunpack.c.l.b16 %v5520
    %v5656 = vunpack.c.l.b16 %v5521
    %v5657 = vunpack.c.l.b16 %v5522
    %v5658 = vunpack.c.l.b16 %v5523
    %v5659 = vunpack.c.l.b16 %v5524
    %v5660 = vunpack.c.l.b16 %v5525
    %v5661 = vunpack.c.l.b16 %v5526
    %v5662 = vunpack.c.l.b16 %v5527
    %v5663 = vunpack.c.l.b16 %v5528
    %v5664 = vunpack.c.l.b16 %v5529
    %v5665 = vunpack.c.l.b16 %v5530
    %v5666 = vunpack.c.l.b16 %v5531
    %v5667 = vunpack.c.l.b16 %v5532
    %v5668 = vunpack.c.l.b16 %v5533
    %v5669 = vpack.c.b16 %v5606, %v5605
    %v5670 = vpack.c.b16 %v5608, %v5607
    %v5671 = vpack.c.b16 %v5610, %v5609
    %v5672 = vpack.c.b16 %v5612, %v5611
    %v5673 = vpack.c.b16 %v5614, %v5613
    %v5674 = vpack.c.b16 %v5616, %v5615
    %v5675 = vpack.c.b16 %v5618, %v5617
    %v5676 = vpack.c.b16 %v5620, %v5619
    %v5677 = vpack.c.b16 %v5622, %v5621
    %v5678 = vpack.c.b16 %v5624, %v5623
    %v5679 = vpack.c.b16 %v5626, %v5625
    %v5680 = vpack.c.b16 %v5628, %v5627
    %v5681 = vpack.c.b16 %v5630, %v5629
    %v5682 = vpack.c.b16 %v5632, %v5631
    %v5683 = vpack.c.b16 %v5634, %v5633
    %v5684 = vpack.c.b16 %v5636, %v5635
    %v5685 = vpack.c.b16 %v5638, %v5637
    %v5686 = vpack.c.b16 %v5640, %v5639
    %v5687 = vpack.c.b16 %v5642, %v5641
    %v5688 = vpack.c.b16 %v5644, %v5643
    %v5689 = vpack.c.b16 %v5646, %v5645
    %v5690 = vpack.c.b16 %v5648, %v5647
    %v5691 = vpack.c.b16 %v5650, %v5649
    %v5692 = vpack.c.b16 %v5652, %v5651
    %v5693 = vpack.c.b16 %v5654, %v5653
    %v5694 = vpack.c.b16 %v5656, %v5655
    %v5695 = vpack.c.b16 %v5658, %v5657
    %v5696 = vpack.c.b16 %v5660, %v5659
    %v5697 = vpack.c.b16 %v5662, %v5661
    %v5698 = vpack.c.b16 %v5664, %v5663
    %v5699 = vpack.c.b16 %v5666, %v5665
    %v5700 = vpack.c.b16 %v5668, %v5667
    %5733 = vmatprep.subr.bf16.mxu0 0
    %5734 = vmatpush1.bf16.msra.mxu0 %v5676
    %5735 = vmatprep.subr.bf16.mxu0 0
    %5736 = vmatpush1.bf16.msra.mxu0 %v5675
    %5737 = vmatprep.subr.bf16.mxu0 0
    %5738 = vmatpush1.bf16.msra.mxu0 %v5674
    %5739 = vmatprep.subr.bf16.mxu0 0
    %5740 = vmatpush1.bf16.msra.mxu0 %v5673
    %5741 = vmatprep.subr.bf16.mxu0 0
    %5742 = vmatpush1.bf16.msra.mxu0 %v5672
    %5743 = vmatprep.subr.bf16.mxu0 0
    %5744 = vmatpush1.bf16.msra.mxu0 %v5671
    %5745 = vmatprep.subr.bf16.mxu0 0
    %5746 = vmatpush1.bf16.msra.mxu0 %v5670
    %5747 = vmatprep.subr.bf16.mxu0 0
    %5748 = vmatpush1.bf16.msra.mxu0 %v5669
    %5749 = vmatprep.subr.bf16.mxu0 0
    %5750 = vmatpush2.bf16.msra.mxu0 %v5684
    %5751 = vmatprep.subr.bf16.mxu0 0
    %5752 = vmatpush2.bf16.msra.mxu0 %v5683
    %5753 = vmatprep.subr.bf16.mxu0 0
    %5754 = vmatpush2.bf16.msra.mxu0 %v5682
    %5755 = vmatprep.subr.bf16.mxu0 0
    %5756 = vmatpush2.bf16.msra.mxu0 %v5681
    %5757 = vmatprep.subr.bf16.mxu0 0
    %5758 = vmatpush2.bf16.msra.mxu0 %v5680
    %5759 = vmatprep.subr.bf16.mxu0 0
    %5760 = vmatpush2.bf16.msra.mxu0 %v5679
    %5761 = vmatprep.subr.bf16.mxu0 0
    %5762 = vmatpush2.bf16.msra.mxu0 %v5678
    %5763 = vmatprep.subr.bf16.mxu0 0
    %5764 = vmatpush2.bf16.msra.mxu0 %v5677
    %5765 = vmatprep.mubr.bf16.mxu0 %v5467
    %5766 = vmatmul.mubr.bf16.gmra.mxu0 %v5466
    %v5767 = vpop.f32.mrf.mxu0
    %v5768 = vadd.f32 %v5539, %v5767
    %v5769 = vpop.f32.mrf.mxu0
    %v5770 = vpop.f32.mrf.mxu0
    %v5771 = vpop.f32.mrf.mxu0
    %5772 = vdwg.mxu0
    %5773 = vmatprep.subr.bf16.mxu0 0
    %5774 = vmatpush1.bf16.msra.mxu0 %v5692
    %5775 = vmatprep.subr.bf16.mxu0 0
    %5776 = vmatpush1.bf16.msra.mxu0 %v5691
    %5777 = vmatprep.subr.bf16.mxu0 0
    %5778 = vmatpush1.bf16.msra.mxu0 %v5690
    %5779 = vmatprep.subr.bf16.mxu0 0
    %5780 = vmatpush1.bf16.msra.mxu0 %v5689
    %5781 = vmatprep.subr.bf16.mxu0 0
    %5782 = vmatpush1.bf16.msra.mxu0 %v5688
    %5783 = vmatprep.subr.bf16.mxu0 0
    %5784 = vmatpush1.bf16.msra.mxu0 %v5687
    %5785 = vmatprep.subr.bf16.mxu0 0
    %5786 = vmatpush1.bf16.msra.mxu0 %v5686
    %5787 = vmatprep.subr.bf16.mxu0 0
    %5788 = vmatpush1.bf16.msra.mxu0 %v5685
    %5789 = vmatprep.subr.bf16.mxu0 0
    %5790 = vmatpush2.bf16.msra.mxu0 %v5700
    %5791 = vmatprep.subr.bf16.mxu0 0
    %5792 = vmatpush2.bf16.msra.mxu0 %v5699
    %5793 = vmatprep.subr.bf16.mxu0 0
    %5794 = vmatpush2.bf16.msra.mxu0 %v5698
    %5795 = vmatprep.subr.bf16.mxu0 0
    %5796 = vmatpush2.bf16.msra.mxu0 %v5697
    %5797 = vmatprep.subr.bf16.mxu0 0
    %5798 = vmatpush2.bf16.msra.mxu0 %v5696
    %5799 = vmatprep.subr.bf16.mxu0 0
    %5800 = vmatpush2.bf16.msra.mxu0 %v5695
    %5801 = vmatprep.subr.bf16.mxu0 0
    %5802 = vmatpush2.bf16.msra.mxu0 %v5694
    %5803 = vmatprep.subr.bf16.mxu0 0
    %5804 = vmatpush2.bf16.msra.mxu0 %v5693
    %5805 = vmatprep.mubr.bf16.mxu0 %v5469
    %5806 = vmatmul.mubr.bf16.gmra.mxu0 %v5468
    %v5807 = vpop.f32.mrf.mxu0
    %v5808 = vadd.f32 %v5768, %v5807
    %v5809 = vpop.f32.mrf.mxu0
    %v5810 = vpop.f32.mrf.mxu0
    %v5811 = vpop.f32.mrf.mxu0
    %5812 = vdwg.mxu0
    %v5813 = vmax.f32 %v5808, 0.0
    %v5814 = vld [vmem:[#allocation14] sm:$0x1]
    %v5816 = vlaneseq
    %v5817 = vshrl.u32 %v5816, 7
    %v5818 = vsub.s32 0, %v5817
    %v5819 = vrot.slane %v5814, %v5818
    %v5821 = vmul.f32 %v5813, %v5819
    %5822 = vadd.xlane.f32.xlu0 %v5821
    %v5823 = vpop.xlane.xlu0 %5822
    %v5824 = vld [vmem:[#allocation2] sm:$0x1]
    %v5826 = vlaneseq
    %v5827 = vshrl.u32 %v5826, 7
    %v5828 = vsub.s32 0, %v5827
    %v5829 = vrot.slane %v5824, %v5828
    %v5831 = vadd.f32 %v5823, %v5829
    %vm5832 = vcmask 7168
    %5833 = vst.msk [vmem:[%s11] sm:$0xff] %vm5832, %v5831
    // Predicated region
    $region78: #{discriminator_forward.1} parent=1 // pred_check
      _
    $region79: #{discriminator_forward.1} parent=1 // pred_check_branch
      %5835 = sbr.rel (0) target = $region81
    $region80: #{discriminator_forward.1} parent=1 // pred_region
      _
    $region81: #{discriminator_forward.1} parent=1 // pred_fallthru
      _
    // Predicated region
    $region82: #{discriminator_forward.1} parent=1 // pred_check
      _
    $region83: #{discriminator_forward.1} parent=1 // pred_check_branch
      %5837 = sbr.rel (0) target = $region85
    $region84: #{discriminator_forward.1} parent=1 // pred_region
      _
    $region85: #{discriminator_forward.1} parent=1 // pred_fallthru
      _
    %5838 = vsyncpa [#allocation4], 1
    %5839 = vsyncpa [#allocation6], 1
    %5840 = vsyncpa [#allocation9], 1
    %5841 = vsyncpa [#allocation12], 1
    %5842 = vsyncpa [#allocation15], 1

</llo_original>
